<compile_context>
chip_gen: v7x
topology: tpu7x:2x2x1
jax: 0.10.0
libtpu: 0.0.40
codegen_flags: <defaults>
</compile_context>

<pallas_src>
import functools
import numpy as np
import jax
import jax.numpy as jnp
from jax.experimental import pallas as pl
from jax.experimental.pallas import tpu as pltpu

PI = float(np.pi)
LOG2 = float(np.log(2.0))

# ---------------- model hyper-parameters (small, consistent with the module) ---
HIDDEN = 32          # hidden_channels
FILTERS = 32         # num_filters
GAUSSIANS = 16       # num_gaussians
INTERACTIONS = 3     # num_interaction blocks
CUTOFF = 10.0
N_ATOMS = 16         # total atoms (2 molecules x 8 atoms)
N_MOL = 2
PAD_MOL = 128        # lane-dense readout slab width (sliced to N_MOL outside)


def _ssp(x):
    # ShiftedSoftplus: softplus(x) - log(2), numerically stable form.
    return jnp.maximum(x, 0.0) + jnp.log(1.0 + jnp.exp(-jnp.abs(x))) - LOG2


# ------------------------------ fused Pallas kernel -----------------------------
def schnet_fused_kernel(posT_ref, bat_ref, pt_ref, hT_ref,
                        wm1t_ref, wpack_ref, bias_ref,
                        hw1t_ref, hb1_ref, hw2t_ref, hb2_ref,
                        out_ref, *, coeff, cutoff, n_blocks, n_atoms, n_gauss):
    f32 = jnp.float32
    n = int(n_atoms)
    e = n * n
    g = n_gauss
    shift = n.bit_length() - 1
    assert (1 << shift) == n, "atom count must be a power of two for edge index math"

    # ---- constant 0/1 gather / scatter matrices (2-D iotas, edge k = j*n + i) ---
    row_ne = jax.lax.broadcasted_iota(jnp.int32, (n, e), 0)
    col_ne = jax.lax.broadcasted_iota(jnp.int32, (n, e), 1)
    g_src = jnp.where((col_ne >> shift) == row_ne, 1.0, 0.0)    # (n,e) gather source j
    g_tgt = jnp.where((col_ne & (n - 1)) == row_ne, 1.0, 0.0)   # (n,e) gather target i

    row_en = jax.lax.broadcasted_iota(jnp.int32, (e, n), 0)
    col_en = jax.lax.broadcasted_iota(jnp.int32, (e, n), 1)
    s_tgt = jnp.where((row_en & (n - 1)) == col_en, 1.0, 0.0)   # (e,n) scatter-add target

    # ---- graph construction fused into the kernel (was XLA glue) ----------------
    posT = posT_ref[...]                                             # (3, n)
    p_src = jnp.dot(posT, g_src, preferred_element_type=f32)         # (3, e)
    p_tgt = jnp.dot(posT, g_tgt, preferred_element_type=f32)         # (3, e)
    diff = p_src - p_tgt
    sq = diff * diff
    d = jnp.sqrt(sq[0:1, :] + sq[1:2, :] + sq[2:3, :])               # (1, e)

    bat = bat_ref[...]                                               # (1, n)
    b_src = jnp.dot(bat, g_src, preferred_element_type=f32)          # (1, e)
    b_tgt = jnp.dot(bat, g_tgt, preferred_element_type=f32)          # (1, e)
    col_1e = jax.lax.broadcasted_iota(jnp.int32, (1, e), 1)
    no_self = (col_1e >> shift) != (col_1e & (n - 1))
    mask = jnp.where((b_src == b_tgt) & no_self & (d < cutoff), 1.0, 0.0)   # (1, e)

    # ---- block-invariant edge precompute (Gaussian smearing, cosine cutoff) -----
    mu = jax.lax.broadcasted_iota(jnp.int32, (g, 1), 0).astype(f32) * (cutoff / (g - 1))
    ea = jnp.exp(coeff * (d - mu) ** 2)                              # (g, e)
    cm = (0.5 * (jnp.cos(d * (PI / cutoff)) + 1.0)) * mask           # (1, e)

    hT = hT_ref[...]                                                 # (H, n)
    for blk in range(n_blocks):
        # filter-generating MLP, lane-dense on the edge axis
        w = jnp.dot(wm1t_ref[blk], ea, preferred_element_type=f32) + bias_ref[4 * blk + 0]
        w = _ssp(w)
        w = jnp.dot(wpack_ref[4 * blk + 0], w, preferred_element_type=f32) + bias_ref[4 * blk + 1]
        w = w * cm                                                   # (F, e)

        # CFConv: lin1 -> MXU gather -> weight -> MXU scatter-add -> lin2
        xfT = jnp.dot(wpack_ref[4 * blk + 1], hT, preferred_element_type=f32)   # (F, n)
        xf_e = jnp.dot(xfT, g_src, preferred_element_type=f32)                  # (F, e)
        msgT = jnp.dot(w * xf_e, s_tgt, preferred_element_type=f32)             # (F, n)

        x = jnp.dot(wpack_ref[4 * blk + 2], msgT, preferred_element_type=f32) + bias_ref[4 * blk + 2]
        x = _ssp(x)
        x = jnp.dot(wpack_ref[4 * blk + 3], x, preferred_element_type=f32) + bias_ref[4 * blk + 3]
        hT = hT + x

    # readout head + per-molecule sum into a lane-dense (1, PAD_MOL) slab
    x = jnp.dot(hw1t_ref[...], hT, preferred_element_type=f32) + hb1_ref[...]   # (H/2, n)
    x = _ssp(x)
    y = jnp.dot(hw2t_ref[...], x, preferred_element_type=f32) + hb2_ref[...]    # (1, n)
    out_ref[...] = jnp.dot(y, pt_ref[...], preferred_element_type=f32)          # (1, PAD_MOL)


# ------------------------------ parameter init ----------------------------------
def xavier_uniform(key, fan_in, fan_out, shape):
    bound = float(np.sqrt(6.0 / (fan_in + fan_out)))
    return jax.random.uniform(key, shape, jnp.float32, -bound, bound)


def init_params(key):
    keys = jax.random.split(key, 2 + 5 * INTERACTIONS + 2)
    it = iter(keys)
    params = {}
    emb = jax.random.normal(next(it), (100, HIDDEN), jnp.float32)
    emb = emb.at[0].set(0.0)                      # padding_idx = 0
    params["embedding"] = emb

    blocks = []
    for _ in range(INTERACTIONS):
        wm1 = xavier_uniform(next(it), GAUSSIANS, FILTERS, (GAUSSIANS, FILTERS))
        bm1 = jnp.zeros((1, FILTERS), jnp.float32)
        wm2 = xavier_uniform(next(it), FILTERS, FILTERS, (FILTERS, FILTERS))
        bm2 = jnp.zeros((1, FILTERS), jnp.float32)
        wl1 = xavier_uniform(next(it), HIDDEN, FILTERS, (HIDDEN, FILTERS))   # no bias
        wl2 = xavier_uniform(next(it), FILTERS, HIDDEN, (FILTERS, HIDDEN))
        bl2 = jnp.zeros((1, HIDDEN), jnp.float32)
        wl = xavier_uniform(next(it), HIDDEN, HIDDEN, (HIDDEN, HIDDEN))
        bl = jnp.zeros((1, HIDDEN), jnp.float32)
        blocks.append((wm1, bm1, wm2, bm2, wl1, wl2, bl2, wl, bl))
    params["blocks"] = blocks

    h2 = HIDDEN // 2
    params["head_w1"] = xavier_uniform(next(it), HIDDEN, h2, (HIDDEN, h2))
    params["head_b1"] = jnp.zeros((1, h2), jnp.float32)
    params["head_w2"] = xavier_uniform(next(it), h2, 1, (h2, 1))
    params["head_b2"] = jnp.zeros((1, 1), jnp.float32)
    return params


def pack_params(params):
    """Transpose / stack / concatenate the weights ONCE (outside the hot path)."""
    blocks = params["blocks"]
    # per-block (F,G) filter-MLP first layer
    wm1t = jnp.stack([b[0].T for b in blocks])                                    # (I, F, G)
    # per-block 32x32 slabs, order: wm2t, wl1t, wl2t, wlt
    wpack = jnp.stack([m.T for b in blocks for m in (b[2], b[4], b[5], b[7])])    # (4I, 32, 32)
    # per-block bias columns, order: bm1, bm2, bl2, bl
    bias = jnp.stack([v.T for b in blocks for v in (b[1], b[3], b[6], b[8])])     # (4I, 32, 1)
    return {
        "embedding": params["embedding"],
        "wm1t": wm1t, "wpack": wpack, "bias": bias,
        "hw1t": params["head_w1"].T,   # (H/2, H)
        "hb1":  params["head_b1"].T,   # (H/2, 1)
        "hw2t": params["head_w2"].T,   # (1, H/2)
        "hb2":  params["head_b2"],     # (1, 1)
    }


# ------------------------------ full forward (jitted) ----------------------------
def _schnet_forward(z, pos, batch, packed):
    n = z.shape[0]
    coeff = -0.5 / (CUTOFF / (GAUSSIANS - 1)) ** 2

    posT = pos.astype(jnp.float32).T                                   # (3, N)
    bat_row = batch.astype(jnp.float32).reshape(1, n)                  # (1, N)
    pt = (batch[:, None] ==
          jnp.arange(PAD_MOL, dtype=batch.dtype)[None, :]).astype(jnp.float32)   # (N, 128)
    hT = packed["embedding"][z].T                                      # (H, N)

    kernel = functools.partial(schnet_fused_kernel, coeff=coeff, cutoff=CUTOFF,
                               n_blocks=INTERACTIONS, n_atoms=n, n_gauss=GAUSSIANS)
    out = pl.pallas_call(
        kernel,
        out_shape=jax.ShapeDtypeStruct((1, PAD_MOL), jnp.float32),
        in_specs=[pl.BlockSpec(memory_space=pltpu.MemorySpace.VMEM)] * 11,
        out_specs=pl.BlockSpec(memory_space=pltpu.MemorySpace.VMEM),
        cost_estimate=pl.CostEstimate(flops=4_500_000, transcendentals=31_000,
                                      bytes_accessed=70_000),
    )(posT, bat_row, pt, hT,
      packed["wm1t"], packed["wpack"], packed["bias"],
      packed["hw1t"], packed["hb1"], packed["hw2t"], packed["hb2"])
    return out[:, :N_MOL].reshape(N_MOL, 1)


schnet_forward = jax.jit(_schnet_forward)


# ------------------------------ pure-JAX reference --------------------------------
def schnet_reference(z, pos, batch, params):
    n = z.shape[0]
    coeff = -0.5 / (CUTOFF / (GAUSSIANS - 1)) ** 2
    offset = jnp.linspace(0.0, CUTOFF, GAUSSIANS).astype(jnp.float32)

    diff = pos[:, None, :] - pos[None, :, :]
    dist = jnp.sqrt(jnp.sum(diff * diff, axis=-1))
    same_mol = batch[:, None] == batch[None, :]
    no_self = ~jnp.eye(n, dtype=bool)
    mask = (same_mol & no_self & (dist < CUTOFF)).astype(jnp.float32)   # (N, N)

    ea = jnp.exp(coeff * (dist[:, :, None] - offset[None, None, :]) ** 2)   # (N, N, G)
    C = 0.5 * (jnp.cos(dist * (PI / CUTOFF)) + 1.0)                         # (N, N)

    h = params["embedding"][z]
    for (wm1, bm1, wm2, bm2, wl1, wl2, bl2, wl, bl) in params["blocks"]:
        w = _ssp(ea @ wm1 + bm1[0]) @ wm2 + bm2[0]                          # (N, N, F)
        w = w * C[:, :, None] * mask[:, :, None]
        xf = h @ wl1                                                        # (N, F)
        msg = jnp.sum(w * xf[None, :, :], axis=1)                           # (N, F)
        x = msg @ wl2 + bl2[0]
        x = _ssp(x)
        x = x @ wl + bl[0]
        h = h + x

    x = _ssp(h @ params["head_w1"] + params["head_b1"][0])
    y = x @ params["head_w2"] + params["head_b2"][0]                        # (N, 1)
    P = (batch[None, :] == jnp.arange(N_MOL)[:, None]).astype(jnp.float32)
    return P @ y


# ------------------------------ main ----------------------------------------------
if __name__ == "__main__":
    key = jax.random.PRNGKey(0)
    k_param, k_z, k_pos = jax.random.split(key, 3)

    params = init_params(k_param)
    packed = pack_params(params)      # one-time weight transpose/stack (not per call)

    # two molecules of 8 atoms each
    z = jax.random.randint(k_z, (N_ATOMS,), 1, 10)                        # atomic numbers
    pos = jax.random.uniform(k_pos, (N_ATOMS, 3), jnp.float32, 0.0, 4.0)  # coordinates
    batch = jnp.concatenate([jnp.zeros(8, jnp.int32), jnp.ones(8, jnp.int32)])

    out = schnet_forward(z, pos, batch, packed)
    out = jax.block_until_ready(out)

    ref = schnet_reference(z, pos, batch, params)
    np.testing.assert_allclose(np.asarray(out), np.asarray(ref), rtol=2e-2, atol=2e-2)

    # TODO(synk): dipole / atomref / mean-std branches are disabled by default in the
    # module and are not exercised here.
    print("KERNEL_OK")
</pallas_src>

<mosaic_0001>
module attributes {stable_mosaic.version = 11 : i64} {
  func.func @schnet_fused_kernel(%arg0: memref<3x16xf32, #tpu.memory_space<vmem>>, %arg1: memref<1x16xf32, #tpu.memory_space<vmem>>, %arg2: memref<16x128xf32, #tpu.memory_space<vmem>>, %arg3: memref<32x16xf32, #tpu.memory_space<vmem>>, %arg4: memref<3x32x16xf32, #tpu.memory_space<vmem>>, %arg5: memref<12x32x32xf32, #tpu.memory_space<vmem>>, %arg6: memref<12x32x1xf32, #tpu.memory_space<vmem>>, %arg7: memref<16x32xf32, #tpu.memory_space<vmem>>, %arg8: memref<16x1xf32, #tpu.memory_space<vmem>>, %arg9: memref<1x16xf32, #tpu.memory_space<vmem>>, %arg10: memref<1x1xf32, #tpu.memory_space<vmem>>, %arg11: memref<1x128xf32, #tpu.memory_space<vmem>>) attributes {dimension_semantics = [], scalar_prefetch = 0 : i64, scratch_operands = 0 : i64, tpu.core_type = #tpu.core_type<tc>} {
    %0 = tpu.iota {dimensions = array<i32: 0>} : vector<16x256xi32>
    %1 = tpu.iota {dimensions = array<i32: 1>} : vector<16x256xi32>
    %c4_i32 = arith.constant 4 : i32
    %2 = vector.broadcast %c4_i32 : i32 to vector<16x256xi32>
    %3 = arith.shrsi %1, %2 : vector<16x256xi32>
    %4 = arith.cmpi eq, %3, %0 : vector<16x256xi32>
    %cst = arith.constant 1.000000e+00 : f32
    %cst_0 = arith.constant 0.000000e+00 : f32
    %5 = vector.broadcast %cst : f32 to vector<16x256xf32>
    %6 = vector.broadcast %cst_0 : f32 to vector<16x256xf32>
    %7 = arith.select %4, %5, %6 : vector<16x256xi1>, vector<16x256xf32>
    %c15_i32 = arith.constant 15 : i32
    %8 = vector.broadcast %c15_i32 : i32 to vector<16x256xi32>
    %9 = arith.andi %1, %8 : vector<16x256xi32>
    %10 = arith.cmpi eq, %9, %0 : vector<16x256xi32>
    %cst_1 = arith.constant 1.000000e+00 : f32
    %cst_2 = arith.constant 0.000000e+00 : f32
    %11 = vector.broadcast %cst_1 : f32 to vector<16x256xf32>
    %12 = vector.broadcast %cst_2 : f32 to vector<16x256xf32>
    %13 = arith.select %10, %11, %12 : vector<16x256xi1>, vector<16x256xf32>
    %14 = tpu.iota {dimensions = array<i32: 0>} : vector<256x16xi32>
    %15 = tpu.iota {dimensions = array<i32: 1>} : vector<256x16xi32>
    %c15_i32_3 = arith.constant 15 : i32
    %16 = vector.broadcast %c15_i32_3 : i32 to vector<256x16xi32>
    %17 = arith.andi %14, %16 : vector<256x16xi32>
    %18 = arith.cmpi eq, %17, %15 : vector<256x16xi32>
    %cst_4 = arith.constant 1.000000e+00 : f32
    %cst_5 = arith.constant 0.000000e+00 : f32
    %19 = vector.broadcast %cst_4 : f32 to vector<256x16xf32>
    %20 = vector.broadcast %cst_5 : f32 to vector<256x16xf32>
    %21 = arith.select %18, %19, %20 : vector<256x16xi1>, vector<256x16xf32>
    %c0 = arith.constant 0 : index
    %c0_6 = arith.constant 0 : index
    %22 = vector.load %arg0[%c0, %c0_6] : memref<3x16xf32, #tpu.memory_space<vmem>>, vector<3x16xf32>
    %cst_7 = arith.constant dense<0.000000e+00> : vector<3x256xf32>
    %23 = tpu.matmul %22, %7, %cst_7 {dimension_numbers = #tpu.dot_dimension_numbers<[1], [0], [0], [1], [0, 0, 1, 1], [], []>} : vector<3x16xf32>, vector<16x256xf32>, vector<3x256xf32> -> vector<3x256xf32>
    %cst_8 = arith.constant dense<0.000000e+00> : vector<3x256xf32>
    %24 = tpu.matmul %22, %13, %cst_8 {dimension_numbers = #tpu.dot_dimension_numbers<[1], [0], [0], [1], [0, 0, 1, 1], [], []>} : vector<3x16xf32>, vector<16x256xf32>, vector<3x256xf32> -> vector<3x256xf32>
    %25 = arith.subf %23, %24 : vector<3x256xf32>
    %26 = arith.mulf %25, %25 : vector<3x256xf32>
    %27 = vector.extract_strided_slice %26 {offsets = [0, 0], sizes = [1, 256], strides = [1, 1]} : vector<3x256xf32> to vector<1x256xf32>
    %28 = vector.extract_strided_slice %26 {offsets = [1, 0], sizes = [1, 256], strides = [1, 1]} : vector<3x256xf32> to vector<1x256xf32>
    %29 = arith.addf %27, %28 : vector<1x256xf32>
    %30 = vector.extract_strided_slice %26 {offsets = [2, 0], sizes = [1, 256], strides = [1, 1]} : vector<3x256xf32> to vector<1x256xf32>
    %31 = arith.addf %29, %30 : vector<1x256xf32>
    %32 = math.sqrt %31 : vector<1x256xf32>
    %c0_9 = arith.constant 0 : index
    %c0_10 = arith.constant 0 : index
    %33 = vector.load %arg1[%c0_9, %c0_10] : memref<1x16xf32, #tpu.memory_space<vmem>>, vector<1x16xf32>
    %cst_11 = arith.constant dense<0.000000e+00> : vector<1x256xf32>
    %34 = tpu.matmul %33, %7, %cst_11 {dimension_numbers = #tpu.dot_dimension_numbers<[1], [0], [0], [1], [0, 0, 1, 1], [], []>} : vector<1x16xf32>, vector<16x256xf32>, vector<1x256xf32> -> vector<1x256xf32>
    %cst_12 = arith.constant dense<0.000000e+00> : vector<1x256xf32>
    %35 = tpu.matmul %33, %13, %cst_12 {dimension_numbers = #tpu.dot_dimension_numbers<[1], [0], [0], [1], [0, 0, 1, 1], [], []>} : vector<1x16xf32>, vector<16x256xf32>, vector<1x256xf32> -> vector<1x256xf32>
    %36 = tpu.iota {dimensions = array<i32: 1>} : vector<1x256xi32>
    %c4_i32_13 = arith.constant 4 : i32
    %37 = vector.broadcast %c4_i32_13 : i32 to vector<1x256xi32>
    %38 = arith.shrsi %36, %37 : vector<1x256xi32>
    %c15_i32_14 = arith.constant 15 : i32
    %39 = vector.broadcast %c15_i32_14 : i32 to vector<1x256xi32>
    %40 = arith.andi %36, %39 : vector<1x256xi32>
    %41 = arith.cmpi ne, %38, %40 : vector<1x256xi32>
    %42 = arith.cmpf oeq, %34, %35 : vector<1x256xf32>
    %43 = arith.andi %42, %41 : vector<1x256xi1>
    %cst_15 = arith.constant 1.000000e+01 : f32
    %44 = vector.broadcast %cst_15 : f32 to vector<1x256xf32>
    %45 = arith.cmpf olt, %32, %44 : vector<1x256xf32>
    %46 = arith.andi %43, %45 : vector<1x256xi1>
    %cst_16 = arith.constant 1.000000e+00 : f32
    %cst_17 = arith.constant 0.000000e+00 : f32
    %47 = vector.broadcast %cst_16 : f32 to vector<1x256xf32>
    %48 = vector.broadcast %cst_17 : f32 to vector<1x256xf32>
    %49 = arith.select %46, %47, %48 : vector<1x256xi1>, vector<1x256xf32>
    %50 = tpu.iota {dimensions = array<i32: 0>} : vector<16x1xi32>
    %51 = arith.sitofp %50 : vector<16x1xi32> to vector<16x1xf32>
    %cst_18 = arith.constant 0.666666686 : f32
    %52 = vector.broadcast %cst_18 : f32 to vector<16x1xf32>
    %53 = arith.mulf %51, %52 : vector<16x1xf32>
    %54 = vector.broadcast %32 : vector<1x256xf32> to vector<16x256xf32>
    %55 = vector.broadcast %53 : vector<16x1xf32> to vector<16x256xf32>
    %56 = arith.subf %54, %55 : vector<16x256xf32>
    %57 = arith.mulf %56, %56 : vector<16x256xf32>
    %cst_19 = arith.constant -1.125000e+00 : f32
    %58 = vector.broadcast %cst_19 : f32 to vector<16x256xf32>
    %59 = arith.mulf %58, %57 : vector<16x256xf32>
    %60 = math.exp %59 : vector<16x256xf32>
    %cst_20 = arith.constant 0.314159274 : f32
    %61 = vector.broadcast %cst_20 : f32 to vector<1x256xf32>
    %62 = arith.mulf %32, %61 : vector<1x256xf32>
    %63 = math.cos %62 : vector<1x256xf32>
    %cst_21 = arith.constant 1.000000e+00 : f32
    %64 = vector.broadcast %cst_21 : f32 to vector<1x256xf32>
    %65 = arith.addf %63, %64 : vector<1x256xf32>
    %cst_22 = arith.constant 5.000000e-01 : f32
    %66 = vector.broadcast %cst_22 : f32 to vector<1x256xf32>
    %67 = arith.mulf %66, %65 : vector<1x256xf32>
    %68 = arith.mulf %67, %49 : vector<1x256xf32>
    %c0_23 = arith.constant 0 : index
    %c0_24 = arith.constant 0 : index
    %69 = vector.load %arg3[%c0_23, %c0_24] : memref<32x16xf32, #tpu.memory_space<vmem>>, vector<32x16xf32>
    %c0_25 = arith.constant 0 : index
    %c0_26 = arith.constant 0 : index
    %c0_27 = arith.constant 0 : index
    %70 = vector.load %arg4[%c0_25, %c0_26, %c0_27] : memref<3x32x16xf32, #tpu.memory_space<vmem>>, vector<1x32x16xf32>
    %71 = vector.shape_cast %70 : vector<1x32x16xf32> to vector<32x16xf32>
    %cst_28 = arith.constant dense<0.000000e+00> : vector<32x256xf32>
    %72 = tpu.matmul %71, %60, %cst_28 {dimension_numbers = #tpu.dot_dimension_numbers<[1], [0], [0], [1], [0, 0, 1, 1], [], []>} : vector<32x16xf32>, vector<16x256xf32>, vector<32x256xf32> -> vector<32x256xf32>
    %c0_29 = arith.constant 0 : index
    %c0_30 = arith.constant 0 : index
    %c0_31 = arith.constant 0 : index
    %73 = vector.load %arg6[%c0_29, %c0_30, %c0_31] : memref<12x32x1xf32, #tpu.memory_space<vmem>>, vector<1x32x1xf32>
    %74 = vector.shape_cast %73 : vector<1x32x1xf32> to vector<32x1xf32>
    %75 = vector.broadcast %74 : vector<32x1xf32> to vector<32x256xf32>
    %76 = arith.addf %72, %75 : vector<32x256xf32>
    %cst_32 = arith.constant 0.000000e+00 : f32
    %77 = vector.broadcast %cst_32 : f32 to vector<32x256xf32>
    %78 = arith.maximumf %76, %77 : vector<32x256xf32>
    %79 = math.absf %76 : vector<32x256xf32>
    %cst_33 = arith.constant 0.000000e+00 : f32
    %80 = vector.broadcast %cst_33 : f32 to vector<32x256xf32>
    %81 = arith.subf %80, %79 : vector<32x256xf32>
    %82 = math.exp %81 : vector<32x256xf32>
    %cst_34 = arith.constant 1.000000e+00 : f32
    %83 = vector.broadcast %cst_34 : f32 to vector<32x256xf32>
    %84 = arith.addf %83, %82 : vector<32x256xf32>
    %85 = math.log %84 : vector<32x256xf32>
    %86 = arith.addf %78, %85 : vector<32x256xf32>
    %cst_35 = arith.constant 0.693147182 : f32
    %87 = vector.broadcast %cst_35 : f32 to vector<32x256xf32>
    %88 = arith.subf %86, %87 : vector<32x256xf32>
    %c0_36 = arith.constant 0 : index
    %c0_37 = arith.constant 0 : index
    %c0_38 = arith.constant 0 : index
    %89 = vector.load %arg5[%c0_36, %c0_37, %c0_38] : memref<12x32x32xf32, #tpu.memory_space<vmem>>, vector<1x32x32xf32>
    %90 = vector.shape_cast %89 : vector<1x32x32xf32> to vector<32x32xf32>
    %cst_39 = arith.constant dense<0.000000e+00> : vector<32x256xf32>
    %91 = tpu.matmul %90, %88, %cst_39 {dimension_numbers = #tpu.dot_dimension_numbers<[1], [0], [0], [1], [0, 0, 1, 1], [], []>} : vector<32x32xf32>, vector<32x256xf32>, vector<32x256xf32> -> vector<32x256xf32>
    %c1 = arith.constant 1 : index
    %c0_40 = arith.constant 0 : index
    %c0_41 = arith.constant 0 : index
    %92 = vector.load %arg6[%c1, %c0_40, %c0_41] : memref<12x32x1xf32, #tpu.memory_space<vmem>>, vector<1x32x1xf32>
    %93 = vector.shape_cast %92 : vector<1x32x1xf32> to vector<32x1xf32>
    %94 = vector.broadcast %93 : vector<32x1xf32> to vector<32x256xf32>
    %95 = arith.addf %91, %94 : vector<32x256xf32>
    %96 = vector.broadcast %68 : vector<1x256xf32> to vector<32x256xf32>
    %97 = arith.mulf %95, %96 : vector<32x256xf32>
    %c1_42 = arith.constant 1 : index
    %c0_43 = arith.constant 0 : index
    %c0_44 = arith.constant 0 : index
    %98 = vector.load %arg5[%c1_42, %c0_43, %c0_44] : memref<12x32x32xf32, #tpu.memory_space<vmem>>, vector<1x32x32xf32>
    %99 = vector.shape_cast %98 : vector<1x32x32xf32> to vector<32x32xf32>
    %cst_45 = arith.constant dense<0.000000e+00> : vector<32x16xf32>
    %100 = tpu.matmul %99, %69, %cst_45 {dimension_numbers = #tpu.dot_dimension_numbers<[1], [0], [0], [1], [0, 0, 1, 1], [], []>} : vector<32x32xf32>, vector<32x16xf32>, vector<32x16xf32> -> vector<32x16xf32>
    %cst_46 = arith.constant dense<0.000000e+00> : vector<32x256xf32>
    %101 = tpu.matmul %100, %7, %cst_46 {dimension_numbers = #tpu.dot_dimension_numbers<[1], [0], [0], [1], [0, 0, 1, 1], [], []>} : vector<32x16xf32>, vector<16x256xf32>, vector<32x256xf32> -> vector<32x256xf32>
    %102 = arith.mulf %97, %101 : vector<32x256xf32>
    %cst_47 = arith.constant dense<0.000000e+00> : vector<32x16xf32>
    %103 = tpu.matmul %102, %21, %cst_47 {dimension_numbers = #tpu.dot_dimension_numbers<[1], [0], [0], [1], [0, 0, 1, 1], [], []>} : vector<32x256xf32>, vector<256x16xf32>, vector<32x16xf32> -> vector<32x16xf32>
    %c2 = arith.constant 2 : index
    %c0_48 = arith.constant 0 : index
    %c0_49 = arith.constant 0 : index
    %104 = vector.load %arg5[%c2, %c0_48, %c0_49] : memref<12x32x32xf32, #tpu.memory_space<vmem>>, vector<1x32x32xf32>
    %105 = vector.shape_cast %104 : vector<1x32x32xf32> to vector<32x32xf32>
    %cst_50 = arith.constant dense<0.000000e+00> : vector<32x16xf32>
    %106 = tpu.matmul %105, %103, %cst_50 {dimension_numbers = #tpu.dot_dimension_numbers<[1], [0], [0], [1], [0, 0, 1, 1], [], []>} : vector<32x32xf32>, vector<32x16xf32>, vector<32x16xf32> -> vector<32x16xf32>
    %c2_51 = arith.constant 2 : index
    %c0_52 = arith.constant 0 : index
    %c0_53 = arith.constant 0 : index
    %107 = vector.load %arg6[%c2_51, %c0_52, %c0_53] : memref<12x32x1xf32, #tpu.memory_space<vmem>>, vector<1x32x1xf32>
    %108 = vector.shape_cast %107 : vector<1x32x1xf32> to vector<32x1xf32>
    %109 = vector.broadcast %108 : vector<32x1xf32> to vector<32x16xf32>
    %110 = arith.addf %106, %109 : vector<32x16xf32>
    %cst_54 = arith.constant 0.000000e+00 : f32
    %111 = vector.broadcast %cst_54 : f32 to vector<32x16xf32>
    %112 = arith.maximumf %110, %111 : vector<32x16xf32>
    %113 = math.absf %110 : vector<32x16xf32>
    %cst_55 = arith.constant 0.000000e+00 : f32
    %114 = vector.broadcast %cst_55 : f32 to vector<32x16xf32>
    %115 = arith.subf %114, %113 : vector<32x16xf32>
    %116 = math.exp %115 : vector<32x16xf32>
    %cst_56 = arith.constant 1.000000e+00 : f32
    %117 = vector.broadcast %cst_56 : f32 to vector<32x16xf32>
    %118 = arith.addf %117, %116 : vector<32x16xf32>
    %119 = math.log %118 : vector<32x16xf32>
    %120 = arith.addf %112, %119 : vector<32x16xf32>
    %cst_57 = arith.constant 0.693147182 : f32
    %121 = vector.broadcast %cst_57 : f32 to vector<32x16xf32>
    %122 = arith.subf %120, %121 : vector<32x16xf32>
    %c3 = arith.constant 3 : index
    %c0_58 = arith.constant 0 : index
    %c0_59 = arith.constant 0 : index
    %123 = vector.load %arg5[%c3, %c0_58, %c0_59] : memref<12x32x32xf32, #tpu.memory_space<vmem>>, vector<1x32x32xf32>
    %124 = vector.shape_cast %123 : vector<1x32x32xf32> to vector<32x32xf32>
    %cst_60 = arith.constant dense<0.000000e+00> : vector<32x16xf32>
    %125 = tpu.matmul %124, %122, %cst_60 {dimension_numbers = #tpu.dot_dimension_numbers<[1], [0], [0], [1], [0, 0, 1, 1], [], []>} : vector<32x32xf32>, vector<32x16xf32>, vector<32x16xf32> -> vector<32x16xf32>
    %c3_61 = arith.constant 3 : index
    %c0_62 = arith.constant 0 : index
    %c0_63 = arith.constant 0 : index
    %126 = vector.load %arg6[%c3_61, %c0_62, %c0_63] : memref<12x32x1xf32, #tpu.memory_space<vmem>>, vector<1x32x1xf32>
    %127 = vector.shape_cast %126 : vector<1x32x1xf32> to vector<32x1xf32>
    %128 = vector.broadcast %127 : vector<32x1xf32> to vector<32x16xf32>
    %129 = arith.addf %125, %128 : vector<32x16xf32>
    %130 = arith.addf %69, %129 : vector<32x16xf32>
    %c1_64 = arith.constant 1 : index
    %c0_65 = arith.constant 0 : index
    %c0_66 = arith.constant 0 : index
    %131 = vector.load %arg4[%c1_64, %c0_65, %c0_66] : memref<3x32x16xf32, #tpu.memory_space<vmem>>, vector<1x32x16xf32>
    %132 = vector.shape_cast %131 : vector<1x32x16xf32> to vector<32x16xf32>
    %cst_67 = arith.constant dense<0.000000e+00> : vector<32x256xf32>
    %133 = tpu.matmul %132, %60, %cst_67 {dimension_numbers = #tpu.dot_dimension_numbers<[1], [0], [0], [1], [0, 0, 1, 1], [], []>} : vector<32x16xf32>, vector<16x256xf32>, vector<32x256xf32> -> vector<32x256xf32>
    %c4 = arith.constant 4 : index
    %c0_68 = arith.constant 0 : index
    %c0_69 = arith.constant 0 : index
    %134 = vector.load %arg6[%c4, %c0_68, %c0_69] : memref<12x32x1xf32, #tpu.memory_space<vmem>>, vector<1x32x1xf32>
    %135 = vector.shape_cast %134 : vector<1x32x1xf32> to vector<32x1xf32>
    %136 = vector.broadcast %135 : vector<32x1xf32> to vector<32x256xf32>
    %137 = arith.addf %133, %136 : vector<32x256xf32>
    %cst_70 = arith.constant 0.000000e+00 : f32
    %138 = vector.broadcast %cst_70 : f32 to vector<32x256xf32>
    %139 = arith.maximumf %137, %138 : vector<32x256xf32>
    %140 = math.absf %137 : vector<32x256xf32>
    %cst_71 = arith.constant 0.000000e+00 : f32
    %141 = vector.broadcast %cst_71 : f32 to vector<32x256xf32>
    %142 = arith.subf %141, %140 : vector<32x256xf32>
    %143 = math.exp %142 : vector<32x256xf32>
    %cst_72 = arith.constant 1.000000e+00 : f32
    %144 = vector.broadcast %cst_72 : f32 to vector<32x256xf32>
    %145 = arith.addf %144, %143 : vector<32x256xf32>
    %146 = math.log %145 : vector<32x256xf32>
    %147 = arith.addf %139, %146 : vector<32x256xf32>
    %cst_73 = arith.constant 0.693147182 : f32
    %148 = vector.broadcast %cst_73 : f32 to vector<32x256xf32>
    %149 = arith.subf %147, %148 : vector<32x256xf32>
    %c4_74 = arith.constant 4 : index
    %c0_75 = arith.constant 0 : index
    %c0_76 = arith.constant 0 : index
    %150 = vector.load %arg5[%c4_74, %c0_75, %c0_76] : memref<12x32x32xf32, #tpu.memory_space<vmem>>, vector<1x32x32xf32>
    %151 = vector.shape_cast %150 : vector<1x32x32xf32> to vector<32x32xf32>
    %cst_77 = arith.constant dense<0.000000e+00> : vector<32x256xf32>
    %152 = tpu.matmul %151, %149, %cst_77 {dimension_numbers = #tpu.dot_dimension_numbers<[1], [0], [0], [1], [0, 0, 1, 1], [], []>} : vector<32x32xf32>, vector<32x256xf32>, vector<32x256xf32> -> vector<32x256xf32>
    %c5 = arith.constant 5 : index
    %c0_78 = arith.constant 0 : index
    %c0_79 = arith.constant 0 : index
    %153 = vector.load %arg6[%c5, %c0_78, %c0_79] : memref<12x32x1xf32, #tpu.memory_space<vmem>>, vector<1x32x1xf32>
    %154 = vector.shape_cast %153 : vector<1x32x1xf32> to vector<32x1xf32>
    %155 = vector.broadcast %154 : vector<32x1xf32> to vector<32x256xf32>
    %156 = arith.addf %152, %155 : vector<32x256xf32>
    %157 = vector.broadcast %68 : vector<1x256xf32> to vector<32x256xf32>
    %158 = arith.mulf %156, %157 : vector<32x256xf32>
    %c5_80 = arith.constant 5 : index
    %c0_81 = arith.constant 0 : index
    %c0_82 = arith.constant 0 : index
    %159 = vector.load %arg5[%c5_80, %c0_81, %c0_82] : memref<12x32x32xf32, #tpu.memory_space<vmem>>, vector<1x32x32xf32>
    %160 = vector.shape_cast %159 : vector<1x32x32xf32> to vector<32x32xf32>
    %cst_83 = arith.constant dense<0.000000e+00> : vector<32x16xf32>
    %161 = tpu.matmul %160, %130, %cst_83 {dimension_numbers = #tpu.dot_dimension_numbers<[1], [0], [0], [1], [0, 0, 1, 1], [], []>} : vector<32x32xf32>, vector<32x16xf32>, vector<32x16xf32> -> vector<32x16xf32>
    %cst_84 = arith.constant dense<0.000000e+00> : vector<32x256xf32>
    %162 = tpu.matmul %161, %7, %cst_84 {dimension_numbers = #tpu.dot_dimension_numbers<[1], [0], [0], [1], [0, 0, 1, 1], [], []>} : vector<32x16xf32>, vector<16x256xf32>, vector<32x256xf32> -> vector<32x256xf32>
    %163 = arith.mulf %158, %162 : vector<32x256xf32>
    %cst_85 = arith.constant dense<0.000000e+00> : vector<32x16xf32>
    %164 = tpu.matmul %163, %21, %cst_85 {dimension_numbers = #tpu.dot_dimension_numbers<[1], [0], [0], [1], [0, 0, 1, 1], [], []>} : vector<32x256xf32>, vector<256x16xf32>, vector<32x16xf32> -> vector<32x16xf32>
    %c6 = arith.constant 6 : index
    %c0_86 = arith.constant 0 : index
    %c0_87 = arith.constant 0 : index
    %165 = vector.load %arg5[%c6, %c0_86, %c0_87] : memref<12x32x32xf32, #tpu.memory_space<vmem>>, vector<1x32x32xf32>
    %166 = vector.shape_cast %165 : vector<1x32x32xf32> to vector<32x32xf32>
    %cst_88 = arith.constant dense<0.000000e+00> : vector<32x16xf32>
    %167 = tpu.matmul %166, %164, %cst_88 {dimension_numbers = #tpu.dot_dimension_numbers<[1], [0], [0], [1], [0, 0, 1, 1], [], []>} : vector<32x32xf32>, vector<32x16xf32>, vector<32x16xf32> -> vector<32x16xf32>
    %c6_89 = arith.constant 6 : index
    %c0_90 = arith.constant 0 : index
    %c0_91 = arith.constant 0 : index
    %168 = vector.load %arg6[%c6_89, %c0_90, %c0_91] : memref<12x32x1xf32, #tpu.memory_space<vmem>>, vector<1x32x1xf32>
    %169 = vector.shape_cast %168 : vector<1x32x1xf32> to vector<32x1xf32>
    %170 = vector.broadcast %169 : vector<32x1xf32> to vector<32x16xf32>
    %171 = arith.addf %167, %170 : vector<32x16xf32>
    %cst_92 = arith.constant 0.000000e+00 : f32
    %172 = vector.broadcast %cst_92 : f32 to vector<32x16xf32>
    %173 = arith.maximumf %171, %172 : vector<32x16xf32>
    %174 = math.absf %171 : vector<32x16xf32>
    %cst_93 = arith.constant 0.000000e+00 : f32
    %175 = vector.broadcast %cst_93 : f32 to vector<32x16xf32>
    %176 = arith.subf %175, %174 : vector<32x16xf32>
    %177 = math.exp %176 : vector<32x16xf32>
    %cst_94 = arith.constant 1.000000e+00 : f32
    %178 = vector.broadcast %cst_94 : f32 to vector<32x16xf32>
    %179 = arith.addf %178, %177 : vector<32x16xf32>
    %180 = math.log %179 : vector<32x16xf32>
    %181 = arith.addf %173, %180 : vector<32x16xf32>
    %cst_95 = arith.constant 0.693147182 : f32
    %182 = vector.broadcast %cst_95 : f32 to vector<32x16xf32>
    %183 = arith.subf %181, %182 : vector<32x16xf32>
    %c7 = arith.constant 7 : index
    %c0_96 = arith.constant 0 : index
    %c0_97 = arith.constant 0 : index
    %184 = vector.load %arg5[%c7, %c0_96, %c0_97] : memref<12x32x32xf32, #tpu.memory_space<vmem>>, vector<1x32x32xf32>
    %185 = vector.shape_cast %184 : vector<1x32x32xf32> to vector<32x32xf32>
    %cst_98 = arith.constant dense<0.000000e+00> : vector<32x16xf32>
    %186 = tpu.matmul %185, %183, %cst_98 {dimension_numbers = #tpu.dot_dimension_numbers<[1], [0], [0], [1], [0, 0, 1, 1], [], []>} : vector<32x32xf32>, vector<32x16xf32>, vector<32x16xf32> -> vector<32x16xf32>
    %c7_99 = arith.constant 7 : index
    %c0_100 = arith.constant 0 : index
    %c0_101 = arith.constant 0 : index
    %187 = vector.load %arg6[%c7_99, %c0_100, %c0_101] : memref<12x32x1xf32, #tpu.memory_space<vmem>>, vector<1x32x1xf32>
    %188 = vector.shape_cast %187 : vector<1x32x1xf32> to vector<32x1xf32>
    %189 = vector.broadcast %188 : vector<32x1xf32> to vector<32x16xf32>
    %190 = arith.addf %186, %189 : vector<32x16xf32>
    %191 = arith.addf %130, %190 : vector<32x16xf32>
    %c2_102 = arith.constant 2 : index
    %c0_103 = arith.constant 0 : index
    %c0_104 = arith.constant 0 : index
    %192 = vector.load %arg4[%c2_102, %c0_103, %c0_104] : memref<3x32x16xf32, #tpu.memory_space<vmem>>, vector<1x32x16xf32>
    %193 = vector.shape_cast %192 : vector<1x32x16xf32> to vector<32x16xf32>
    %cst_105 = arith.constant dense<0.000000e+00> : vector<32x256xf32>
    %194 = tpu.matmul %193, %60, %cst_105 {dimension_numbers = #tpu.dot_dimension_numbers<[1], [0], [0], [1], [0, 0, 1, 1], [], []>} : vector<32x16xf32>, vector<16x256xf32>, vector<32x256xf32> -> vector<32x256xf32>
    %c8 = arith.constant 8 : index
    %c0_106 = arith.constant 0 : index
    %c0_107 = arith.constant 0 : index
    %195 = vector.load %arg6[%c8, %c0_106, %c0_107] : memref<12x32x1xf32, #tpu.memory_space<vmem>>, vector<1x32x1xf32>
    %196 = vector.shape_cast %195 : vector<1x32x1xf32> to vector<32x1xf32>
    %197 = vector.broadcast %196 : vector<32x1xf32> to vector<32x256xf32>
    %198 = arith.addf %194, %197 : vector<32x256xf32>
    %cst_108 = arith.constant 0.000000e+00 : f32
    %199 = vector.broadcast %cst_108 : f32 to vector<32x256xf32>
    %200 = arith.maximumf %198, %199 : vector<32x256xf32>
    %201 = math.absf %198 : vector<32x256xf32>
    %cst_109 = arith.constant 0.000000e+00 : f32
    %202 = vector.broadcast %cst_109 : f32 to vector<32x256xf32>
    %203 = arith.subf %202, %201 : vector<32x256xf32>
    %204 = math.exp %203 : vector<32x256xf32>
    %cst_110 = arith.constant 1.000000e+00 : f32
    %205 = vector.broadcast %cst_110 : f32 to vector<32x256xf32>
    %206 = arith.addf %205, %204 : vector<32x256xf32>
    %207 = math.log %206 : vector<32x256xf32>
    %208 = arith.addf %200, %207 : vector<32x256xf32>
    %cst_111 = arith.constant 0.693147182 : f32
    %209 = vector.broadcast %cst_111 : f32 to vector<32x256xf32>
    %210 = arith.subf %208, %209 : vector<32x256xf32>
    %c8_112 = arith.constant 8 : index
    %c0_113 = arith.constant 0 : index
    %c0_114 = arith.constant 0 : index
    %211 = vector.load %arg5[%c8_112, %c0_113, %c0_114] : memref<12x32x32xf32, #tpu.memory_space<vmem>>, vector<1x32x32xf32>
    %212 = vector.shape_cast %211 : vector<1x32x32xf32> to vector<32x32xf32>
    %cst_115 = arith.constant dense<0.000000e+00> : vector<32x256xf32>
    %213 = tpu.matmul %212, %210, %cst_115 {dimension_numbers = #tpu.dot_dimension_numbers<[1], [0], [0], [1], [0, 0, 1, 1], [], []>} : vector<32x32xf32>, vector<32x256xf32>, vector<32x256xf32> -> vector<32x256xf32>
    %c9 = arith.constant 9 : index
    %c0_116 = arith.constant 0 : index
    %c0_117 = arith.constant 0 : index
    %214 = vector.load %arg6[%c9, %c0_116, %c0_117] : memref<12x32x1xf32, #tpu.memory_space<vmem>>, vector<1x32x1xf32>
    %215 = vector.shape_cast %214 : vector<1x32x1xf32> to vector<32x1xf32>
    %216 = vector.broadcast %215 : vector<32x1xf32> to vector<32x256xf32>
    %217 = arith.addf %213, %216 : vector<32x256xf32>
    %218 = vector.broadcast %68 : vector<1x256xf32> to vector<32x256xf32>
    %219 = arith.mulf %217, %218 : vector<32x256xf32>
    %c9_118 = arith.constant 9 : index
    %c0_119 = arith.constant 0 : index
    %c0_120 = arith.constant 0 : index
    %220 = vector.load %arg5[%c9_118, %c0_119, %c0_120] : memref<12x32x32xf32, #tpu.memory_space<vmem>>, vector<1x32x32xf32>
    %221 = vector.shape_cast %220 : vector<1x32x32xf32> to vector<32x32xf32>
    %cst_121 = arith.constant dense<0.000000e+00> : vector<32x16xf32>
    %222 = tpu.matmul %221, %191, %cst_121 {dimension_numbers = #tpu.dot_dimension_numbers<[1], [0], [0], [1], [0, 0, 1, 1], [], []>} : vector<32x32xf32>, vector<32x16xf32>, vector<32x16xf32> -> vector<32x16xf32>
    %cst_122 = arith.constant dense<0.000000e+00> : vector<32x256xf32>
    %223 = tpu.matmul %222, %7, %cst_122 {dimension_numbers = #tpu.dot_dimension_numbers<[1], [0], [0], [1], [0, 0, 1, 1], [], []>} : vector<32x16xf32>, vector<16x256xf32>, vector<32x256xf32> -> vector<32x256xf32>
    %224 = arith.mulf %219, %223 : vector<32x256xf32>
    %cst_123 = arith.constant dense<0.000000e+00> : vector<32x16xf32>
    %225 = tpu.matmul %224, %21, %cst_123 {dimension_numbers = #tpu.dot_dimension_numbers<[1], [0], [0], [1], [0, 0, 1, 1], [], []>} : vector<32x256xf32>, vector<256x16xf32>, vector<32x16xf32> -> vector<32x16xf32>
    %c10 = arith.constant 10 : index
    %c0_124 = arith.constant 0 : index
    %c0_125 = arith.constant 0 : index
    %226 = vector.load %arg5[%c10, %c0_124, %c0_125] : memref<12x32x32xf32, #tpu.memory_space<vmem>>, vector<1x32x32xf32>
    %227 = vector.shape_cast %226 : vector<1x32x32xf32> to vector<32x32xf32>
    %cst_126 = arith.constant dense<0.000000e+00> : vector<32x16xf32>
    %228 = tpu.matmul %227, %225, %cst_126 {dimension_numbers = #tpu.dot_dimension_numbers<[1], [0], [0], [1], [0, 0, 1, 1], [], []>} : vector<32x32xf32>, vector<32x16xf32>, vector<32x16xf32> -> vector<32x16xf32>
    %c10_127 = arith.constant 10 : index
    %c0_128 = arith.constant 0 : index
    %c0_129 = arith.constant 0 : index
    %229 = vector.load %arg6[%c10_127, %c0_128, %c0_129] : memref<12x32x1xf32, #tpu.memory_space<vmem>>, vector<1x32x1xf32>
    %230 = vector.shape_cast %229 : vector<1x32x1xf32> to vector<32x1xf32>
    %231 = vector.broadcast %230 : vector<32x1xf32> to vector<32x16xf32>
    %232 = arith.addf %228, %231 : vector<32x16xf32>
    %cst_130 = arith.constant 0.000000e+00 : f32
    %233 = vector.broadcast %cst_130 : f32 to vector<32x16xf32>
    %234 = arith.maximumf %232, %233 : vector<32x16xf32>
    %235 = math.absf %232 : vector<32x16xf32>
    %cst_131 = arith.constant 0.000000e+00 : f32
    %236 = vector.broadcast %cst_131 : f32 to vector<32x16xf32>
    %237 = arith.subf %236, %235 : vector<32x16xf32>
    %238 = math.exp %237 : vector<32x16xf32>
    %cst_132 = arith.constant 1.000000e+00 : f32
    %239 = vector.broadcast %cst_132 : f32 to vector<32x16xf32>
    %240 = arith.addf %239, %238 : vector<32x16xf32>
    %241 = math.log %240 : vector<32x16xf32>
    %242 = arith.addf %234, %241 : vector<32x16xf32>
    %cst_133 = arith.constant 0.693147182 : f32
    %243 = vector.broadcast %cst_133 : f32 to vector<32x16xf32>
    %244 = arith.subf %242, %243 : vector<32x16xf32>
    %c11 = arith.constant 11 : index
    %c0_134 = arith.constant 0 : index
    %c0_135 = arith.constant 0 : index
    %245 = vector.load %arg5[%c11, %c0_134, %c0_135] : memref<12x32x32xf32, #tpu.memory_space<vmem>>, vector<1x32x32xf32>
    %246 = vector.shape_cast %245 : vector<1x32x32xf32> to vector<32x32xf32>
    %cst_136 = arith.constant dense<0.000000e+00> : vector<32x16xf32>
    %247 = tpu.matmul %246, %244, %cst_136 {dimension_numbers = #tpu.dot_dimension_numbers<[1], [0], [0], [1], [0, 0, 1, 1], [], []>} : vector<32x32xf32>, vector<32x16xf32>, vector<32x16xf32> -> vector<32x16xf32>
    %c11_137 = arith.constant 11 : index
    %c0_138 = arith.constant 0 : index
    %c0_139 = arith.constant 0 : index
    %248 = vector.load %arg6[%c11_137, %c0_138, %c0_139] : memref<12x32x1xf32, #tpu.memory_space<vmem>>, vector<1x32x1xf32>
    %249 = vector.shape_cast %248 : vector<1x32x1xf32> to vector<32x1xf32>
    %250 = vector.broadcast %249 : vector<32x1xf32> to vector<32x16xf32>
    %251 = arith.addf %247, %250 : vector<32x16xf32>
    %252 = arith.addf %191, %251 : vector<32x16xf32>
    %c0_140 = arith.constant 0 : index
    %c0_141 = arith.constant 0 : index
    %253 = vector.load %arg7[%c0_140, %c0_141] : memref<16x32xf32, #tpu.memory_space<vmem>>, vector<16x32xf32>
    %cst_142 = arith.constant dense<0.000000e+00> : vector<16x16xf32>
    %254 = tpu.matmul %253, %252, %cst_142 {dimension_numbers = #tpu.dot_dimension_numbers<[1], [0], [0], [1], [0, 0, 1, 1], [], []>} : vector<16x32xf32>, vector<32x16xf32>, vector<16x16xf32> -> vector<16x16xf32>
    %c0_143 = arith.constant 0 : index
    %c0_144 = arith.constant 0 : index
    %255 = vector.load %arg8[%c0_143, %c0_144] : memref<16x1xf32, #tpu.memory_space<vmem>>, vector<16x1xf32>
    %256 = vector.broadcast %255 : vector<16x1xf32> to vector<16x16xf32>
    %257 = arith.addf %254, %256 : vector<16x16xf32>
    %cst_145 = arith.constant 0.000000e+00 : f32
    %258 = vector.broadcast %cst_145 : f32 to vector<16x16xf32>
    %259 = arith.maximumf %257, %258 : vector<16x16xf32>
    %260 = math.absf %257 : vector<16x16xf32>
    %cst_146 = arith.constant 0.000000e+00 : f32
    %261 = vector.broadcast %cst_146 : f32 to vector<16x16xf32>
    %262 = arith.subf %261, %260 : vector<16x16xf32>
    %263 = math.exp %262 : vector<16x16xf32>
    %cst_147 = arith.constant 1.000000e+00 : f32
    %264 = vector.broadcast %cst_147 : f32 to vector<16x16xf32>
    %265 = arith.addf %264, %263 : vector<16x16xf32>
    %266 = math.log %265 : vector<16x16xf32>
    %267 = arith.addf %259, %266 : vector<16x16xf32>
    %cst_148 = arith.constant 0.693147182 : f32
    %268 = vector.broadcast %cst_148 : f32 to vector<16x16xf32>
    %269 = arith.subf %267, %268 : vector<16x16xf32>
    %c0_149 = arith.constant 0 : index
    %c0_150 = arith.constant 0 : index
    %270 = vector.load %arg9[%c0_149, %c0_150] : memref<1x16xf32, #tpu.memory_space<vmem>>, vector<1x16xf32>
    %cst_151 = arith.constant dense<0.000000e+00> : vector<1x16xf32>
    %271 = tpu.matmul %270, %269, %cst_151 {dimension_numbers = #tpu.dot_dimension_numbers<[1], [0], [0], [1], [0, 0, 1, 1], [], []>} : vector<1x16xf32>, vector<16x16xf32>, vector<1x16xf32> -> vector<1x16xf32>
    %c0_152 = arith.constant 0 : index
    %c0_153 = arith.constant 0 : index
    %272 = vector.load %arg10[%c0_152, %c0_153] : memref<1x1xf32, #tpu.memory_space<vmem>>, vector<1x1xf32>
    %273 = vector.broadcast %272 : vector<1x1xf32> to vector<1x16xf32>
    %274 = arith.addf %271, %273 : vector<1x16xf32>
    %c0_154 = arith.constant 0 : index
    %c0_155 = arith.constant 0 : index
    %275 = vector.load %arg2[%c0_154, %c0_155] : memref<16x128xf32, #tpu.memory_space<vmem>>, vector<16x128xf32>
    %cst_156 = arith.constant dense<0.000000e+00> : vector<1x128xf32>
    %276 = tpu.matmul %274, %275, %cst_156 {dimension_numbers = #tpu.dot_dimension_numbers<[1], [0], [0], [1], [0, 0, 1, 1], [], []>} : vector<1x16xf32>, vector<16x128xf32>, vector<1x128xf32> -> vector<1x128xf32>
    %c0_157 = arith.constant 0 : index
    %c0_158 = arith.constant 0 : index
    %277 = vector.load %arg11[%c0_157, %c0_158] : memref<1x128xf32, #tpu.memory_space<vmem>>, vector<1x128xf32>
    tpu.vector_store %arg11[%c0_157, %c0_158], %276 {strides = array<i32>} : memref<1x128xf32, #tpu.memory_space<vmem>>, vector<1x128xf32>,
    return
  }
}

</mosaic_0001>

<llo_original>
// kernel: _schnet_forward.1
$region0: #{_schnet_forward.1}
  #allocation0 [shape = 'u32[]', space=smem, size = 0x4, offset = 0x4, fixed_abs, tag = 'smem constant byte address 0x4 - core index']
  #allocation1 [shape = 'u32[144,128]{1,0:T(1,128)}', space=vmem, size = 0x12000, scoped, tag = 'internal scratch']
  #allocation2 [shape = 'f32[1,1]{1,0:T(1,128)S(1)}', space=vmem, size = 0x200, scoped, tag = 'scoped memory for _schnet_forward.1']
  %s0 = inlined_call_operand.vmem [shape: f32[3,16], index: 0, kind: input, shape index: {}]
  %s1 = inlined_call_operand.vmem [shape: f32[1,16], index: 1, kind: input, shape index: {}]
  %s2 = inlined_call_operand.vmem [shape: f32[16,128], index: 2, kind: input, shape index: {}]
  %s3 = inlined_call_operand.vmem [shape: f32[32,16], index: 3, kind: input, shape index: {}]
  %s4 = inlined_call_operand.vmem [shape: f32[3,32,16], index: 4, kind: input, shape index: {}]
  %s5 = inlined_call_operand.vmem [shape: f32[12,32,32], index: 5, kind: input, shape index: {}]
  %s6 = inlined_call_operand.vmem [shape: f32[12,32,1], index: 6, kind: input, shape index: {}]
  %s7 = inlined_call_operand.vmem [shape: f32[16,32], index: 7, kind: input, shape index: {}]
  %s8 = inlined_call_operand.vmem [shape: f32[16,1], index: 8, kind: input, shape index: {}]
  %s9 = inlined_call_operand.vmem [shape: f32[1,16], index: 9, kind: input, shape index: {}]
  %s10 = inlined_call_operand.<no memory space> [shape: f32[1,1], index: 10, kind: input, shape index: {}]
  %s11 = inlined_call_operand.vmem [shape: f32[1,128], index: 11, kind: output, shape index: {}]
  %s12 = sld [smem:[#allocation0]]
  $region54: #{_schnet_forward.1} parent=0
    _
  %s14 = ssub.s32 1, %s12
  %s15 = scalar_select 0, %s14, %s12
  %v16 = vstv %s10
  %17 = vst [vmem:[#allocation2] sm:$0x1] %v16
  // Predicated region
  $region2: #{_schnet_forward.1} parent=0 // pred_check
    _
  $region3: #{_schnet_forward.1} parent=0 // pred_check_branch
    %19 = sbr.rel (0) target = $region5
  $region4: #{_schnet_forward.1} parent=0 // pred_region
    _
  $region5: #{_schnet_forward.1} parent=0 // pred_fallthru
    _
  // Predicated region
  $region6: #{_schnet_forward.1} parent=0 // pred_check
    _
  $region7: #{_schnet_forward.1} parent=0 // pred_check_branch
    %21 = sbr.rel (0) target = $region9
  $region8: #{_schnet_forward.1} parent=0 // pred_region
    _
  $region9: #{_schnet_forward.1} parent=0 // pred_fallthru
    _
  // Predicated region
  $region10: #{_schnet_forward.1} parent=0 // pred_check
    _
  $region11: #{_schnet_forward.1} parent=0 // pred_check_branch
    %23 = sbr.rel (0) target = $region13
  $region12: #{_schnet_forward.1} parent=0 // pred_region
    _
  $region13: #{_schnet_forward.1} parent=0 // pred_fallthru
    _
  // Predicated region
  $region14: #{_schnet_forward.1} parent=0 // pred_check
    _
  $region15: #{_schnet_forward.1} parent=0 // pred_check_branch
    %25 = sbr.rel (0) target = $region17
  $region16: #{_schnet_forward.1} parent=0 // pred_region
    _
  $region17: #{_schnet_forward.1} parent=0 // pred_fallthru
    _
  // Predicated region
  $region18: #{_schnet_forward.1} parent=0 // pred_check
    _
  $region19: #{_schnet_forward.1} parent=0 // pred_check_branch
    %27 = sbr.rel (0) target = $region21
  $region20: #{_schnet_forward.1} parent=0 // pred_region
    _
  $region21: #{_schnet_forward.1} parent=0 // pred_fallthru
    _
  // Predicated region
  $region22: #{_schnet_forward.1} parent=0 // pred_check
    _
  $region23: #{_schnet_forward.1} parent=0 // pred_check_branch
    %29 = sbr.rel (0) target = $region25
  $region24: #{_schnet_forward.1} parent=0 // pred_region
    _
  $region25: #{_schnet_forward.1} parent=0 // pred_fallthru
    _
  // Predicated region
  $region26: #{_schnet_forward.1} parent=0 // pred_check
    _
  $region27: #{_schnet_forward.1} parent=0 // pred_check_branch
    %31 = sbr.rel (0) target = $region29
  $region28: #{_schnet_forward.1} parent=0 // pred_region
    _
  $region29: #{_schnet_forward.1} parent=0 // pred_fallthru
    _
  // Predicated region
  $region30: #{_schnet_forward.1} parent=0 // pred_check
    _
  $region31: #{_schnet_forward.1} parent=0 // pred_check_branch
    %33 = sbr.rel (0) target = $region33
  $region32: #{_schnet_forward.1} parent=0 // pred_region
    _
  $region33: #{_schnet_forward.1} parent=0 // pred_fallthru
    _
  // Predicated region
  $region34: #{_schnet_forward.1} parent=0 // pred_check
    _
  $region35: #{_schnet_forward.1} parent=0 // pred_check_branch
    %35 = sbr.rel (0) target = $region37
  $region36: #{_schnet_forward.1} parent=0 // pred_region
    _
  $region37: #{_schnet_forward.1} parent=0 // pred_fallthru
    _
  // Predicated region
  $region38: #{_schnet_forward.1} parent=0 // pred_check
    _
  $region39: #{_schnet_forward.1} parent=0 // pred_check_branch
    %37 = sbr.rel (0) target = $region41
  $region40: #{_schnet_forward.1} parent=0 // pred_region
    _
  $region41: #{_schnet_forward.1} parent=0 // pred_fallthru
    _
  // Predicated region
  $region42: #{_schnet_forward.1} parent=0 // pred_check
    _
  $region43: #{_schnet_forward.1} parent=0 // pred_check_branch
    %39 = sbr.rel (0) target = $region45
  $region44: #{_schnet_forward.1} parent=0 // pred_region
    _
  $region45: #{_schnet_forward.1} parent=0 // pred_fallthru
    _
  %v40 = vlaneseq
  %v41 = vshrl.u32 %v40, 7
  %v42 = vadd.s32 %v41, 8
  %v43 = vlaneseq
  %v44 = vand.u32 %v43, 127
  %v45 = vadd.s32 %v44, 128
  %v46 = vshra.s32 %v44, 4
  %v47 = vshra.s32 %v45, 4
  %vm48 = vcmp.eq.s32.totalorder %v46, %v41
  %vm49 = vcmp.eq.s32.totalorder %v47, %v41
  %vm50 = vcmp.eq.s32.totalorder %v46, %v42
  %vm51 = vcmp.eq.s32.totalorder %v47, %v42
  %v52 = vsel %vm48, 1.0, 0.0
  %v53 = vsel %vm49, 1.0, 0.0
  %v54 = vsel %vm50, 1.0, 0.0
  %v55 = vsel %vm51, 1.0, 0.0
  %v56 = vand.u32 %v44, 15
  %v57 = vand.u32 %v45, 15
  %vm58 = vcmp.eq.s32.totalorder %v56, %v41
  %vm59 = vcmp.eq.s32.totalorder %v57, %v41
  %vm60 = vcmp.eq.s32.totalorder %v56, %v42
  %vm61 = vcmp.eq.s32.totalorder %v57, %v42
  %v62 = vsel %vm58, 1.0, 0.0
  %v63 = vsel %vm59, 1.0, 0.0
  %v64 = vsel %vm60, 1.0, 0.0
  %v65 = vsel %vm61, 1.0, 0.0
  %v66 = vadd.s32 %v41, 16
  %v67 = vadd.s32 %v41, 24
  %v68 = vadd.s32 %v41, 32
  %v69 = vadd.s32 %v41, 40
  %v70 = vadd.s32 %v41, 48
  %v71 = vadd.s32 %v41, 56
  %v72 = vadd.s32 %v41, 64
  %v73 = vadd.s32 %v41, 72
  %v74 = vadd.s32 %v41, 80
  %v75 = vadd.s32 %v41, 88
  %v76 = vadd.s32 %v41, 96
  %v77 = vadd.s32 %v41, 104
  %v78 = vadd.s32 %v41, 112
  %v79 = vadd.s32 %v41, 120
  %v80 = vadd.s32 %v41, 128
  %v81 = vadd.s32 %v41, 136
  %v82 = vadd.s32 %v41, 144
  %v83 = vadd.s32 %v41, 152
  %v84 = vadd.s32 %v41, 160
  %v85 = vadd.s32 %v41, 168
  %v86 = vadd.s32 %v41, 176
  %v87 = vadd.s32 %v41, 184
  %v88 = vadd.s32 %v41, 192
  %v89 = vadd.s32 %v41, 200
  %v90 = vadd.s32 %v41, 208
  %v91 = vadd.s32 %v41, 216
  %v92 = vadd.s32 %v41, 224
  %v93 = vadd.s32 %v41, 232
  %v94 = vadd.s32 %v41, 240
  %v95 = vadd.s32 %v41, 248
  %v96 = vand.u32 %v41, 15
  %v97 = vand.u32 %v42, 15
  %v98 = vand.u32 %v66, 15
  %v99 = vand.u32 %v67, 15
  %v100 = vand.u32 %v68, 15
  %v101 = vand.u32 %v69, 15
  %v102 = vand.u32 %v70, 15
  %v103 = vand.u32 %v71, 15
  %v104 = vand.u32 %v72, 15
  %v105 = vand.u32 %v73, 15
  %v106 = vand.u32 %v74, 15
  %v107 = vand.u32 %v75, 15
  %v108 = vand.u32 %v76, 15
  %v109 = vand.u32 %v77, 15
  %v110 = vand.u32 %v78, 15
  %v111 = vand.u32 %v79, 15
  %v112 = vand.u32 %v80, 15
  %v113 = vand.u32 %v81, 15
  %v114 = vand.u32 %v82, 15
  %v115 = vand.u32 %v83, 15
  %v116 = vand.u32 %v84, 15
  %v117 = vand.u32 %v85, 15
  %v118 = vand.u32 %v86, 15
  %v119 = vand.u32 %v87, 15
  %v120 = vand.u32 %v88, 15
  %v121 = vand.u32 %v89, 15
  %v122 = vand.u32 %v90, 15
  %v123 = vand.u32 %v91, 15
  %v124 = vand.u32 %v92, 15
  %v125 = vand.u32 %v93, 15
  %v126 = vand.u32 %v94, 15
  %v127 = vand.u32 %v95, 15
  %vm128 = vcmp.eq.s32.totalorder %v96, %v44
  %vm129 = vcmp.eq.s32.totalorder %v97, %v44
  %vm130 = vcmp.eq.s32.totalorder %v98, %v44
  %vm131 = vcmp.eq.s32.totalorder %v99, %v44
  %vm132 = vcmp.eq.s32.totalorder %v100, %v44
  %vm133 = vcmp.eq.s32.totalorder %v101, %v44
  %vm134 = vcmp.eq.s32.totalorder %v102, %v44
  %vm135 = vcmp.eq.s32.totalorder %v103, %v44
  %vm136 = vcmp.eq.s32.totalorder %v104, %v44
  %vm137 = vcmp.eq.s32.totalorder %v105, %v44
  %vm138 = vcmp.eq.s32.totalorder %v106, %v44
  %vm139 = vcmp.eq.s32.totalorder %v107, %v44
  %vm140 = vcmp.eq.s32.totalorder %v108, %v44
  %vm141 = vcmp.eq.s32.totalorder %v109, %v44
  %vm142 = vcmp.eq.s32.totalorder %v110, %v44
  %vm143 = vcmp.eq.s32.totalorder %v111, %v44
  %vm144 = vcmp.eq.s32.totalorder %v112, %v44
  %vm145 = vcmp.eq.s32.totalorder %v113, %v44
  %vm146 = vcmp.eq.s32.totalorder %v114, %v44
  %vm147 = vcmp.eq.s32.totalorder %v115, %v44
  %vm148 = vcmp.eq.s32.totalorder %v116, %v44
  %vm149 = vcmp.eq.s32.totalorder %v117, %v44
  %vm150 = vcmp.eq.s32.totalorder %v118, %v44
  %vm151 = vcmp.eq.s32.totalorder %v119, %v44
  %vm152 = vcmp.eq.s32.totalorder %v120, %v44
  %vm153 = vcmp.eq.s32.totalorder %v121, %v44
  %vm154 = vcmp.eq.s32.totalorder %v122, %v44
  %vm155 = vcmp.eq.s32.totalorder %v123, %v44
  %vm156 = vcmp.eq.s32.totalorder %v124, %v44
  %vm157 = vcmp.eq.s32.totalorder %v125, %v44
  %vm158 = vcmp.eq.s32.totalorder %v126, %v44
  %vm159 = vcmp.eq.s32.totalorder %v127, %v44
  %v160 = vsel %vm128, 1.0, 0.0
  %v161 = vsel %vm129, 1.0, 0.0
  %v162 = vsel %vm130, 1.0, 0.0
  %v163 = vsel %vm131, 1.0, 0.0
  %v164 = vsel %vm132, 1.0, 0.0
  %v165 = vsel %vm133, 1.0, 0.0
  %v166 = vsel %vm134, 1.0, 0.0
  %v167 = vsel %vm135, 1.0, 0.0
  %v168 = vsel %vm136, 1.0, 0.0
  %v169 = vsel %vm137, 1.0, 0.0
  %v170 = vsel %vm138, 1.0, 0.0
  %v171 = vsel %vm139, 1.0, 0.0
  %v172 = vsel %vm140, 1.0, 0.0
  %v173 = vsel %vm141, 1.0, 0.0
  %v174 = vsel %vm142, 1.0, 0.0
  %v175 = vsel %vm143, 1.0, 0.0
  %v176 = vsel %vm144, 1.0, 0.0
  %v177 = vsel %vm145, 1.0, 0.0
  %v178 = vsel %vm146, 1.0, 0.0
  %v179 = vsel %vm147, 1.0, 0.0
  %v180 = vsel %vm148, 1.0, 0.0
  %v181 = vsel %vm149, 1.0, 0.0
  %v182 = vsel %vm150, 1.0, 0.0
  %v183 = vsel %vm151, 1.0, 0.0
  %v184 = vsel %vm152, 1.0, 0.0
  %v185 = vsel %vm153, 1.0, 0.0
  %v186 = vsel %vm154, 1.0, 0.0
  %v187 = vsel %vm155, 1.0, 0.0
  %v188 = vsel %vm156, 1.0, 0.0
  %v189 = vsel %vm157, 1.0, 0.0
  %v190 = vsel %vm158, 1.0, 0.0
  %v191 = vsel %vm159, 1.0, 0.0
  %v192 = vld [vmem:[%s0] sm:$0x7]
  %vm193 = vcmask 130048
  %v195 = vsel %vm193, %v192, 0
  %197 = vmatprep.subr.mxu0 %v53
  %198 = vmatpush1.msra.mxu0 %v52
  %199 = vmatprep.subr.mxu0 %v55
  %200 = vmatpush1.msra.mxu0 %v54
  %201 = vmatprep.subr.mxu0 0.0
  %202 = vmatpush1.msra.mxu0 0.0
  %203 = vmatprep.subr.mxu0 0.0
  %204 = vmatpush1.msra.mxu0 0.0
  %205 = vmatprep.subr.mxu0 0.0
  %206 = vmatpush1.msra.mxu0 0.0
  %207 = vmatprep.subr.mxu0 0.0
  %208 = vmatpush1.msra.mxu0 0.0
  %209 = vmatprep.subr.mxu0 0.0
  %210 = vmatpush1.msra.mxu0 0.0
  %211 = vmatprep.subr.mxu0 0.0
  %212 = vmatpush1.msra.mxu0 0.0
  %213 = vmatprep.subr.mxu0 0.0
  %214 = vmatpush1.msra.mxu0 0.0
  %215 = vmatprep.subr.mxu0 0.0
  %216 = vmatpush1.msra.mxu0 0.0
  %217 = vmatprep.subr.mxu0 0.0
  %218 = vmatpush1.msra.mxu0 0.0
  %219 = vmatprep.subr.mxu0 0.0
  %220 = vmatpush1.msra.mxu0 0.0
  %221 = vmatprep.subr.mxu0 0.0
  %222 = vmatpush1.msra.mxu0 0.0
  %223 = vmatprep.subr.mxu0 0.0
  %224 = vmatpush1.msra.mxu0 0.0
  %225 = vmatprep.subr.mxu0 0.0
  %226 = vmatpush1.msra.mxu0 0.0
  %227 = vmatprep.subr.mxu0 0.0
  %228 = vmatpush1.msra.mxu0 0.0
  %229 = vmatprep.subr.mxu0 0.0
  %230 = vmatpush1.msra.mxu0 0.0
  %231 = vmatprep.subr.mxu0 0.0
  %232 = vmatpush1.msra.mxu0 0.0
  %233 = vmatprep.subr.mxu0 0.0
  %234 = vmatpush1.msra.mxu0 0.0
  %235 = vmatprep.subr.mxu0 0.0
  %236 = vmatpush1.msra.mxu0 0.0
  %237 = vmatprep.subr.mxu0 0.0
  %238 = vmatpush1.msra.mxu0 0.0
  %239 = vmatprep.subr.mxu0 0.0
  %240 = vmatpush1.msra.mxu0 0.0
  %241 = vmatprep.subr.mxu0 0.0
  %242 = vmatpush1.msra.mxu0 0.0
  %243 = vmatprep.subr.mxu0 0.0
  %244 = vmatpush1.msra.mxu0 0.0
  %245 = vmatprep.subr.mxu0 0.0
  %246 = vmatpush1.msra.mxu0 0.0
  %247 = vmatprep.subr.mxu0 0.0
  %248 = vmatpush1.msra.mxu0 0.0
  %249 = vmatprep.subr.mxu0 0.0
  %250 = vmatpush1.msra.mxu0 0.0
  %251 = vmatprep.subr.mxu0 0.0
  %252 = vmatpush1.msra.mxu0 0.0
  %253 = vmatprep.subr.mxu0 0.0
  %254 = vmatpush1.msra.mxu0 0.0
  %255 = vmatprep.subr.mxu0 0.0
  %256 = vmatpush1.msra.mxu0 0.0
  %257 = vmatprep.subr.mxu0 0.0
  %258 = vmatpush1.msra.mxu0 0.0
  %259 = vmatprep.subr.mxu0 0.0
  %260 = vmatpush1.msra.mxu0 0.0
  %261 = vmatprep.mubr.f32.mxu0 0.0
  %262 = vmatmul.mubr.f32.gmra.mrb[0].mxu0 %v195
  %v263 = vpop.f32.mrb[0].mxu0
  %v264 = vadd.f32 0.0, %v263
  %v265 = vpop.f32.mrb[0].mxu0
  %v266 = vadd.f32 0.0, %v265
  %267 = vdwg.mxu0
  %268 = vmatprep.subr.mxu0 %v63
  %269 = vmatpush1.msra.mxu0 %v62
  %270 = vmatprep.subr.mxu0 %v65
  %271 = vmatpush1.msra.mxu0 %v64
  %272 = vmatprep.subr.mxu0 0.0
  %273 = vmatpush1.msra.mxu0 0.0
  %274 = vmatprep.subr.mxu0 0.0
  %275 = vmatpush1.msra.mxu0 0.0
  %276 = vmatprep.subr.mxu0 0.0
  %277 = vmatpush1.msra.mxu0 0.0
  %278 = vmatprep.subr.mxu0 0.0
  %279 = vmatpush1.msra.mxu0 0.0
  %280 = vmatprep.subr.mxu0 0.0
  %281 = vmatpush1.msra.mxu0 0.0
  %282 = vmatprep.subr.mxu0 0.0
  %283 = vmatpush1.msra.mxu0 0.0
  %284 = vmatprep.subr.mxu0 0.0
  %285 = vmatpush1.msra.mxu0 0.0
  %286 = vmatprep.subr.mxu0 0.0
  %287 = vmatpush1.msra.mxu0 0.0
  %288 = vmatprep.subr.mxu0 0.0
  %289 = vmatpush1.msra.mxu0 0.0
  %290 = vmatprep.subr.mxu0 0.0
  %291 = vmatpush1.msra.mxu0 0.0
  %292 = vmatprep.subr.mxu0 0.0
  %293 = vmatpush1.msra.mxu0 0.0
  %294 = vmatprep.subr.mxu0 0.0
  %295 = vmatpush1.msra.mxu0 0.0
  %296 = vmatprep.subr.mxu0 0.0
  %297 = vmatpush1.msra.mxu0 0.0
  %298 = vmatprep.subr.mxu0 0.0
  %299 = vmatpush1.msra.mxu0 0.0
  %300 = vmatprep.subr.mxu0 0.0
  %301 = vmatpush1.msra.mxu0 0.0
  %302 = vmatprep.subr.mxu0 0.0
  %303 = vmatpush1.msra.mxu0 0.0
  %304 = vmatprep.subr.mxu0 0.0
  %305 = vmatpush1.msra.mxu0 0.0
  %306 = vmatprep.subr.mxu0 0.0
  %307 = vmatpush1.msra.mxu0 0.0
  %308 = vmatprep.subr.mxu0 0.0
  %309 = vmatpush1.msra.mxu0 0.0
  %310 = vmatprep.subr.mxu0 0.0
  %311 = vmatpush1.msra.mxu0 0.0
  %312 = vmatprep.subr.mxu0 0.0
  %313 = vmatpush1.msra.mxu0 0.0
  %314 = vmatprep.subr.mxu0 0.0
  %315 = vmatpush1.msra.mxu0 0.0
  %316 = vmatprep.subr.mxu0 0.0
  %317 = vmatpush1.msra.mxu0 0.0
  %318 = vmatprep.subr.mxu0 0.0
  %319 = vmatpush1.msra.mxu0 0.0
  %320 = vmatprep.subr.mxu0 0.0
  %321 = vmatpush1.msra.mxu0 0.0
  %322 = vmatprep.subr.mxu0 0.0
  %323 = vmatpush1.msra.mxu0 0.0
  %324 = vmatprep.subr.mxu0 0.0
  %325 = vmatpush1.msra.mxu0 0.0
  %326 = vmatprep.subr.mxu0 0.0
  %327 = vmatpush1.msra.mxu0 0.0
  %328 = vmatprep.subr.mxu0 0.0
  %329 = vmatpush1.msra.mxu0 0.0
  %330 = vmatprep.subr.mxu0 0.0
  %331 = vmatpush1.msra.mxu0 0.0
  %332 = vmatprep.mubr.f32.mxu0 0.0
  %333 = vmatmul.mubr.f32.gmra.mrb[0].mxu0 %v195
  %v334 = vpop.f32.mrb[0].mxu0
  %v335 = vadd.f32 0.0, %v334
  %v336 = vpop.f32.mrb[0].mxu0
  %v337 = vadd.f32 0.0, %v336
  %338 = vdwg.mxu0
  %v339 = vsub.f32 %v264, %v335
  %v340 = vsub.f32 %v266, %v337
  %v341 = vmul.f32 %v339, %v339
  %v342 = vmul.f32 %v340, %v340
  %v345 = vrot.slane %v341, 1
  %v346 = vrot.slane %v342, 1
  %v349 = vadd.f32 %v341, %v345
  %v350 = vadd.f32 %v342, %v346
  %v351 = vrot.slane %v341, 2
  %v352 = vrot.slane %v342, 2
  %v355 = vadd.f32 %v349, %v351
  %v356 = vadd.f32 %v350, %v352
  %v357 = vrsqrt.pop %v355
  %v358 = vmul.f32 %v355, %v357
  %vm359 = vcmp.eq.f32.partialorder %v355, inf
  %v360 = vsel %vm359, %v355, %v358
  %vm361 = vcmp.eq.f32.partialorder %v355, 0.0
  %v362 = vand.u32 %v355, 2147483648
  %v363 = vsel %vm361, %v362, %v360
  %v364 = vrsqrt.pop %v356
  %v365 = vmul.f32 %v356, %v364
  %vm366 = vcmp.eq.f32.partialorder %v356, inf
  %v367 = vsel %vm366, %v356, %v365
  %vm368 = vcmp.eq.f32.partialorder %v356, 0.0
  %v369 = vand.u32 %v356, 2147483648
  %v370 = vsel %vm368, %v369, %v367
  %v371 = vld [vmem:[%s1] sm:$0x1]
  %v373 = vsel %vm193, %v371, 0
  %375 = vmatprep.subr.mxu0 %v53
  %376 = vmatpush1.msra.mxu0 %v52
  %377 = vmatprep.subr.mxu0 %v55
  %378 = vmatpush1.msra.mxu0 %v54
  %379 = vmatprep.subr.mxu0 0.0
  %380 = vmatpush1.msra.mxu0 0.0
  %381 = vmatprep.subr.mxu0 0.0
  %382 = vmatpush1.msra.mxu0 0.0
  %383 = vmatprep.subr.mxu0 0.0
  %384 = vmatpush1.msra.mxu0 0.0
  %385 = vmatprep.subr.mxu0 0.0
  %386 = vmatpush1.msra.mxu0 0.0
  %387 = vmatprep.subr.mxu0 0.0
  %388 = vmatpush1.msra.mxu0 0.0
  %389 = vmatprep.subr.mxu0 0.0
  %390 = vmatpush1.msra.mxu0 0.0
  %391 = vmatprep.subr.mxu0 0.0
  %392 = vmatpush1.msra.mxu0 0.0
  %393 = vmatprep.subr.mxu0 0.0
  %394 = vmatpush1.msra.mxu0 0.0
  %395 = vmatprep.subr.mxu0 0.0
  %396 = vmatpush1.msra.mxu0 0.0
  %397 = vmatprep.subr.mxu0 0.0
  %398 = vmatpush1.msra.mxu0 0.0
  %399 = vmatprep.subr.mxu0 0.0
  %400 = vmatpush1.msra.mxu0 0.0
  %401 = vmatprep.subr.mxu0 0.0
  %402 = vmatpush1.msra.mxu0 0.0
  %403 = vmatprep.subr.mxu0 0.0
  %404 = vmatpush1.msra.mxu0 0.0
  %405 = vmatprep.subr.mxu0 0.0
  %406 = vmatpush1.msra.mxu0 0.0
  %407 = vmatprep.subr.mxu0 0.0
  %408 = vmatpush1.msra.mxu0 0.0
  %409 = vmatprep.subr.mxu0 0.0
  %410 = vmatpush1.msra.mxu0 0.0
  %411 = vmatprep.subr.mxu0 0.0
  %412 = vmatpush1.msra.mxu0 0.0
  %413 = vmatprep.subr.mxu0 0.0
  %414 = vmatpush1.msra.mxu0 0.0
  %415 = vmatprep.subr.mxu0 0.0
  %416 = vmatpush1.msra.mxu0 0.0
  %417 = vmatprep.subr.mxu0 0.0
  %418 = vmatpush1.msra.mxu0 0.0
  %419 = vmatprep.subr.mxu0 0.0
  %420 = vmatpush1.msra.mxu0 0.0
  %421 = vmatprep.subr.mxu0 0.0
  %422 = vmatpush1.msra.mxu0 0.0
  %423 = vmatprep.subr.mxu0 0.0
  %424 = vmatpush1.msra.mxu0 0.0
  %425 = vmatprep.subr.mxu0 0.0
  %426 = vmatpush1.msra.mxu0 0.0
  %427 = vmatprep.subr.mxu0 0.0
  %428 = vmatpush1.msra.mxu0 0.0
  %429 = vmatprep.subr.mxu0 0.0
  %430 = vmatpush1.msra.mxu0 0.0
  %431 = vmatprep.subr.mxu0 0.0
  %432 = vmatpush1.msra.mxu0 0.0
  %433 = vmatprep.subr.mxu0 0.0
  %434 = vmatpush1.msra.mxu0 0.0
  %435 = vmatprep.subr.mxu0 0.0
  %436 = vmatpush1.msra.mxu0 0.0
  %437 = vmatprep.subr.mxu0 0.0
  %438 = vmatpush1.msra.mxu0 0.0
  %439 = vmatprep.mubr.f32.mxu0 0.0
  %440 = vmatmul.mubr.f32.gmra.mrb[0].mxu0 %v373
  %v441 = vpop.f32.mrb[0].mxu0
  %v442 = vadd.f32 0.0, %v441
  %v443 = vpop.f32.mrb[0].mxu0
  %v444 = vadd.f32 0.0, %v443
  %445 = vdwg.mxu0
  %446 = vmatprep.subr.mxu0 %v63
  %447 = vmatpush1.msra.mxu0 %v62
  %448 = vmatprep.subr.mxu0 %v65
  %449 = vmatpush1.msra.mxu0 %v64
  %450 = vmatprep.subr.mxu0 0.0
  %451 = vmatpush1.msra.mxu0 0.0
  %452 = vmatprep.subr.mxu0 0.0
  %453 = vmatpush1.msra.mxu0 0.0
  %454 = vmatprep.subr.mxu0 0.0
  %455 = vmatpush1.msra.mxu0 0.0
  %456 = vmatprep.subr.mxu0 0.0
  %457 = vmatpush1.msra.mxu0 0.0
  %458 = vmatprep.subr.mxu0 0.0
  %459 = vmatpush1.msra.mxu0 0.0
  %460 = vmatprep.subr.mxu0 0.0
  %461 = vmatpush1.msra.mxu0 0.0
  %462 = vmatprep.subr.mxu0 0.0
  %463 = vmatpush1.msra.mxu0 0.0
  %464 = vmatprep.subr.mxu0 0.0
  %465 = vmatpush1.msra.mxu0 0.0
  %466 = vmatprep.subr.mxu0 0.0
  %467 = vmatpush1.msra.mxu0 0.0
  %468 = vmatprep.subr.mxu0 0.0
  %469 = vmatpush1.msra.mxu0 0.0
  %470 = vmatprep.subr.mxu0 0.0
  %471 = vmatpush1.msra.mxu0 0.0
  %472 = vmatprep.subr.mxu0 0.0
  %473 = vmatpush1.msra.mxu0 0.0
  %474 = vmatprep.subr.mxu0 0.0
  %475 = vmatpush1.msra.mxu0 0.0
  %476 = vmatprep.subr.mxu0 0.0
  %477 = vmatpush1.msra.mxu0 0.0
  %478 = vmatprep.subr.mxu0 0.0
  %479 = vmatpush1.msra.mxu0 0.0
  %480 = vmatprep.subr.mxu0 0.0
  %481 = vmatpush1.msra.mxu0 0.0
  %482 = vmatprep.subr.mxu0 0.0
  %483 = vmatpush1.msra.mxu0 0.0
  %484 = vmatprep.subr.mxu0 0.0
  %485 = vmatpush1.msra.mxu0 0.0
  %486 = vmatprep.subr.mxu0 0.0
  %487 = vmatpush1.msra.mxu0 0.0
  %488 = vmatprep.subr.mxu0 0.0
  %489 = vmatpush1.msra.mxu0 0.0
  %490 = vmatprep.subr.mxu0 0.0
  %491 = vmatpush1.msra.mxu0 0.0
  %492 = vmatprep.subr.mxu0 0.0
  %493 = vmatpush1.msra.mxu0 0.0
  %494 = vmatprep.subr.mxu0 0.0
  %495 = vmatpush1.msra.mxu0 0.0
  %496 = vmatprep.subr.mxu0 0.0
  %497 = vmatpush1.msra.mxu0 0.0
  %498 = vmatprep.subr.mxu0 0.0
  %499 = vmatpush1.msra.mxu0 0.0
  %500 = vmatprep.subr.mxu0 0.0
  %501 = vmatpush1.msra.mxu0 0.0
  %502 = vmatprep.subr.mxu0 0.0
  %503 = vmatpush1.msra.mxu0 0.0
  %504 = vmatprep.subr.mxu0 0.0
  %505 = vmatpush1.msra.mxu0 0.0
  %506 = vmatprep.subr.mxu0 0.0
  %507 = vmatpush1.msra.mxu0 0.0
  %508 = vmatprep.subr.mxu0 0.0
  %509 = vmatpush1.msra.mxu0 0.0
  %510 = vmatprep.mubr.f32.mxu0 0.0
  %511 = vmatmul.mubr.f32.gmra.mrb[0].mxu0 %v373
  %v512 = vpop.f32.mrb[0].mxu0
  %v513 = vadd.f32 0.0, %v512
  %v514 = vpop.f32.mrb[0].mxu0
  %v515 = vadd.f32 0.0, %v514
  %516 = vdwg.mxu0
  %vm517 = vcmp.ne.s32.totalorder %v46, %v56
  %vm518 = vcmp.ne.s32.totalorder %v47, %v57
  %vm519 = vcmp.eq.f32.partialorder %v442, %v513
  %vm520 = vcmp.eq.f32.partialorder %v444, %v515
  %vm521 = vmand %vm519, %vm517
  %vm522 = vmand %vm520, %vm518
  %vm523 = vcmp.lt.f32.partialorder %v363, 10.0
  %vm524 = vcmp.lt.f32.partialorder %v370, 10.0
  %vm525 = vmand %vm521, %vm523
  %vm526 = vmand %vm522, %vm524
  %v527 = vsel %vm525, 1.0, 0.0
  %v528 = vsel %vm526, 1.0, 0.0
  %v529 = vcvt.s32.f32 %v41
  %v530 = vcvt.s32.f32 %v42
  %v531 = vmul.f32 %v529, 0.6666667
  %v532 = vmul.f32 %v530, 0.6666667
  %v533 = vlaneseq
  %v534 = vshrl.u32 %v533, 7
  %v535 = vsub.s32 0, %v534
  %v536 = vrot.slane %v363, %v535
  %v537 = vlaneseq
  %v538 = vshrl.u32 %v537, 7
  %v539 = vsub.s32 0, %v538
  %v540 = vrot.slane %v370, %v539
  %v541 = vsub.f32 %v536, %v531
  %v542 = vsub.f32 %v540, %v531
  %v543 = vsub.f32 %v536, %v532
  %v544 = vsub.f32 %v540, %v532
  %v545 = vmul.f32 %v541, %v541
  %v546 = vmul.f32 %v542, %v542
  %v547 = vmul.f32 %v543, %v543
  %v548 = vmul.f32 %v544, %v544
  %v549 = vmul.f32 %v545, -1.125
  %v550 = vmul.f32 %v546, -1.125
  %v551 = vmul.f32 %v547, -1.125
  %v552 = vmul.f32 %v548, -1.125
  %v553 = vmul.f32 %v549, 1.442695
  %v554 = vpow.pop %v553
  %v555 = vmul.f32 %v550, 1.442695
  %v556 = vpow.pop %v555
  %v557 = vmul.f32 %v551, 1.442695
  %v558 = vpow.pop %v557
  %v559 = vmul.f32 %v552, 1.442695
  %v560 = vpow.pop %v559
  %v561 = vmul.f32 %v363, 0.31415927
  %v562 = vmul.f32 %v370, 0.31415927
  %v563 = vand.u32 2147483647, %v561
  %vm564 = vcmp.le.f32.partialorder %v563, 0.7853982
  %vm565 = vcmp.lt.s32.totalorder %v561, 0
  %v566 = vand.u32 %v561, 2139095040
  %v567 = vshrl.u32 %v566, 23
  %v568 = vsub.s32 %v567, 127
  %v569 = vand.u32 2147483647, %v561
  %v570 = vand.u32 %v569, 8388607
  %v571 = vor.u32 %v570, 8388608
  %v572 = vsub.s32 0, %v571
  %v573 = vadd.s32 %v568, 1
  %vm574 = vcmp.gt.s32.totalorder %v573, 0
  %v575 = vsel %vm574, %v573, 0
  %v576 = vshrl.u32 %v575, 5
  %v577 = vand.u32 %v575, 31
  %v578 = vsub.s32 32, %v577
  %v579 = vshrl.u32 683565275, %v578
  %v580 = vshll.u32 683565275, %v577
  %v581 = vshrl.u32 2475754826, %v578
  %v582 = vor.u32 %v580, %v581
  %v583 = vshll.u32 2475754826, %v577
  %v584 = vshrl.u32 2131351028, %v578
  %v585 = vor.u32 %v583, %v584
  %v586 = vshll.u32 2131351028, %v577
  %v587 = vshrl.u32 2102212464, %v578
  %v588 = vor.u32 %v586, %v587
  %v589 = vshll.u32 2102212464, %v577
  %v590 = vshrl.u32 920167782, %v578
  %v591 = vor.u32 %v589, %v590
  %v592 = vshll.u32 920167782, %v577
  %v593 = vshrl.u32 1326507024, %v578
  %v594 = vor.u32 %v592, %v593
  %vm595 = vcmp.lt.s32.totalorder %v576, 1
  %vm596 = vcmp.lt.s32.totalorder %v576, 2
  %vm597 = vcmp.lt.s32.totalorder %v576, 3
  %vm598 = vcmp.lt.s32.totalorder %v576, 4
  %v599 = vsel %vm595, %v579, %v582
  %v600 = vsel %vm598, %v588, 2102212464
  %v601 = vsel %vm597, %v585, %v600
  %v602 = vsel %vm596, %v599, %v601
  %v603 = vsel %vm595, %v582, %v585
  %v604 = vsel %vm598, %v591, 920167782
  %v605 = vsel %vm597, %v588, %v604
  %v606 = vsel %vm596, %v603, %v605
  %v607 = vsel %vm595, %v585, %v588
  %v608 = vsel %vm598, %v594, 1326507024
  %v609 = vsel %vm597, %v591, %v608
  %v610 = vsel %vm596, %v607, %v609
  %v611 = vshll.u32 %v571, 8
  %v612 = vmul.u32.u64.compose %v611, %v610
  %v613 = vextract.low.u32 %v612
  %v614 = vextract.high.u32 %v612
  %v615 = vmul.u32.u64.compose %v611, %v606
  %v616 = vextract.low.u32 %v615
  %v617 = vextract.high.u32 %v615
  %v618 = vmul.u32 %v611, %v602
  %v619 = vadd.s32 %v614, %v616
  %vm620 = vc.u32 %v614, %v616
  %v621 = vadd.s32 %v617, 1
  %v622 = vsel %vm620, %v621, %v617
  %v623 = vadd.s32 %v618, %v622
  %v624 = vadd.s32 %v623, 536870912
  %v625 = vshrl.u32 %v624, 30
  %v626 = vshll.u32 %v625, 30
  %v627 = vsub.s32 %v623, %v626
  %vm628 = vcmp.lt.s32.totalorder %v627, 0
  %v629 = vsub.s32 0, %v627
  %v630 = vsel %vm628, %v629, %v627
  %v631 = vclz %v630
  %v632 = vsub.s32 %v631, 2
  %vm633 = vcmp.gt.s32.totalorder 0, %v632
  %v634 = vsel %vm633, 0, %v632
  %v635 = vsub.s32 32, %v634
  %v636 = vshll.u32 %v627, %v634
  %v637 = vshrl.u32 %v619, %v635
  %v638 = vor.u32 %v636, %v637
  %v639 = vsub.s32 4294967266, %v634
  %v640 = vadd.s32 %v639, 127
  %v641 = vshll.u32 %v640, 23
  %v642 = vor.u32 4788187, %v641
  %v643 = vand.u32 2147483647, %v642
  %v645 = vcvt.s32.f32 %v638
  %v646 = vmul.f32 %v645, %v643
  %v647 = vxor.u32 %v646, 2147483648
  %v648 = vsel %vm565, %v647, %v646
  %v649 = vsub.s32 4, %v625
  %v650 = vsel %vm565, %v649, %v625
  %v651 = vsel %vm564, %v561, %v648
  %v652 = vsel %vm564, 0, %v650
  %v653 = vcosq.f32.pop %v651
  %v654 = vsinq.f32.pop %v651
  %vm655 = vweird.f32 %v561
  %v656 = vand.u32 %v652, 3
  %vm657 = vcmp.lt.s32.totalorder %v656, 2
  %vm658 = vcmp.eq.s32.totalorder %v656, 0
  %v659 = vxor.u32 %v654, 2147483648
  %v660 = vsel %vm658, %v653, %v659
  %vm661 = vcmp.eq.s32.totalorder %v656, 2
  %v662 = vxor.u32 %v653, 2147483648
  %v663 = vsel %vm661, %v662, %v654
  %v664 = vsel %vm657, %v660, %v663
  %v665 = vsel %vm655, nan, %v664
  %v666 = vand.u32 2147483647, %v562
  %vm667 = vcmp.le.f32.partialorder %v666, 0.7853982
  %vm668 = vcmp.lt.s32.totalorder %v562, 0
  %v669 = vand.u32 %v562, 2139095040
  %v670 = vshrl.u32 %v669, 23
  %v671 = vsub.s32 %v670, 127
  %v672 = vand.u32 2147483647, %v562
  %v673 = vand.u32 %v672, 8388607
  %v674 = vor.u32 %v673, 8388608
  %v675 = vsub.s32 0, %v674
  %v676 = vadd.s32 %v671, 1
  %vm677 = vcmp.gt.s32.totalorder %v676, 0
  %v678 = vsel %vm677, %v676, 0
  %v679 = vshrl.u32 %v678, 5
  %v680 = vand.u32 %v678, 31
  %v681 = vsub.s32 32, %v680
  %v682 = vshrl.u32 683565275, %v681
  %v683 = vshll.u32 683565275, %v680
  %v684 = vshrl.u32 2475754826, %v681
  %v685 = vor.u32 %v683, %v684
  %v686 = vshll.u32 2475754826, %v680
  %v687 = vshrl.u32 2131351028, %v681
  %v688 = vor.u32 %v686, %v687
  %v689 = vshll.u32 2131351028, %v680
  %v690 = vshrl.u32 2102212464, %v681
  %v691 = vor.u32 %v689, %v690
  %v692 = vshll.u32 2102212464, %v680
  %v693 = vshrl.u32 920167782, %v681
  %v694 = vor.u32 %v692, %v693
  %v695 = vshll.u32 920167782, %v680
  %v696 = vshrl.u32 1326507024, %v681
  %v697 = vor.u32 %v695, %v696
  %vm698 = vcmp.lt.s32.totalorder %v679, 1
  %vm699 = vcmp.lt.s32.totalorder %v679, 2
  %vm700 = vcmp.lt.s32.totalorder %v679, 3
  %vm701 = vcmp.lt.s32.totalorder %v679, 4
  %v702 = vsel %vm698, %v682, %v685
  %v703 = vsel %vm701, %v691, 2102212464
  %v704 = vsel %vm700, %v688, %v703
  %v705 = vsel %vm699, %v702, %v704
  %v706 = vsel %vm698, %v685, %v688
  %v707 = vsel %vm701, %v694, 920167782
  %v708 = vsel %vm700, %v691, %v707
  %v709 = vsel %vm699, %v706, %v708
  %v710 = vsel %vm698, %v688, %v691
  %v711 = vsel %vm701, %v697, 1326507024
  %v712 = vsel %vm700, %v694, %v711
  %v713 = vsel %vm699, %v710, %v712
  %v714 = vshll.u32 %v674, 8
  %v715 = vmul.u32.u64.compose %v714, %v713
  %v716 = vextract.low.u32 %v715
  %v717 = vextract.high.u32 %v715
  %v718 = vmul.u32.u64.compose %v714, %v709
  %v719 = vextract.low.u32 %v718
  %v720 = vextract.high.u32 %v718
  %v721 = vmul.u32 %v714, %v705
  %v722 = vadd.s32 %v717, %v719
  %vm723 = vc.u32 %v717, %v719
  %v724 = vadd.s32 %v720, 1
  %v725 = vsel %vm723, %v724, %v720
  %v726 = vadd.s32 %v721, %v725
  %v727 = vadd.s32 %v726, 536870912
  %v728 = vshrl.u32 %v727, 30
  %v729 = vshll.u32 %v728, 30
  %v730 = vsub.s32 %v726, %v729
  %vm731 = vcmp.lt.s32.totalorder %v730, 0
  %v732 = vsub.s32 0, %v730
  %v733 = vsel %vm731, %v732, %v730
  %v734 = vclz %v733
  %v735 = vsub.s32 %v734, 2
  %vm736 = vcmp.gt.s32.totalorder 0, %v735
  %v737 = vsel %vm736, 0, %v735
  %v738 = vsub.s32 32, %v737
  %v739 = vshll.u32 %v730, %v737
  %v740 = vshrl.u32 %v722, %v738
  %v741 = vor.u32 %v739, %v740
  %v742 = vsub.s32 4294967266, %v737
  %v743 = vadd.s32 %v742, 127
  %v744 = vshll.u32 %v743, 23
  %v745 = vor.u32 4788187, %v744
  %v746 = vand.u32 2147483647, %v745
  %v748 = vcvt.s32.f32 %v741
  %v749 = vmul.f32 %v748, %v746
  %v750 = vxor.u32 %v749, 2147483648
  %v751 = vsel %vm668, %v750, %v749
  %v752 = vsub.s32 4, %v728
  %v753 = vsel %vm668, %v752, %v728
  %v754 = vsel %vm667, %v562, %v751
  %v755 = vsel %vm667, 0, %v753
  %v756 = vcosq.f32.pop %v754
  %v757 = vsinq.f32.pop %v754
  %vm758 = vweird.f32 %v562
  %v759 = vand.u32 %v755, 3
  %vm760 = vcmp.lt.s32.totalorder %v759, 2
  %vm761 = vcmp.eq.s32.totalorder %v759, 0
  %v762 = vxor.u32 %v757, 2147483648
  %v763 = vsel %vm761, %v756, %v762
  %vm764 = vcmp.eq.s32.totalorder %v759, 2
  %v765 = vxor.u32 %v756, 2147483648
  %v766 = vsel %vm764, %v765, %v757
  %v767 = vsel %vm760, %v763, %v766
  %v768 = vsel %vm758, nan, %v767
  %v769 = vadd.f32 %v665, 1.0
  %v770 = vadd.f32 %v768, 1.0
  %v771 = vmul.f32 %v769, 0.5
  %v772 = vmul.f32 %v770, 0.5
  %v773 = vmul.f32 %v771, %v527
  %v774 = vmul.f32 %v772, %v528
  %v775 = vld [vmem:[%s3] sm:$0xff]
  %v776 = vld [vmem:[%s3 + $0x8] sm:$0xff]
  %v777 = vld [vmem:[%s3 + $0x10] sm:$0xff]
  %v778 = vld [vmem:[%s3 + $0x18] sm:$0xff]
  %v779 = vld [vmem:[%s4] sm:$0xff]
  %v780 = vld [vmem:[%s4 + $0x8] sm:$0xff]
  %v781 = vld [vmem:[%s4 + $0x10] sm:$0xff]
  %v782 = vld [vmem:[%s4 + $0x18] sm:$0xff]
  %v783 = vld [vmem:[%s6] sm:$0xff]
  %v784 = vld [vmem:[%s6 + $0x8] sm:$0xff]
  %v785 = vld [vmem:[%s6 + $0x10] sm:$0xff]
  %v786 = vld [vmem:[%s6 + $0x18] sm:$0xff]
  %788 = vset.pattern.permute.xlu0 0
  %789 = vperm.xlu0 %788, %v783
  %v790 = vpop.permute.xlu0 %789
  %793 = vset.pattern.permute.xlu0 0
  %794 = vperm.xlu0 %793, %v784
  %v795 = vpop.permute.xlu0 %794
  %798 = vset.pattern.permute.xlu0 0
  %799 = vperm.xlu0 %798, %v785
  %v800 = vpop.permute.xlu0 %799
  %803 = vset.pattern.permute.xlu0 0
  %804 = vperm.xlu0 %803, %v786
  %v805 = vpop.permute.xlu0 %804
  %v808 = vsel %vm193, %v779, 0
  %v811 = vsel %vm193, %v780, 0
  %v814 = vsel %vm193, %v781, 0
  %v817 = vsel %vm193, %v782, 0
  %819 = vmatprep.subr.mxu0 %v556
  %820 = vmatpush1.msra.mxu0 %v554
  %821 = vmatprep.subr.mxu0 %v560
  %822 = vmatpush1.msra.mxu0 %v558
  %823 = vmatprep.subr.mxu0 0.0
  %824 = vmatpush1.msra.mxu0 0.0
  %825 = vmatprep.subr.mxu0 0.0
  %826 = vmatpush1.msra.mxu0 0.0
  %827 = vmatprep.subr.mxu0 0.0
  %828 = vmatpush1.msra.mxu0 0.0
  %829 = vmatprep.subr.mxu0 0.0
  %830 = vmatpush1.msra.mxu0 0.0
  %831 = vmatprep.subr.mxu0 0.0
  %832 = vmatpush1.msra.mxu0 0.0
  %833 = vmatprep.subr.mxu0 0.0
  %834 = vmatpush1.msra.mxu0 0.0
  %835 = vmatprep.subr.mxu0 0.0
  %836 = vmatpush1.msra.mxu0 0.0
  %837 = vmatprep.subr.mxu0 0.0
  %838 = vmatpush1.msra.mxu0 0.0
  %839 = vmatprep.subr.mxu0 0.0
  %840 = vmatpush1.msra.mxu0 0.0
  %841 = vmatprep.subr.mxu0 0.0
  %842 = vmatpush1.msra.mxu0 0.0
  %843 = vmatprep.subr.mxu0 0.0
  %844 = vmatpush1.msra.mxu0 0.0
  %845 = vmatprep.subr.mxu0 0.0
  %846 = vmatpush1.msra.mxu0 0.0
  %847 = vmatprep.subr.mxu0 0.0
  %848 = vmatpush1.msra.mxu0 0.0
  %849 = vmatprep.subr.mxu0 0.0
  %850 = vmatpush1.msra.mxu0 0.0
  %851 = vmatprep.subr.mxu0 0.0
  %852 = vmatpush1.msra.mxu0 0.0
  %853 = vmatprep.subr.mxu0 0.0
  %854 = vmatpush1.msra.mxu0 0.0
  %855 = vmatprep.subr.mxu0 0.0
  %856 = vmatpush1.msra.mxu0 0.0
  %857 = vmatprep.subr.mxu0 0.0
  %858 = vmatpush1.msra.mxu0 0.0
  %859 = vmatprep.subr.mxu0 0.0
  %860 = vmatpush1.msra.mxu0 0.0
  %861 = vmatprep.subr.mxu0 0.0
  %862 = vmatpush1.msra.mxu0 0.0
  %863 = vmatprep.subr.mxu0 0.0
  %864 = vmatpush1.msra.mxu0 0.0
  %865 = vmatprep.subr.mxu0 0.0
  %866 = vmatpush1.msra.mxu0 0.0
  %867 = vmatprep.subr.mxu0 0.0
  %868 = vmatpush1.msra.mxu0 0.0
  %869 = vmatprep.subr.mxu0 0.0
  %870 = vmatpush1.msra.mxu0 0.0
  %871 = vmatprep.subr.mxu0 0.0
  %872 = vmatpush1.msra.mxu0 0.0
  %873 = vmatprep.subr.mxu0 0.0
  %874 = vmatpush1.msra.mxu0 0.0
  %875 = vmatprep.subr.mxu0 0.0
  %876 = vmatpush1.msra.mxu0 0.0
  %877 = vmatprep.subr.mxu0 0.0
  %878 = vmatpush1.msra.mxu0 0.0
  %879 = vmatprep.subr.mxu0 0.0
  %880 = vmatpush1.msra.mxu0 0.0
  %881 = vmatprep.subr.mxu0 0.0
  %882 = vmatpush1.msra.mxu0 0.0
  %883 = vmatprep.mubr.f32.mxu0 0.0
  %884 = vmatmul.mubr.f32.gmra.mrb[0].mxu0 %v808
  %v885 = vpop.f32.mrb[0].mxu0
  %v886 = vadd.f32 %v790, %v885
  %v887 = vpop.f32.mrb[0].mxu0
  %v888 = vadd.f32 %v790, %v887
  %889 = vmatprep.mubr.f32.mxu0 0.0
  %890 = vmatmul.mubr.f32.gmra.mrb[0].mxu0 %v811
  %v891 = vpop.f32.mrb[0].mxu0
  %v892 = vadd.f32 %v795, %v891
  %v893 = vpop.f32.mrb[0].mxu0
  %v894 = vadd.f32 %v795, %v893
  %895 = vmatprep.mubr.f32.mxu0 0.0
  %896 = vmatmul.mubr.f32.gmra.mrb[0].mxu0 %v814
  %v897 = vpop.f32.mrb[0].mxu0
  %v898 = vadd.f32 %v800, %v897
  %v899 = vpop.f32.mrb[0].mxu0
  %v900 = vadd.f32 %v800, %v899
  %901 = vmatprep.mubr.f32.mxu0 0.0
  %902 = vmatmul.mubr.f32.gmra.mrb[0].mxu0 %v817
  %v903 = vpop.f32.mrb[0].mxu0
  %v904 = vadd.f32 %v805, %v903
  %v905 = vpop.f32.mrb[0].mxu0
  %v906 = vadd.f32 %v805, %v905
  %907 = vdwg.mxu0
  %v908 = vmax.f32 %v886, 0.0
  %v909 = vmax.f32 %v888, 0.0
  %v910 = vmax.f32 %v892, 0.0
  %v911 = vmax.f32 %v894, 0.0
  %v912 = vmax.f32 %v898, 0.0
  %v913 = vmax.f32 %v900, 0.0
  %v914 = vmax.f32 %v904, 0.0
  %v915 = vmax.f32 %v906, 0.0
  %v916 = vand.u32 2147483647, %v886
  %v917 = vand.u32 2147483647, %v888
  %v918 = vand.u32 2147483647, %v892
  %v919 = vand.u32 2147483647, %v894
  %v920 = vand.u32 2147483647, %v898
  %v921 = vand.u32 2147483647, %v900
  %v922 = vand.u32 2147483647, %v904
  %v923 = vand.u32 2147483647, %v906
  %v924 = vsub.f32 0.0, %v916
  %v925 = vsub.f32 0.0, %v917
  %v926 = vsub.f32 0.0, %v918
  %v927 = vsub.f32 0.0, %v919
  %v928 = vsub.f32 0.0, %v920
  %v929 = vsub.f32 0.0, %v921
  %v930 = vsub.f32 0.0, %v922
  %v931 = vsub.f32 0.0, %v923
  %v932 = vmul.f32 %v924, 1.442695
  %v933 = vpow.pop %v932
  %v934 = vmul.f32 %v925, 1.442695
  %v935 = vpow.pop %v934
  %v936 = vmul.f32 %v926, 1.442695
  %v937 = vpow.pop %v936
  %v938 = vmul.f32 %v927, 1.442695
  %v939 = vpow.pop %v938
  %v940 = vmul.f32 %v928, 1.442695
  %v941 = vpow.pop %v940
  %v942 = vmul.f32 %v929, 1.442695
  %v943 = vpow.pop %v942
  %v944 = vmul.f32 %v930, 1.442695
  %v945 = vpow.pop %v944
  %v946 = vmul.f32 %v931, 1.442695
  %v947 = vpow.pop %v946
  %v948 = vadd.f32 %v933, 1.0
  %v949 = vadd.f32 %v935, 1.0
  %v950 = vadd.f32 %v937, 1.0
  %v951 = vadd.f32 %v939, 1.0
  %v952 = vadd.f32 %v941, 1.0
  %v953 = vadd.f32 %v943, 1.0
  %v954 = vadd.f32 %v945, 1.0
  %v955 = vadd.f32 %v947, 1.0
  %v956 = vlog2.pop %v948
  %v957 = vmul.f32 %v956, 0.6931472
  %v958 = vlog2.pop %v949
  %v959 = vmul.f32 %v958, 0.6931472
  %v960 = vlog2.pop %v950
  %v961 = vmul.f32 %v960, 0.6931472
  %v962 = vlog2.pop %v951
  %v963 = vmul.f32 %v962, 0.6931472
  %v964 = vlog2.pop %v952
  %v965 = vmul.f32 %v964, 0.6931472
  %v966 = vlog2.pop %v953
  %v967 = vmul.f32 %v966, 0.6931472
  %v968 = vlog2.pop %v954
  %v969 = vmul.f32 %v968, 0.6931472
  %v970 = vlog2.pop %v955
  %v971 = vmul.f32 %v970, 0.6931472
  %v972 = vadd.f32 %v908, %v957
  %v973 = vadd.f32 %v909, %v959
  %v974 = vadd.f32 %v910, %v961
  %v975 = vadd.f32 %v911, %v963
  %v976 = vadd.f32 %v912, %v965
  %v977 = vadd.f32 %v913, %v967
  %v978 = vadd.f32 %v914, %v969
  %v979 = vadd.f32 %v915, %v971
  %v980 = vsub.f32 %v972, 0.6931472
  %v981 = vsub.f32 %v973, 0.6931472
  %v982 = vsub.f32 %v974, 0.6931472
  %v983 = vsub.f32 %v975, 0.6931472
  %v984 = vsub.f32 %v976, 0.6931472
  %v985 = vsub.f32 %v977, 0.6931472
  %v986 = vsub.f32 %v978, 0.6931472
  %v987 = vsub.f32 %v979, 0.6931472
  %v988 = vld [vmem:[%s5] sm:$0xff]
  %v989 = vld [vmem:[%s5 + $0x8] sm:$0xff]
  %v990 = vld [vmem:[%s5 + $0x10] sm:$0xff]
  %v991 = vld [vmem:[%s5 + $0x18] sm:$0xff]
  %s992 = scalar_lea.vmem %s6, 32
  %v993 = vld [vmem:[%s992] sm:$0xff]
  %v994 = vld [vmem:[%s992 + $0x8] sm:$0xff]
  %v995 = vld [vmem:[%s992 + $0x10] sm:$0xff]
  %v996 = vld [vmem:[%s992 + $0x18] sm:$0xff]
  %998 = vset.pattern.permute.xlu0 0
  %999 = vperm.xlu0 %998, %v993
  %v1000 = vpop.permute.xlu0 %999
  %1003 = vset.pattern.permute.xlu0 0
  %1004 = vperm.xlu0 %1003, %v994
  %v1005 = vpop.permute.xlu0 %1004
  %1008 = vset.pattern.permute.xlu0 0
  %1009 = vperm.xlu0 %1008, %v995
  %v1010 = vpop.permute.xlu0 %1009
  %1013 = vset.pattern.permute.xlu0 0
  %1014 = vperm.xlu0 %1013, %v996
  %v1015 = vpop.permute.xlu0 %1014
  %vm1017 = vcmask 261120
  %v1019 = vsel %vm1017, %v988, 0
  %v1022 = vsel %vm1017, %v989, 0
  %v1025 = vsel %vm1017, %v990, 0
  %v1028 = vsel %vm1017, %v991, 0
  %1030 = vmatprep.subr.mxu0 %v981
  %1031 = vmatpush1.msra.mxu0 %v980
  %1032 = vmatprep.subr.mxu0 %v983
  %1033 = vmatpush1.msra.mxu0 %v982
  %1034 = vmatprep.subr.mxu0 %v985
  %1035 = vmatpush1.msra.mxu0 %v984
  %1036 = vmatprep.subr.mxu0 %v987
  %1037 = vmatpush1.msra.mxu0 %v986
  %1038 = vmatprep.subr.mxu0 0.0
  %1039 = vmatpush1.msra.mxu0 0.0
  %1040 = vmatprep.subr.mxu0 0.0
  %1041 = vmatpush1.msra.mxu0 0.0
  %1042 = vmatprep.subr.mxu0 0.0
  %1043 = vmatpush1.msra.mxu0 0.0
  %1044 = vmatprep.subr.mxu0 0.0
  %1045 = vmatpush1.msra.mxu0 0.0
  %1046 = vmatprep.subr.mxu0 0.0
  %1047 = vmatpush1.msra.mxu0 0.0
  %1048 = vmatprep.subr.mxu0 0.0
  %1049 = vmatpush1.msra.mxu0 0.0
  %1050 = vmatprep.subr.mxu0 0.0
  %1051 = vmatpush1.msra.mxu0 0.0
  %1052 = vmatprep.subr.mxu0 0.0
  %1053 = vmatpush1.msra.mxu0 0.0
  %1054 = vmatprep.subr.mxu0 0.0
  %1055 = vmatpush1.msra.mxu0 0.0
  %1056 = vmatprep.subr.mxu0 0.0
  %1057 = vmatpush1.msra.mxu0 0.0
  %1058 = vmatprep.subr.mxu0 0.0
  %1059 = vmatpush1.msra.mxu0 0.0
  %1060 = vmatprep.subr.mxu0 0.0
  %1061 = vmatpush1.msra.mxu0 0.0
  %1062 = vmatprep.subr.mxu0 0.0
  %1063 = vmatpush1.msra.mxu0 0.0
  %1064 = vmatprep.subr.mxu0 0.0
  %1065 = vmatpush1.msra.mxu0 0.0
  %1066 = vmatprep.subr.mxu0 0.0
  %1067 = vmatpush1.msra.mxu0 0.0
  %1068 = vmatprep.subr.mxu0 0.0
  %1069 = vmatpush1.msra.mxu0 0.0
  %1070 = vmatprep.subr.mxu0 0.0
  %1071 = vmatpush1.msra.mxu0 0.0
  %1072 = vmatprep.subr.mxu0 0.0
  %1073 = vmatpush1.msra.mxu0 0.0
  %1074 = vmatprep.subr.mxu0 0.0
  %1075 = vmatpush1.msra.mxu0 0.0
  %1076 = vmatprep.subr.mxu0 0.0
  %1077 = vmatpush1.msra.mxu0 0.0
  %1078 = vmatprep.subr.mxu0 0.0
  %1079 = vmatpush1.msra.mxu0 0.0
  %1080 = vmatprep.subr.mxu0 0.0
  %1081 = vmatpush1.msra.mxu0 0.0
  %1082 = vmatprep.subr.mxu0 0.0
  %1083 = vmatpush1.msra.mxu0 0.0
  %1084 = vmatprep.subr.mxu0 0.0
  %1085 = vmatpush1.msra.mxu0 0.0
  %1086 = vmatprep.subr.mxu0 0.0
  %1087 = vmatpush1.msra.mxu0 0.0
  %1088 = vmatprep.subr.mxu0 0.0
  %1089 = vmatpush1.msra.mxu0 0.0
  %1090 = vmatprep.subr.mxu0 0.0
  %1091 = vmatpush1.msra.mxu0 0.0
  %1092 = vmatprep.subr.mxu0 0.0
  %1093 = vmatpush1.msra.mxu0 0.0
  %1094 = vmatprep.mubr.f32.mxu0 0.0
  %1095 = vmatmul.mubr.f32.gmra.mrb[0].mxu0 %v1019
  %v1096 = vpop.f32.mrb[0].mxu0
  %v1097 = vadd.f32 %v1000, %v1096
  %v1098 = vpop.f32.mrb[0].mxu0
  %v1099 = vadd.f32 %v1000, %v1098
  %1100 = vmatprep.mubr.f32.mxu0 0.0
  %1101 = vmatmul.mubr.f32.gmra.mrb[0].mxu0 %v1022
  %v1102 = vpop.f32.mrb[0].mxu0
  %v1103 = vadd.f32 %v1005, %v1102
  %v1104 = vpop.f32.mrb[0].mxu0
  %v1105 = vadd.f32 %v1005, %v1104
  %1106 = vmatprep.mubr.f32.mxu0 0.0
  %1107 = vmatmul.mubr.f32.gmra.mrb[0].mxu0 %v1025
  %v1108 = vpop.f32.mrb[0].mxu0
  %v1109 = vadd.f32 %v1010, %v1108
  %v1110 = vpop.f32.mrb[0].mxu0
  %v1111 = vadd.f32 %v1010, %v1110
  %1112 = vmatprep.mubr.f32.mxu0 0.0
  %1113 = vmatmul.mubr.f32.gmra.mrb[0].mxu0 %v1028
  %v1114 = vpop.f32.mrb[0].mxu0
  %v1115 = vadd.f32 %v1015, %v1114
  %v1116 = vpop.f32.mrb[0].mxu0
  %v1117 = vadd.f32 %v1015, %v1116
  %1118 = vdwg.mxu0
  %v1119 = vlaneseq
  %v1120 = vshrl.u32 %v1119, 7
  %v1121 = vsub.s32 0, %v1120
  %v1122 = vrot.slane %v773, %v1121
  %v1123 = vlaneseq
  %v1124 = vshrl.u32 %v1123, 7
  %v1125 = vsub.s32 0, %v1124
  %v1126 = vrot.slane %v774, %v1125
  %v1127 = vmul.f32 %v1097, %v1122
  %v1128 = vmul.f32 %v1099, %v1126
  %v1129 = vmul.f32 %v1103, %v1122
  %v1130 = vmul.f32 %v1105, %v1126
  %v1131 = vmul.f32 %v1109, %v1122
  %v1132 = vmul.f32 %v1111, %v1126
  %v1133 = vmul.f32 %v1115, %v1122
  %v1134 = vmul.f32 %v1117, %v1126
  %s1135 = scalar_lea.vmem %s5, 32
  %v1136 = vld [vmem:[%s1135] sm:$0xff]
  %v1137 = vld [vmem:[%s1135 + $0x8] sm:$0xff]
  %v1138 = vld [vmem:[%s1135 + $0x10] sm:$0xff]
  %v1139 = vld [vmem:[%s1135 + $0x18] sm:$0xff]
  %v1141 = vsel %vm1017, %v1136, 0
  %v1144 = vsel %vm1017, %v1137, 0
  %v1147 = vsel %vm1017, %v1138, 0
  %v1150 = vsel %vm1017, %v1139, 0
  %1152 = vmatprep.subr.mxu0 0.0
  %1153 = vmatpush1.msra.mxu0 %v775
  %1154 = vmatprep.subr.mxu0 0.0
  %1155 = vmatpush1.msra.mxu0 %v776
  %1156 = vmatprep.subr.mxu0 0.0
  %1157 = vmatpush1.msra.mxu0 %v777
  %1158 = vmatprep.subr.mxu0 0.0
  %1159 = vmatpush1.msra.mxu0 %v778
  %1160 = vmatprep.subr.mxu0 0.0
  %1161 = vmatpush1.msra.mxu0 0.0
  %1162 = vmatprep.subr.mxu0 0.0
  %1163 = vmatpush1.msra.mxu0 0.0
  %1164 = vmatprep.subr.mxu0 0.0
  %1165 = vmatpush1.msra.mxu0 0.0
  %1166 = vmatprep.subr.mxu0 0.0
  %1167 = vmatpush1.msra.mxu0 0.0
  %1168 = vmatprep.subr.mxu0 0.0
  %1169 = vmatpush1.msra.mxu0 0.0
  %1170 = vmatprep.subr.mxu0 0.0
  %1171 = vmatpush1.msra.mxu0 0.0
  %1172 = vmatprep.subr.mxu0 0.0
  %1173 = vmatpush1.msra.mxu0 0.0
  %1174 = vmatprep.subr.mxu0 0.0
  %1175 = vmatpush1.msra.mxu0 0.0
  %1176 = vmatprep.subr.mxu0 0.0
  %1177 = vmatpush1.msra.mxu0 0.0
  %1178 = vmatprep.subr.mxu0 0.0
  %1179 = vmatpush1.msra.mxu0 0.0
  %1180 = vmatprep.subr.mxu0 0.0
  %1181 = vmatpush1.msra.mxu0 0.0
  %1182 = vmatprep.subr.mxu0 0.0
  %1183 = vmatpush1.msra.mxu0 0.0
  %1184 = vmatprep.subr.mxu0 0.0
  %1185 = vmatpush1.msra.mxu0 0.0
  %1186 = vmatprep.subr.mxu0 0.0
  %1187 = vmatpush1.msra.mxu0 0.0
  %1188 = vmatprep.subr.mxu0 0.0
  %1189 = vmatpush1.msra.mxu0 0.0
  %1190 = vmatprep.subr.mxu0 0.0
  %1191 = vmatpush1.msra.mxu0 0.0
  %1192 = vmatprep.subr.mxu0 0.0
  %1193 = vmatpush1.msra.mxu0 0.0
  %1194 = vmatprep.subr.mxu0 0.0
  %1195 = vmatpush1.msra.mxu0 0.0
  %1196 = vmatprep.subr.mxu0 0.0
  %1197 = vmatpush1.msra.mxu0 0.0
  %1198 = vmatprep.subr.mxu0 0.0
  %1199 = vmatpush1.msra.mxu0 0.0
  %1200 = vmatprep.subr.mxu0 0.0
  %1201 = vmatpush1.msra.mxu0 0.0
  %1202 = vmatprep.subr.mxu0 0.0
  %1203 = vmatpush1.msra.mxu0 0.0
  %1204 = vmatprep.subr.mxu0 0.0
  %1205 = vmatpush1.msra.mxu0 0.0
  %1206 = vmatprep.subr.mxu0 0.0
  %1207 = vmatpush1.msra.mxu0 0.0
  %1208 = vmatprep.subr.mxu0 0.0
  %1209 = vmatpush1.msra.mxu0 0.0
  %1210 = vmatprep.subr.mxu0 0.0
  %1211 = vmatpush1.msra.mxu0 0.0
  %1212 = vmatprep.subr.mxu0 0.0
  %1213 = vmatpush1.msra.mxu0 0.0
  %1214 = vmatprep.subr.mxu0 0.0
  %1215 = vmatpush1.msra.mxu0 0.0
  %1216 = vmatprep.mubr.f32.mxu0 0.0
  %1217 = vmatmul.mubr.f32.gmra.mrb[0].mxu0 %v1141
  %v1218 = vpop.f32.mrb[0].mxu0
  %v1219 = vadd.f32 0.0, %v1218
  %v1220 = vpop.f32.mrb[0].mxu0
  %1221 = vmatprep.mubr.f32.mxu0 0.0
  %1222 = vmatmul.mubr.f32.gmra.mrb[0].mxu0 %v1144
  %v1223 = vpop.f32.mrb[0].mxu0
  %v1224 = vadd.f32 0.0, %v1223
  %v1225 = vpop.f32.mrb[0].mxu0
  %1226 = vmatprep.mubr.f32.mxu0 0.0
  %1227 = vmatmul.mubr.f32.gmra.mrb[0].mxu0 %v1147
  %v1228 = vpop.f32.mrb[0].mxu0
  %v1229 = vadd.f32 0.0, %v1228
  %v1230 = vpop.f32.mrb[0].mxu0
  %1231 = vmatprep.mubr.f32.mxu0 0.0
  %1232 = vmatmul.mubr.f32.gmra.mrb[0].mxu0 %v1150
  %v1233 = vpop.f32.mrb[0].mxu0
  %v1234 = vadd.f32 0.0, %v1233
  %v1235 = vpop.f32.mrb[0].mxu0
  %1236 = vdwg.mxu0
  %v1238 = vsel %vm193, %v1219, 0
  %v1241 = vsel %vm193, %v1224, 0
  %v1244 = vsel %vm193, %v1229, 0
  %v1247 = vsel %vm193, %v1234, 0
  %1249 = vmatprep.subr.mxu0 %v53
  %1250 = vmatpush1.msra.mxu0 %v52
  %1251 = vmatprep.subr.mxu0 %v55
  %1252 = vmatpush1.msra.mxu0 %v54
  %1253 = vmatprep.subr.mxu0 0.0
  %1254 = vmatpush1.msra.mxu0 0.0
  %1255 = vmatprep.subr.mxu0 0.0
  %1256 = vmatpush1.msra.mxu0 0.0
  %1257 = vmatprep.subr.mxu0 0.0
  %1258 = vmatpush1.msra.mxu0 0.0
  %1259 = vmatprep.subr.mxu0 0.0
  %1260 = vmatpush1.msra.mxu0 0.0
  %1261 = vmatprep.subr.mxu0 0.0
  %1262 = vmatpush1.msra.mxu0 0.0
  %1263 = vmatprep.subr.mxu0 0.0
  %1264 = vmatpush1.msra.mxu0 0.0
  %1265 = vmatprep.subr.mxu0 0.0
  %1266 = vmatpush1.msra.mxu0 0.0
  %1267 = vmatprep.subr.mxu0 0.0
  %1268 = vmatpush1.msra.mxu0 0.0
  %1269 = vmatprep.subr.mxu0 0.0
  %1270 = vmatpush1.msra.mxu0 0.0
  %1271 = vmatprep.subr.mxu0 0.0
  %1272 = vmatpush1.msra.mxu0 0.0
  %1273 = vmatprep.subr.mxu0 0.0
  %1274 = vmatpush1.msra.mxu0 0.0
  %1275 = vmatprep.subr.mxu0 0.0
  %1276 = vmatpush1.msra.mxu0 0.0
  %1277 = vmatprep.subr.mxu0 0.0
  %1278 = vmatpush1.msra.mxu0 0.0
  %1279 = vmatprep.subr.mxu0 0.0
  %1280 = vmatpush1.msra.mxu0 0.0
  %1281 = vmatprep.subr.mxu0 0.0
  %1282 = vmatpush1.msra.mxu0 0.0
  %1283 = vmatprep.subr.mxu0 0.0
  %1284 = vmatpush1.msra.mxu0 0.0
  %1285 = vmatprep.subr.mxu0 0.0
  %1286 = vmatpush1.msra.mxu0 0.0
  %1287 = vmatprep.subr.mxu0 0.0
  %1288 = vmatpush1.msra.mxu0 0.0
  %1289 = vmatprep.subr.mxu0 0.0
  %1290 = vmatpush1.msra.mxu0 0.0
  %1291 = vmatprep.subr.mxu0 0.0
  %1292 = vmatpush1.msra.mxu0 0.0
  %1293 = vmatprep.subr.mxu0 0.0
  %1294 = vmatpush1.msra.mxu0 0.0
  %1295 = vmatprep.subr.mxu0 0.0
  %1296 = vmatpush1.msra.mxu0 0.0
  %1297 = vmatprep.subr.mxu0 0.0
  %1298 = vmatpush1.msra.mxu0 0.0
  %1299 = vmatprep.subr.mxu0 0.0
  %1300 = vmatpush1.msra.mxu0 0.0
  %1301 = vmatprep.subr.mxu0 0.0
  %1302 = vmatpush1.msra.mxu0 0.0
  %1303 = vmatprep.subr.mxu0 0.0
  %1304 = vmatpush1.msra.mxu0 0.0
  %1305 = vmatprep.subr.mxu0 0.0
  %1306 = vmatpush1.msra.mxu0 0.0
  %1307 = vmatprep.subr.mxu0 0.0
  %1308 = vmatpush1.msra.mxu0 0.0
  %1309 = vmatprep.subr.mxu0 0.0
  %1310 = vmatpush1.msra.mxu0 0.0
  %1311 = vmatprep.subr.mxu0 0.0
  %1312 = vmatpush1.msra.mxu0 0.0
  %1313 = vmatprep.mubr.f32.mxu0 0.0
  %1314 = vmatmul.mubr.f32.gmra.mrb[0].mxu0 %v1238
  %v1315 = vpop.f32.mrb[0].mxu0
  %v1316 = vadd.f32 0.0, %v1315
  %v1317 = vpop.f32.mrb[0].mxu0
  %v1318 = vadd.f32 0.0, %v1317
  %1319 = vmatprep.mubr.f32.mxu0 0.0
  %1320 = vmatmul.mubr.f32.gmra.mrb[0].mxu0 %v1241
  %v1321 = vpop.f32.mrb[0].mxu0
  %v1322 = vadd.f32 0.0, %v1321
  %v1323 = vpop.f32.mrb[0].mxu0
  %v1324 = vadd.f32 0.0, %v1323
  %1325 = vmatprep.mubr.f32.mxu0 0.0
  %1326 = vmatmul.mubr.f32.gmra.mrb[0].mxu0 %v1244
  %v1327 = vpop.f32.mrb[0].mxu0
  %v1328 = vadd.f32 0.0, %v1327
  %v1329 = vpop.f32.mrb[0].mxu0
  %v1330 = vadd.f32 0.0, %v1329
  %1331 = vmatprep.mubr.f32.mxu0 0.0
  %1332 = vmatmul.mubr.f32.gmra.mrb[0].mxu0 %v1247
  %v1333 = vpop.f32.mrb[0].mxu0
  %v1334 = vadd.f32 0.0, %v1333
  %v1335 = vpop.f32.mrb[0].mxu0
  %v1336 = vadd.f32 0.0, %v1335
  %1337 = vdwg.mxu0
  %v1338 = vmul.f32 %v1127, %v1316
  %v1339 = vmul.f32 %v1128, %v1318
  %v1340 = vmul.f32 %v1129, %v1322
  %v1341 = vmul.f32 %v1130, %v1324
  %v1342 = vmul.f32 %v1131, %v1328
  %v1343 = vmul.f32 %v1132, %v1330
  %v1344 = vmul.f32 %v1133, %v1334
  %v1345 = vmul.f32 %v1134, %v1336
  %1346 = vmatprep.subr.mxu0 0.0
  %1347 = vmatpush1.msra.mxu0 %v160
  %1348 = vmatprep.subr.mxu0 0.0
  %1349 = vmatpush1.msra.mxu0 %v161
  %1350 = vmatprep.subr.mxu0 0.0
  %1351 = vmatpush1.msra.mxu0 %v162
  %1352 = vmatprep.subr.mxu0 0.0
  %1353 = vmatpush1.msra.mxu0 %v163
  %1354 = vmatprep.subr.mxu0 0.0
  %1355 = vmatpush1.msra.mxu0 %v164
  %1356 = vmatprep.subr.mxu0 0.0
  %1357 = vmatpush1.msra.mxu0 %v165
  %1358 = vmatprep.subr.mxu0 0.0
  %1359 = vmatpush1.msra.mxu0 %v166
  %1360 = vmatprep.subr.mxu0 0.0
  %1361 = vmatpush1.msra.mxu0 %v167
  %1362 = vmatprep.subr.mxu0 0.0
  %1363 = vmatpush1.msra.mxu0 %v168
  %1364 = vmatprep.subr.mxu0 0.0
  %1365 = vmatpush1.msra.mxu0 %v169
  %1366 = vmatprep.subr.mxu0 0.0
  %1367 = vmatpush1.msra.mxu0 %v170
  %1368 = vmatprep.subr.mxu0 0.0
  %1369 = vmatpush1.msra.mxu0 %v171
  %1370 = vmatprep.subr.mxu0 0.0
  %1371 = vmatpush1.msra.mxu0 %v172
  %1372 = vmatprep.subr.mxu0 0.0
  %1373 = vmatpush1.msra.mxu0 %v173
  %1374 = vmatprep.subr.mxu0 0.0
  %1375 = vmatpush1.msra.mxu0 %v174
  %1376 = vmatprep.subr.mxu0 0.0
  %1377 = vmatpush1.msra.mxu0 %v175
  %1378 = vmatprep.subr.mxu0 0.0
  %1379 = vmatpush1.msra.mxu0 %v176
  %1380 = vmatprep.subr.mxu0 0.0
  %1381 = vmatpush1.msra.mxu0 %v177
  %1382 = vmatprep.subr.mxu0 0.0
  %1383 = vmatpush1.msra.mxu0 %v178
  %1384 = vmatprep.subr.mxu0 0.0
  %1385 = vmatpush1.msra.mxu0 %v179
  %1386 = vmatprep.subr.mxu0 0.0
  %1387 = vmatpush1.msra.mxu0 %v180
  %1388 = vmatprep.subr.mxu0 0.0
  %1389 = vmatpush1.msra.mxu0 %v181
  %1390 = vmatprep.subr.mxu0 0.0
  %1391 = vmatpush1.msra.mxu0 %v182
  %1392 = vmatprep.subr.mxu0 0.0
  %1393 = vmatpush1.msra.mxu0 %v183
  %1394 = vmatprep.subr.mxu0 0.0
  %1395 = vmatpush1.msra.mxu0 %v184
  %1396 = vmatprep.subr.mxu0 0.0
  %1397 = vmatpush1.msra.mxu0 %v185
  %1398 = vmatprep.subr.mxu0 0.0
  %1399 = vmatpush1.msra.mxu0 %v186
  %1400 = vmatprep.subr.mxu0 0.0
  %1401 = vmatpush1.msra.mxu0 %v187
  %1402 = vmatprep.subr.mxu0 0.0
  %1403 = vmatpush1.msra.mxu0 %v188
  %1404 = vmatprep.subr.mxu0 0.0
  %1405 = vmatpush1.msra.mxu0 %v189
  %1406 = vmatprep.subr.mxu0 0.0
  %1407 = vmatpush1.msra.mxu0 %v190
  %1408 = vmatprep.subr.mxu0 0.0
  %1409 = vmatpush1.msra.mxu0 %v191
  %1410 = vmatprep.mubr.f32.mxu0 %v1339
  %1411 = vmatmul.mubr.f32.gmra.mrb[0].mxu0 %v1338
  %v1412 = vpop.f32.mrb[0].mxu0
  %v1413 = vadd.f32 0.0, %v1412
  %v1414 = vpop.f32.mrb[0].mxu0
  %1415 = vmatprep.mubr.f32.mxu0 %v1341
  %1416 = vmatmul.mubr.f32.gmra.mrb[0].mxu0 %v1340
  %v1417 = vpop.f32.mrb[0].mxu0
  %v1418 = vadd.f32 0.0, %v1417
  %v1419 = vpop.f32.mrb[0].mxu0
  %1420 = vmatprep.mubr.f32.mxu0 %v1343
  %1421 = vmatmul.mubr.f32.gmra.mrb[0].mxu0 %v1342
  %v1422 = vpop.f32.mrb[0].mxu0
  %v1423 = vadd.f32 0.0, %v1422
  %v1424 = vpop.f32.mrb[0].mxu0
  %1425 = vmatprep.mubr.f32.mxu0 %v1345
  %1426 = vmatmul.mubr.f32.gmra.mrb[0].mxu0 %v1344
  %v1427 = vpop.f32.mrb[0].mxu0
  %v1428 = vadd.f32 0.0, %v1427
  %v1429 = vpop.f32.mrb[0].mxu0
  %1430 = vdwg.mxu0
  %s1431 = scalar_lea.vmem %s5, 64
  %v1432 = vld [vmem:[%s1431] sm:$0xff]
  %v1433 = vld [vmem:[%s1431 + $0x8] sm:$0xff]
  %v1434 = vld [vmem:[%s1431 + $0x10] sm:$0xff]
  %v1435 = vld [vmem:[%s1431 + $0x18] sm:$0xff]
  %s1436 = scalar_lea.vmem %s6, 64
  %v1437 = vld [vmem:[%s1436] sm:$0xff]
  %v1438 = vld [vmem:[%s1436 + $0x8] sm:$0xff]
  %v1439 = vld [vmem:[%s1436 + $0x10] sm:$0xff]
  %v1440 = vld [vmem:[%s1436 + $0x18] sm:$0xff]
  %1442 = vset.pattern.permute.xlu0 0
  %1443 = vperm.xlu0 %1442, %v1437
  %v1444 = vpop.permute.xlu0 %1443
  %1447 = vset.pattern.permute.xlu0 0
  %1448 = vperm.xlu0 %1447, %v1438
  %v1449 = vpop.permute.xlu0 %1448
  %1452 = vset.pattern.permute.xlu0 0
  %1453 = vperm.xlu0 %1452, %v1439
  %v1454 = vpop.permute.xlu0 %1453
  %1457 = vset.pattern.permute.xlu0 0
  %1458 = vperm.xlu0 %1457, %v1440
  %v1459 = vpop.permute.xlu0 %1458
  %v1462 = vsel %vm1017, %v1432, 0
  %v1465 = vsel %vm1017, %v1433, 0
  %v1468 = vsel %vm1017, %v1434, 0
  %v1471 = vsel %vm1017, %v1435, 0
  %1473 = vmatprep.subr.mxu0 0.0
  %1474 = vmatpush1.msra.mxu0 %v1413
  %1475 = vmatprep.subr.mxu0 0.0
  %1476 = vmatpush1.msra.mxu0 %v1418
  %1477 = vmatprep.subr.mxu0 0.0
  %1478 = vmatpush1.msra.mxu0 %v1423
  %1479 = vmatprep.subr.mxu0 0.0
  %1480 = vmatpush1.msra.mxu0 %v1428
  %1481 = vmatprep.subr.mxu0 0.0
  %1482 = vmatpush1.msra.mxu0 0.0
  %1483 = vmatprep.subr.mxu0 0.0
  %1484 = vmatpush1.msra.mxu0 0.0
  %1485 = vmatprep.subr.mxu0 0.0
  %1486 = vmatpush1.msra.mxu0 0.0
  %1487 = vmatprep.subr.mxu0 0.0
  %1488 = vmatpush1.msra.mxu0 0.0
  %1489 = vmatprep.subr.mxu0 0.0
  %1490 = vmatpush1.msra.mxu0 0.0
  %1491 = vmatprep.subr.mxu0 0.0
  %1492 = vmatpush1.msra.mxu0 0.0
  %1493 = vmatprep.subr.mxu0 0.0
  %1494 = vmatpush1.msra.mxu0 0.0
  %1495 = vmatprep.subr.mxu0 0.0
  %1496 = vmatpush1.msra.mxu0 0.0
  %1497 = vmatprep.subr.mxu0 0.0
  %1498 = vmatpush1.msra.mxu0 0.0
  %1499 = vmatprep.subr.mxu0 0.0
  %1500 = vmatpush1.msra.mxu0 0.0
  %1501 = vmatprep.subr.mxu0 0.0
  %1502 = vmatpush1.msra.mxu0 0.0
  %1503 = vmatprep.subr.mxu0 0.0
  %1504 = vmatpush1.msra.mxu0 0.0
  %1505 = vmatprep.subr.mxu0 0.0
  %1506 = vmatpush1.msra.mxu0 0.0
  %1507 = vmatprep.subr.mxu0 0.0
  %1508 = vmatpush1.msra.mxu0 0.0
  %1509 = vmatprep.subr.mxu0 0.0
  %1510 = vmatpush1.msra.mxu0 0.0
  %1511 = vmatprep.subr.mxu0 0.0
  %1512 = vmatpush1.msra.mxu0 0.0
  %1513 = vmatprep.subr.mxu0 0.0
  %1514 = vmatpush1.msra.mxu0 0.0
  %1515 = vmatprep.subr.mxu0 0.0
  %1516 = vmatpush1.msra.mxu0 0.0
  %1517 = vmatprep.subr.mxu0 0.0
  %1518 = vmatpush1.msra.mxu0 0.0
  %1519 = vmatprep.subr.mxu0 0.0
  %1520 = vmatpush1.msra.mxu0 0.0
  %1521 = vmatprep.subr.mxu0 0.0
  %1522 = vmatpush1.msra.mxu0 0.0
  %1523 = vmatprep.subr.mxu0 0.0
  %1524 = vmatpush1.msra.mxu0 0.0
  %1525 = vmatprep.subr.mxu0 0.0
  %1526 = vmatpush1.msra.mxu0 0.0
  %1527 = vmatprep.subr.mxu0 0.0
  %1528 = vmatpush1.msra.mxu0 0.0
  %1529 = vmatprep.subr.mxu0 0.0
  %1530 = vmatpush1.msra.mxu0 0.0
  %1531 = vmatprep.subr.mxu0 0.0
  %1532 = vmatpush1.msra.mxu0 0.0
  %1533 = vmatprep.subr.mxu0 0.0
  %1534 = vmatpush1.msra.mxu0 0.0
  %1535 = vmatprep.subr.mxu0 0.0
  %1536 = vmatpush1.msra.mxu0 0.0
  %1537 = vmatprep.mubr.f32.mxu0 0.0
  %1538 = vmatmul.mubr.f32.gmra.mrb[0].mxu0 %v1462
  %v1539 = vpop.f32.mrb[0].mxu0
  %v1540 = vadd.f32 %v1444, %v1539
  %v1541 = vpop.f32.mrb[0].mxu0
  %1542 = vmatprep.mubr.f32.mxu0 0.0
  %1543 = vmatmul.mubr.f32.gmra.mrb[0].mxu0 %v1465
  %v1544 = vpop.f32.mrb[0].mxu0
  %v1545 = vadd.f32 %v1449, %v1544
  %v1546 = vpop.f32.mrb[0].mxu0
  %1547 = vmatprep.mubr.f32.mxu0 0.0
  %1548 = vmatmul.mubr.f32.gmra.mrb[0].mxu0 %v1468
  %v1549 = vpop.f32.mrb[0].mxu0
  %v1550 = vadd.f32 %v1454, %v1549
  %v1551 = vpop.f32.mrb[0].mxu0
  %1552 = vmatprep.mubr.f32.mxu0 0.0
  %1553 = vmatmul.mubr.f32.gmra.mrb[0].mxu0 %v1471
  %v1554 = vpop.f32.mrb[0].mxu0
  %v1555 = vadd.f32 %v1459, %v1554
  %v1556 = vpop.f32.mrb[0].mxu0
  %1557 = vdwg.mxu0
  %v1558 = vmax.f32 %v1540, 0.0
  %v1559 = vmax.f32 %v1545, 0.0
  %v1560 = vmax.f32 %v1550, 0.0
  %v1561 = vmax.f32 %v1555, 0.0
  %v1562 = vand.u32 2147483647, %v1540
  %v1563 = vand.u32 2147483647, %v1545
  %v1564 = vand.u32 2147483647, %v1550
  %v1565 = vand.u32 2147483647, %v1555
  %v1566 = vsub.f32 0.0, %v1562
  %v1567 = vsub.f32 0.0, %v1563
  %v1568 = vsub.f32 0.0, %v1564
  %v1569 = vsub.f32 0.0, %v1565
  %v1570 = vmul.f32 %v1566, 1.442695
  %v1571 = vpow.pop %v1570
  %v1572 = vmul.f32 %v1567, 1.442695
  %v1573 = vpow.pop %v1572
  %v1574 = vmul.f32 %v1568, 1.442695
  %v1575 = vpow.pop %v1574
  %v1576 = vmul.f32 %v1569, 1.442695
  %v1577 = vpow.pop %v1576
  %v1578 = vadd.f32 %v1571, 1.0
  %v1579 = vadd.f32 %v1573, 1.0
  %v1580 = vadd.f32 %v1575, 1.0
  %v1581 = vadd.f32 %v1577, 1.0
  %v1582 = vlog2.pop %v1578
  %v1583 = vmul.f32 %v1582, 0.6931472
  %v1584 = vlog2.pop %v1579
  %v1585 = vmul.f32 %v1584, 0.6931472
  %v1586 = vlog2.pop %v1580
  %v1587 = vmul.f32 %v1586, 0.6931472
  %v1588 = vlog2.pop %v1581
  %v1589 = vmul.f32 %v1588, 0.6931472
  %v1590 = vadd.f32 %v1558, %v1583
  %v1591 = vadd.f32 %v1559, %v1585
  %v1592 = vadd.f32 %v1560, %v1587
  %v1593 = vadd.f32 %v1561, %v1589
  %v1594 = vsub.f32 %v1590, 0.6931472
  %v1595 = vsub.f32 %v1591, 0.6931472
  %v1596 = vsub.f32 %v1592, 0.6931472
  %v1597 = vsub.f32 %v1593, 0.6931472
  %s1598 = scalar_lea.vmem %s5, 96
  %v1599 = vld [vmem:[%s1598] sm:$0xff]
  %v1600 = vld [vmem:[%s1598 + $0x8] sm:$0xff]
  %v1601 = vld [vmem:[%s1598 + $0x10] sm:$0xff]
  %v1602 = vld [vmem:[%s1598 + $0x18] sm:$0xff]
  %s1603 = scalar_lea.vmem %s6, 96
  %v1604 = vld [vmem:[%s1603] sm:$0xff]
  %v1605 = vld [vmem:[%s1603 + $0x8] sm:$0xff]
  %v1606 = vld [vmem:[%s1603 + $0x10] sm:$0xff]
  %v1607 = vld [vmem:[%s1603 + $0x18] sm:$0xff]
  %1609 = vset.pattern.permute.xlu0 0
  %1610 = vperm.xlu0 %1609, %v1604
  %v1611 = vpop.permute.xlu0 %1610
  %1614 = vset.pattern.permute.xlu0 0
  %1615 = vperm.xlu0 %1614, %v1605
  %v1616 = vpop.permute.xlu0 %1615
  %1619 = vset.pattern.permute.xlu0 0
  %1620 = vperm.xlu0 %1619, %v1606
  %v1621 = vpop.permute.xlu0 %1620
  %1624 = vset.pattern.permute.xlu0 0
  %1625 = vperm.xlu0 %1624, %v1607
  %v1626 = vpop.permute.xlu0 %1625
  %v1629 = vsel %vm1017, %v1599, 0
  %v1632 = vsel %vm1017, %v1600, 0
  %v1635 = vsel %vm1017, %v1601, 0
  %v1638 = vsel %vm1017, %v1602, 0
  %1640 = vmatprep.subr.mxu0 0.0
  %1641 = vmatpush1.msra.mxu0 %v1594
  %1642 = vmatprep.subr.mxu0 0.0
  %1643 = vmatpush1.msra.mxu0 %v1595
  %1644 = vmatprep.subr.mxu0 0.0
  %1645 = vmatpush1.msra.mxu0 %v1596
  %1646 = vmatprep.subr.mxu0 0.0
  %1647 = vmatpush1.msra.mxu0 %v1597
  %1648 = vmatprep.subr.mxu0 0.0
  %1649 = vmatpush1.msra.mxu0 0.0
  %1650 = vmatprep.subr.mxu0 0.0
  %1651 = vmatpush1.msra.mxu0 0.0
  %1652 = vmatprep.subr.mxu0 0.0
  %1653 = vmatpush1.msra.mxu0 0.0
  %1654 = vmatprep.subr.mxu0 0.0
  %1655 = vmatpush1.msra.mxu0 0.0
  %1656 = vmatprep.subr.mxu0 0.0
  %1657 = vmatpush1.msra.mxu0 0.0
  %1658 = vmatprep.subr.mxu0 0.0
  %1659 = vmatpush1.msra.mxu0 0.0
  %1660 = vmatprep.subr.mxu0 0.0
  %1661 = vmatpush1.msra.mxu0 0.0
  %1662 = vmatprep.subr.mxu0 0.0
  %1663 = vmatpush1.msra.mxu0 0.0
  %1664 = vmatprep.subr.mxu0 0.0
  %1665 = vmatpush1.msra.mxu0 0.0
  %1666 = vmatprep.subr.mxu0 0.0
  %1667 = vmatpush1.msra.mxu0 0.0
  %1668 = vmatprep.subr.mxu0 0.0
  %1669 = vmatpush1.msra.mxu0 0.0
  %1670 = vmatprep.subr.mxu0 0.0
  %1671 = vmatpush1.msra.mxu0 0.0
  %1672 = vmatprep.subr.mxu0 0.0
  %1673 = vmatpush1.msra.mxu0 0.0
  %1674 = vmatprep.subr.mxu0 0.0
  %1675 = vmatpush1.msra.mxu0 0.0
  %1676 = vmatprep.subr.mxu0 0.0
  %1677 = vmatpush1.msra.mxu0 0.0
  %1678 = vmatprep.subr.mxu0 0.0
  %1679 = vmatpush1.msra.mxu0 0.0
  %1680 = vmatprep.subr.mxu0 0.0
  %1681 = vmatpush1.msra.mxu0 0.0
  %1682 = vmatprep.subr.mxu0 0.0
  %1683 = vmatpush1.msra.mxu0 0.0
  %1684 = vmatprep.subr.mxu0 0.0
  %1685 = vmatpush1.msra.mxu0 0.0
  %1686 = vmatprep.subr.mxu0 0.0
  %1687 = vmatpush1.msra.mxu0 0.0
  %1688 = vmatprep.subr.mxu0 0.0
  %1689 = vmatpush1.msra.mxu0 0.0
  %1690 = vmatprep.subr.mxu0 0.0
  %1691 = vmatpush1.msra.mxu0 0.0
  %1692 = vmatprep.subr.mxu0 0.0
  %1693 = vmatpush1.msra.mxu0 0.0
  %1694 = vmatprep.subr.mxu0 0.0
  %1695 = vmatpush1.msra.mxu0 0.0
  %1696 = vmatprep.subr.mxu0 0.0
  %1697 = vmatpush1.msra.mxu0 0.0
  %1698 = vmatprep.subr.mxu0 0.0
  %1699 = vmatpush1.msra.mxu0 0.0
  %1700 = vmatprep.subr.mxu0 0.0
  %1701 = vmatpush1.msra.mxu0 0.0
  %1702 = vmatprep.subr.mxu0 0.0
  %1703 = vmatpush1.msra.mxu0 0.0
  %1704 = vmatprep.mubr.f32.mxu0 0.0
  %1705 = vmatmul.mubr.f32.gmra.mrb[0].mxu0 %v1629
  %v1706 = vpop.f32.mrb[0].mxu0
  %v1707 = vadd.f32 %v1611, %v1706
  %v1708 = vpop.f32.mrb[0].mxu0
  %1709 = vmatprep.mubr.f32.mxu0 0.0
  %1710 = vmatmul.mubr.f32.gmra.mrb[0].mxu0 %v1632
  %v1711 = vpop.f32.mrb[0].mxu0
  %v1712 = vadd.f32 %v1616, %v1711
  %v1713 = vpop.f32.mrb[0].mxu0
  %1714 = vmatprep.mubr.f32.mxu0 0.0
  %1715 = vmatmul.mubr.f32.gmra.mrb[0].mxu0 %v1635
  %v1716 = vpop.f32.mrb[0].mxu0
  %v1717 = vadd.f32 %v1621, %v1716
  %v1718 = vpop.f32.mrb[0].mxu0
  %1719 = vmatprep.mubr.f32.mxu0 0.0
  %1720 = vmatmul.mubr.f32.gmra.mrb[0].mxu0 %v1638
  %v1721 = vpop.f32.mrb[0].mxu0
  %v1722 = vadd.f32 %v1626, %v1721
  %v1723 = vpop.f32.mrb[0].mxu0
  %1724 = vdwg.mxu0
  %v1725 = vadd.f32 %v775, %v1707
  %v1726 = vadd.f32 %v776, %v1712
  %v1727 = vadd.f32 %v777, %v1717
  %v1728 = vadd.f32 %v778, %v1722
  %s1729 = scalar_lea.vmem %s4, 32
  %v1730 = vld [vmem:[%s1729] sm:$0xff]
  %v1731 = vld [vmem:[%s1729 + $0x8] sm:$0xff]
  %v1732 = vld [vmem:[%s1729 + $0x10] sm:$0xff]
  %v1733 = vld [vmem:[%s1729 + $0x18] sm:$0xff]
  %s1734 = scalar_lea.vmem %s6, 128
  %v1735 = vld [vmem:[%s1734] sm:$0xff]
  %v1736 = vld [vmem:[%s1734 + $0x8] sm:$0xff]
  %v1737 = vld [vmem:[%s1734 + $0x10] sm:$0xff]
  %v1738 = vld [vmem:[%s1734 + $0x18] sm:$0xff]
  %1740 = vset.pattern.permute.xlu0 0
  %1741 = vperm.xlu0 %1740, %v1735
  %v1742 = vpop.permute.xlu0 %1741
  %1745 = vset.pattern.permute.xlu0 0
  %1746 = vperm.xlu0 %1745, %v1736
  %v1747 = vpop.permute.xlu0 %1746
  %1750 = vset.pattern.permute.xlu0 0
  %1751 = vperm.xlu0 %1750, %v1737
  %v1752 = vpop.permute.xlu0 %1751
  %1755 = vset.pattern.permute.xlu0 0
  %1756 = vperm.xlu0 %1755, %v1738
  %v1757 = vpop.permute.xlu0 %1756
  %v1760 = vsel %vm193, %v1730, 0
  %v1763 = vsel %vm193, %v1731, 0
  %v1766 = vsel %vm193, %v1732, 0
  %v1769 = vsel %vm193, %v1733, 0
  %1771 = vmatprep.subr.mxu0 %v556
  %1772 = vmatpush1.msra.mxu0 %v554
  %1773 = vmatprep.subr.mxu0 %v560
  %1774 = vmatpush1.msra.mxu0 %v558
  %1775 = vmatprep.subr.mxu0 0.0
  %1776 = vmatpush1.msra.mxu0 0.0
  %1777 = vmatprep.subr.mxu0 0.0
  %1778 = vmatpush1.msra.mxu0 0.0
  %1779 = vmatprep.subr.mxu0 0.0
  %1780 = vmatpush1.msra.mxu0 0.0
  %1781 = vmatprep.subr.mxu0 0.0
  %1782 = vmatpush1.msra.mxu0 0.0
  %1783 = vmatprep.subr.mxu0 0.0
  %1784 = vmatpush1.msra.mxu0 0.0
  %1785 = vmatprep.subr.mxu0 0.0
  %1786 = vmatpush1.msra.mxu0 0.0
  %1787 = vmatprep.subr.mxu0 0.0
  %1788 = vmatpush1.msra.mxu0 0.0
  %1789 = vmatprep.subr.mxu0 0.0
  %1790 = vmatpush1.msra.mxu0 0.0
  %1791 = vmatprep.subr.mxu0 0.0
  %1792 = vmatpush1.msra.mxu0 0.0
  %1793 = vmatprep.subr.mxu0 0.0
  %1794 = vmatpush1.msra.mxu0 0.0
  %1795 = vmatprep.subr.mxu0 0.0
  %1796 = vmatpush1.msra.mxu0 0.0
  %1797 = vmatprep.subr.mxu0 0.0
  %1798 = vmatpush1.msra.mxu0 0.0
  %1799 = vmatprep.subr.mxu0 0.0
  %1800 = vmatpush1.msra.mxu0 0.0
  %1801 = vmatprep.subr.mxu0 0.0
  %1802 = vmatpush1.msra.mxu0 0.0
  %1803 = vmatprep.subr.mxu0 0.0
  %1804 = vmatpush1.msra.mxu0 0.0
  %1805 = vmatprep.subr.mxu0 0.0
  %1806 = vmatpush1.msra.mxu0 0.0
  %1807 = vmatprep.subr.mxu0 0.0
  %1808 = vmatpush1.msra.mxu0 0.0
  %1809 = vmatprep.subr.mxu0 0.0
  %1810 = vmatpush1.msra.mxu0 0.0
  %1811 = vmatprep.subr.mxu0 0.0
  %1812 = vmatpush1.msra.mxu0 0.0
  %1813 = vmatprep.subr.mxu0 0.0
  %1814 = vmatpush1.msra.mxu0 0.0
  %1815 = vmatprep.subr.mxu0 0.0
  %1816 = vmatpush1.msra.mxu0 0.0
  %1817 = vmatprep.subr.mxu0 0.0
  %1818 = vmatpush1.msra.mxu0 0.0
  %1819 = vmatprep.subr.mxu0 0.0
  %1820 = vmatpush1.msra.mxu0 0.0
  %1821 = vmatprep.subr.mxu0 0.0
  %1822 = vmatpush1.msra.mxu0 0.0
  %1823 = vmatprep.subr.mxu0 0.0
  %1824 = vmatpush1.msra.mxu0 0.0
  %1825 = vmatprep.subr.mxu0 0.0
  %1826 = vmatpush1.msra.mxu0 0.0
  %1827 = vmatprep.subr.mxu0 0.0
  %1828 = vmatpush1.msra.mxu0 0.0
  %1829 = vmatprep.subr.mxu0 0.0
  %1830 = vmatpush1.msra.mxu0 0.0
  %1831 = vmatprep.subr.mxu0 0.0
  %1832 = vmatpush1.msra.mxu0 0.0
  %1833 = vmatprep.subr.mxu0 0.0
  %1834 = vmatpush1.msra.mxu0 0.0
  %1835 = vmatprep.mubr.f32.mxu0 0.0
  %1836 = vmatmul.mubr.f32.gmra.mrb[0].mxu0 %v1760
  %v1837 = vpop.f32.mrb[0].mxu0
  %v1838 = vadd.f32 %v1742, %v1837
  %v1839 = vpop.f32.mrb[0].mxu0
  %v1840 = vadd.f32 %v1742, %v1839
  %1841 = vmatprep.mubr.f32.mxu0 0.0
  %1842 = vmatmul.mubr.f32.gmra.mrb[0].mxu0 %v1763
  %v1843 = vpop.f32.mrb[0].mxu0
  %v1844 = vadd.f32 %v1747, %v1843
  %v1845 = vpop.f32.mrb[0].mxu0
  %v1846 = vadd.f32 %v1747, %v1845
  %1847 = vmatprep.mubr.f32.mxu0 0.0
  %1848 = vmatmul.mubr.f32.gmra.mrb[0].mxu0 %v1766
  %v1849 = vpop.f32.mrb[0].mxu0
  %v1850 = vadd.f32 %v1752, %v1849
  %v1851 = vpop.f32.mrb[0].mxu0
  %v1852 = vadd.f32 %v1752, %v1851
  %1853 = vmatprep.mubr.f32.mxu0 0.0
  %1854 = vmatmul.mubr.f32.gmra.mrb[0].mxu0 %v1769
  %v1855 = vpop.f32.mrb[0].mxu0
  %v1856 = vadd.f32 %v1757, %v1855
  %v1857 = vpop.f32.mrb[0].mxu0
  %v1858 = vadd.f32 %v1757, %v1857
  %1859 = vdwg.mxu0
  %v1860 = vmax.f32 %v1838, 0.0
  %v1861 = vmax.f32 %v1840, 0.0
  %v1862 = vmax.f32 %v1844, 0.0
  %v1863 = vmax.f32 %v1846, 0.0
  %v1864 = vmax.f32 %v1850, 0.0
  %v1865 = vmax.f32 %v1852, 0.0
  %v1866 = vmax.f32 %v1856, 0.0
  %v1867 = vmax.f32 %v1858, 0.0
  %v1868 = vand.u32 2147483647, %v1838
  %v1869 = vand.u32 2147483647, %v1840
  %v1870 = vand.u32 2147483647, %v1844
  %v1871 = vand.u32 2147483647, %v1846
  %v1872 = vand.u32 2147483647, %v1850
  %v1873 = vand.u32 2147483647, %v1852
  %v1874 = vand.u32 2147483647, %v1856
  %v1875 = vand.u32 2147483647, %v1858
  %v1876 = vsub.f32 0.0, %v1868
  %v1877 = vsub.f32 0.0, %v1869
  %v1878 = vsub.f32 0.0, %v1870
  %v1879 = vsub.f32 0.0, %v1871
  %v1880 = vsub.f32 0.0, %v1872
  %v1881 = vsub.f32 0.0, %v1873
  %v1882 = vsub.f32 0.0, %v1874
  %v1883 = vsub.f32 0.0, %v1875
  %v1884 = vmul.f32 %v1876, 1.442695
  %v1885 = vpow.pop %v1884
  %v1886 = vmul.f32 %v1877, 1.442695
  %v1887 = vpow.pop %v1886
  %v1888 = vmul.f32 %v1878, 1.442695
  %v1889 = vpow.pop %v1888
  %v1890 = vmul.f32 %v1879, 1.442695
  %v1891 = vpow.pop %v1890
  %v1892 = vmul.f32 %v1880, 1.442695
  %v1893 = vpow.pop %v1892
  %v1894 = vmul.f32 %v1881, 1.442695
  %v1895 = vpow.pop %v1894
  %v1896 = vmul.f32 %v1882, 1.442695
  %v1897 = vpow.pop %v1896
  %v1898 = vmul.f32 %v1883, 1.442695
  %v1899 = vpow.pop %v1898
  %v1900 = vadd.f32 %v1885, 1.0
  %v1901 = vadd.f32 %v1887, 1.0
  %v1902 = vadd.f32 %v1889, 1.0
  %v1903 = vadd.f32 %v1891, 1.0
  %v1904 = vadd.f32 %v1893, 1.0
  %v1905 = vadd.f32 %v1895, 1.0
  %v1906 = vadd.f32 %v1897, 1.0
  %v1907 = vadd.f32 %v1899, 1.0
  %v1908 = vlog2.pop %v1900
  %v1909 = vmul.f32 %v1908, 0.6931472
  %v1910 = vlog2.pop %v1901
  %v1911 = vmul.f32 %v1910, 0.6931472
  %v1912 = vlog2.pop %v1902
  %v1913 = vmul.f32 %v1912, 0.6931472
  %v1914 = vlog2.pop %v1903
  %v1915 = vmul.f32 %v1914, 0.6931472
  %v1916 = vlog2.pop %v1904
  %v1917 = vmul.f32 %v1916, 0.6931472
  %v1918 = vlog2.pop %v1905
  %v1919 = vmul.f32 %v1918, 0.6931472
  %v1920 = vlog2.pop %v1906
  %v1921 = vmul.f32 %v1920, 0.6931472
  %v1922 = vlog2.pop %v1907
  %v1923 = vmul.f32 %v1922, 0.6931472
  %v1924 = vadd.f32 %v1860, %v1909
  %v1925 = vadd.f32 %v1861, %v1911
  %v1926 = vadd.f32 %v1862, %v1913
  %v1927 = vadd.f32 %v1863, %v1915
  %v1928 = vadd.f32 %v1864, %v1917
  %v1929 = vadd.f32 %v1865, %v1919
  %v1930 = vadd.f32 %v1866, %v1921
  %v1931 = vadd.f32 %v1867, %v1923
  %v1932 = vsub.f32 %v1924, 0.6931472
  %v1933 = vsub.f32 %v1925, 0.6931472
  %v1934 = vsub.f32 %v1926, 0.6931472
  %v1935 = vsub.f32 %v1927, 0.6931472
  %v1936 = vsub.f32 %v1928, 0.6931472
  %v1937 = vsub.f32 %v1929, 0.6931472
  %v1938 = vsub.f32 %v1930, 0.6931472
  %v1939 = vsub.f32 %v1931, 0.6931472
  %s1940 = scalar_lea.vmem %s5, 128
  %v1941 = vld [vmem:[%s1940] sm:$0xff]
  %v1942 = vld [vmem:[%s1940 + $0x8] sm:$0xff]
  %v1943 = vld [vmem:[%s1940 + $0x10] sm:$0xff]
  %v1944 = vld [vmem:[%s1940 + $0x18] sm:$0xff]
  %s1945 = scalar_lea.vmem %s6, 160
  %v1946 = vld [vmem:[%s1945] sm:$0xff]
  %v1947 = vld [vmem:[%s1945 + $0x8] sm:$0xff]
  %v1948 = vld [vmem:[%s1945 + $0x10] sm:$0xff]
  %v1949 = vld [vmem:[%s1945 + $0x18] sm:$0xff]
  %1951 = vset.pattern.permute.xlu0 0
  %1952 = vperm.xlu0 %1951, %v1946
  %v1953 = vpop.permute.xlu0 %1952
  %1956 = vset.pattern.permute.xlu0 0
  %1957 = vperm.xlu0 %1956, %v1947
  %v1958 = vpop.permute.xlu0 %1957
  %1961 = vset.pattern.permute.xlu0 0
  %1962 = vperm.xlu0 %1961, %v1948
  %v1963 = vpop.permute.xlu0 %1962
  %1966 = vset.pattern.permute.xlu0 0
  %1967 = vperm.xlu0 %1966, %v1949
  %v1968 = vpop.permute.xlu0 %1967
  %v1971 = vsel %vm1017, %v1941, 0
  %v1974 = vsel %vm1017, %v1942, 0
  %v1977 = vsel %vm1017, %v1943, 0
  %v1980 = vsel %vm1017, %v1944, 0
  %1982 = vmatprep.subr.mxu0 %v1933
  %1983 = vmatpush1.msra.mxu0 %v1932
  %1984 = vmatprep.subr.mxu0 %v1935
  %1985 = vmatpush1.msra.mxu0 %v1934
  %1986 = vmatprep.subr.mxu0 %v1937
  %1987 = vmatpush1.msra.mxu0 %v1936
  %1988 = vmatprep.subr.mxu0 %v1939
  %1989 = vmatpush1.msra.mxu0 %v1938
  %1990 = vmatprep.subr.mxu0 0.0
  %1991 = vmatpush1.msra.mxu0 0.0
  %1992 = vmatprep.subr.mxu0 0.0
  %1993 = vmatpush1.msra.mxu0 0.0
  %1994 = vmatprep.subr.mxu0 0.0
  %1995 = vmatpush1.msra.mxu0 0.0
  %1996 = vmatprep.subr.mxu0 0.0
  %1997 = vmatpush1.msra.mxu0 0.0
  %1998 = vmatprep.subr.mxu0 0.0
  %1999 = vmatpush1.msra.mxu0 0.0
  %2000 = vmatprep.subr.mxu0 0.0
  %2001 = vmatpush1.msra.mxu0 0.0
  %2002 = vmatprep.subr.mxu0 0.0
  %2003 = vmatpush1.msra.mxu0 0.0
  %2004 = vmatprep.subr.mxu0 0.0
  %2005 = vmatpush1.msra.mxu0 0.0
  %2006 = vmatprep.subr.mxu0 0.0
  %2007 = vmatpush1.msra.mxu0 0.0
  %2008 = vmatprep.subr.mxu0 0.0
  %2009 = vmatpush1.msra.mxu0 0.0
  %2010 = vmatprep.subr.mxu0 0.0
  %2011 = vmatpush1.msra.mxu0 0.0
  %2012 = vmatprep.subr.mxu0 0.0
  %2013 = vmatpush1.msra.mxu0 0.0
  %2014 = vmatprep.subr.mxu0 0.0
  %2015 = vmatpush1.msra.mxu0 0.0
  %2016 = vmatprep.subr.mxu0 0.0
  %2017 = vmatpush1.msra.mxu0 0.0
  %2018 = vmatprep.subr.mxu0 0.0
  %2019 = vmatpush1.msra.mxu0 0.0
  %2020 = vmatprep.subr.mxu0 0.0
  %2021 = vmatpush1.msra.mxu0 0.0
  %2022 = vmatprep.subr.mxu0 0.0
  %2023 = vmatpush1.msra.mxu0 0.0
  %2024 = vmatprep.subr.mxu0 0.0
  %2025 = vmatpush1.msra.mxu0 0.0
  %2026 = vmatprep.subr.mxu0 0.0
  %2027 = vmatpush1.msra.mxu0 0.0
  %2028 = vmatprep.subr.mxu0 0.0
  %2029 = vmatpush1.msra.mxu0 0.0
  %2030 = vmatprep.subr.mxu0 0.0
  %2031 = vmatpush1.msra.mxu0 0.0
  %2032 = vmatprep.subr.mxu0 0.0
  %2033 = vmatpush1.msra.mxu0 0.0
  %2034 = vmatprep.subr.mxu0 0.0
  %2035 = vmatpush1.msra.mxu0 0.0
  %2036 = vmatprep.subr.mxu0 0.0
  %2037 = vmatpush1.msra.mxu0 0.0
  %2038 = vmatprep.subr.mxu0 0.0
  %2039 = vmatpush1.msra.mxu0 0.0
  %2040 = vmatprep.subr.mxu0 0.0
  %2041 = vmatpush1.msra.mxu0 0.0
  %2042 = vmatprep.subr.mxu0 0.0
  %2043 = vmatpush1.msra.mxu0 0.0
  %2044 = vmatprep.subr.mxu0 0.0
  %2045 = vmatpush1.msra.mxu0 0.0
  %2046 = vmatprep.mubr.f32.mxu0 0.0
  %2047 = vmatmul.mubr.f32.gmra.mrb[0].mxu0 %v1971
  %v2048 = vpop.f32.mrb[0].mxu0
  %v2049 = vadd.f32 %v1953, %v2048
  %v2050 = vpop.f32.mrb[0].mxu0
  %v2051 = vadd.f32 %v1953, %v2050
  %2052 = vmatprep.mubr.f32.mxu0 0.0
  %2053 = vmatmul.mubr.f32.gmra.mrb[0].mxu0 %v1974
  %v2054 = vpop.f32.mrb[0].mxu0
  %v2055 = vadd.f32 %v1958, %v2054
  %v2056 = vpop.f32.mrb[0].mxu0
  %v2057 = vadd.f32 %v1958, %v2056
  %2058 = vmatprep.mubr.f32.mxu0 0.0
  %2059 = vmatmul.mubr.f32.gmra.mrb[0].mxu0 %v1977
  %v2060 = vpop.f32.mrb[0].mxu0
  %v2061 = vadd.f32 %v1963, %v2060
  %v2062 = vpop.f32.mrb[0].mxu0
  %v2063 = vadd.f32 %v1963, %v2062
  %2064 = vmatprep.mubr.f32.mxu0 0.0
  %2065 = vmatmul.mubr.f32.gmra.mrb[0].mxu0 %v1980
  %v2066 = vpop.f32.mrb[0].mxu0
  %v2067 = vadd.f32 %v1968, %v2066
  %v2068 = vpop.f32.mrb[0].mxu0
  %v2069 = vadd.f32 %v1968, %v2068
  %2070 = vdwg.mxu0
  %v2071 = vmul.f32 %v2049, %v1122
  %v2072 = vmul.f32 %v2051, %v1126
  %v2073 = vmul.f32 %v2055, %v1122
  %v2074 = vmul.f32 %v2057, %v1126
  %v2075 = vmul.f32 %v2061, %v1122
  %v2076 = vmul.f32 %v2063, %v1126
  %v2077 = vmul.f32 %v2067, %v1122
  %v2078 = vmul.f32 %v2069, %v1126
  %s2079 = scalar_lea.vmem %s5, 160
  %v2080 = vld [vmem:[%s2079] sm:$0xff]
  %v2081 = vld [vmem:[%s2079 + $0x8] sm:$0xff]
  %v2082 = vld [vmem:[%s2079 + $0x10] sm:$0xff]
  %v2083 = vld [vmem:[%s2079 + $0x18] sm:$0xff]
  %v2085 = vsel %vm1017, %v2080, 0
  %v2088 = vsel %vm1017, %v2081, 0
  %v2091 = vsel %vm1017, %v2082, 0
  %v2094 = vsel %vm1017, %v2083, 0
  %2096 = vmatprep.subr.mxu0 0.0
  %2097 = vmatpush1.msra.mxu0 %v1725
  %2098 = vmatprep.subr.mxu0 0.0
  %2099 = vmatpush1.msra.mxu0 %v1726
  %2100 = vmatprep.subr.mxu0 0.0
  %2101 = vmatpush1.msra.mxu0 %v1727
  %2102 = vmatprep.subr.mxu0 0.0
  %2103 = vmatpush1.msra.mxu0 %v1728
  %2104 = vmatprep.subr.mxu0 0.0
  %2105 = vmatpush1.msra.mxu0 0.0
  %2106 = vmatprep.subr.mxu0 0.0
  %2107 = vmatpush1.msra.mxu0 0.0
  %2108 = vmatprep.subr.mxu0 0.0
  %2109 = vmatpush1.msra.mxu0 0.0
  %2110 = vmatprep.subr.mxu0 0.0
  %2111 = vmatpush1.msra.mxu0 0.0
  %2112 = vmatprep.subr.mxu0 0.0
  %2113 = vmatpush1.msra.mxu0 0.0
  %2114 = vmatprep.subr.mxu0 0.0
  %2115 = vmatpush1.msra.mxu0 0.0
  %2116 = vmatprep.subr.mxu0 0.0
  %2117 = vmatpush1.msra.mxu0 0.0
  %2118 = vmatprep.subr.mxu0 0.0
  %2119 = vmatpush1.msra.mxu0 0.0
  %2120 = vmatprep.subr.mxu0 0.0
  %2121 = vmatpush1.msra.mxu0 0.0
  %2122 = vmatprep.subr.mxu0 0.0
  %2123 = vmatpush1.msra.mxu0 0.0
  %2124 = vmatprep.subr.mxu0 0.0
  %2125 = vmatpush1.msra.mxu0 0.0
  %2126 = vmatprep.subr.mxu0 0.0
  %2127 = vmatpush1.msra.mxu0 0.0
  %2128 = vmatprep.subr.mxu0 0.0
  %2129 = vmatpush1.msra.mxu0 0.0
  %2130 = vmatprep.subr.mxu0 0.0
  %2131 = vmatpush1.msra.mxu0 0.0
  %2132 = vmatprep.subr.mxu0 0.0
  %2133 = vmatpush1.msra.mxu0 0.0
  %2134 = vmatprep.subr.mxu0 0.0
  %2135 = vmatpush1.msra.mxu0 0.0
  %2136 = vmatprep.subr.mxu0 0.0
  %2137 = vmatpush1.msra.mxu0 0.0
  %2138 = vmatprep.subr.mxu0 0.0
  %2139 = vmatpush1.msra.mxu0 0.0
  %2140 = vmatprep.subr.mxu0 0.0
  %2141 = vmatpush1.msra.mxu0 0.0
  %2142 = vmatprep.subr.mxu0 0.0
  %2143 = vmatpush1.msra.mxu0 0.0
  %2144 = vmatprep.subr.mxu0 0.0
  %2145 = vmatpush1.msra.mxu0 0.0
  %2146 = vmatprep.subr.mxu0 0.0
  %2147 = vmatpush1.msra.mxu0 0.0
  %2148 = vmatprep.subr.mxu0 0.0
  %2149 = vmatpush1.msra.mxu0 0.0
  %2150 = vmatprep.subr.mxu0 0.0
  %2151 = vmatpush1.msra.mxu0 0.0
  %2152 = vmatprep.subr.mxu0 0.0
  %2153 = vmatpush1.msra.mxu0 0.0
  %2154 = vmatprep.subr.mxu0 0.0
  %2155 = vmatpush1.msra.mxu0 0.0
  %2156 = vmatprep.subr.mxu0 0.0
  %2157 = vmatpush1.msra.mxu0 0.0
  %2158 = vmatprep.subr.mxu0 0.0
  %2159 = vmatpush1.msra.mxu0 0.0
  %2160 = vmatprep.mubr.f32.mxu0 0.0
  %2161 = vmatmul.mubr.f32.gmra.mrb[0].mxu0 %v2085
  %v2162 = vpop.f32.mrb[0].mxu0
  %v2163 = vadd.f32 0.0, %v2162
  %v2164 = vpop.f32.mrb[0].mxu0
  %2165 = vmatprep.mubr.f32.mxu0 0.0
  %2166 = vmatmul.mubr.f32.gmra.mrb[0].mxu0 %v2088
  %v2167 = vpop.f32.mrb[0].mxu0
  %v2168 = vadd.f32 0.0, %v2167
  %v2169 = vpop.f32.mrb[0].mxu0
  %2170 = vmatprep.mubr.f32.mxu0 0.0
  %2171 = vmatmul.mubr.f32.gmra.mrb[0].mxu0 %v2091
  %v2172 = vpop.f32.mrb[0].mxu0
  %v2173 = vadd.f32 0.0, %v2172
  %v2174 = vpop.f32.mrb[0].mxu0
  %2175 = vmatprep.mubr.f32.mxu0 0.0
  %2176 = vmatmul.mubr.f32.gmra.mrb[0].mxu0 %v2094
  %v2177 = vpop.f32.mrb[0].mxu0
  %v2178 = vadd.f32 0.0, %v2177
  %v2179 = vpop.f32.mrb[0].mxu0
  %2180 = vdwg.mxu0
  %v2182 = vsel %vm193, %v2163, 0
  %v2185 = vsel %vm193, %v2168, 0
  %v2188 = vsel %vm193, %v2173, 0
  %v2191 = vsel %vm193, %v2178, 0
  %2193 = vmatprep.subr.mxu0 %v53
  %2194 = vmatpush1.msra.mxu0 %v52
  %2195 = vmatprep.subr.mxu0 %v55
  %2196 = vmatpush1.msra.mxu0 %v54
  %2197 = vmatprep.subr.mxu0 0.0
  %2198 = vmatpush1.msra.mxu0 0.0
  %2199 = vmatprep.subr.mxu0 0.0
  %2200 = vmatpush1.msra.mxu0 0.0
  %2201 = vmatprep.subr.mxu0 0.0
  %2202 = vmatpush1.msra.mxu0 0.0
  %2203 = vmatprep.subr.mxu0 0.0
  %2204 = vmatpush1.msra.mxu0 0.0
  %2205 = vmatprep.subr.mxu0 0.0
  %2206 = vmatpush1.msra.mxu0 0.0
  %2207 = vmatprep.subr.mxu0 0.0
  %2208 = vmatpush1.msra.mxu0 0.0
  %2209 = vmatprep.subr.mxu0 0.0
  %2210 = vmatpush1.msra.mxu0 0.0
  %2211 = vmatprep.subr.mxu0 0.0
  %2212 = vmatpush1.msra.mxu0 0.0
  %2213 = vmatprep.subr.mxu0 0.0
  %2214 = vmatpush1.msra.mxu0 0.0
  %2215 = vmatprep.subr.mxu0 0.0
  %2216 = vmatpush1.msra.mxu0 0.0
  %2217 = vmatprep.subr.mxu0 0.0
  %2218 = vmatpush1.msra.mxu0 0.0
  %2219 = vmatprep.subr.mxu0 0.0
  %2220 = vmatpush1.msra.mxu0 0.0
  %2221 = vmatprep.subr.mxu0 0.0
  %2222 = vmatpush1.msra.mxu0 0.0
  %2223 = vmatprep.subr.mxu0 0.0
  %2224 = vmatpush1.msra.mxu0 0.0
  %2225 = vmatprep.subr.mxu0 0.0
  %2226 = vmatpush1.msra.mxu0 0.0
  %2227 = vmatprep.subr.mxu0 0.0
  %2228 = vmatpush1.msra.mxu0 0.0
  %2229 = vmatprep.subr.mxu0 0.0
  %2230 = vmatpush1.msra.mxu0 0.0
  %2231 = vmatprep.subr.mxu0 0.0
  %2232 = vmatpush1.msra.mxu0 0.0
  %2233 = vmatprep.subr.mxu0 0.0
  %2234 = vmatpush1.msra.mxu0 0.0
  %2235 = vmatprep.subr.mxu0 0.0
  %2236 = vmatpush1.msra.mxu0 0.0
  %2237 = vmatprep.subr.mxu0 0.0
  %2238 = vmatpush1.msra.mxu0 0.0
  %2239 = vmatprep.subr.mxu0 0.0
  %2240 = vmatpush1.msra.mxu0 0.0
  %2241 = vmatprep.subr.mxu0 0.0
  %2242 = vmatpush1.msra.mxu0 0.0
  %2243 = vmatprep.subr.mxu0 0.0
  %2244 = vmatpush1.msra.mxu0 0.0
  %2245 = vmatprep.subr.mxu0 0.0
  %2246 = vmatpush1.msra.mxu0 0.0
  %2247 = vmatprep.subr.mxu0 0.0
  %2248 = vmatpush1.msra.mxu0 0.0
  %2249 = vmatprep.subr.mxu0 0.0
  %2250 = vmatpush1.msra.mxu0 0.0
  %2251 = vmatprep.subr.mxu0 0.0
  %2252 = vmatpush1.msra.mxu0 0.0
  %2253 = vmatprep.subr.mxu0 0.0
  %2254 = vmatpush1.msra.mxu0 0.0
  %2255 = vmatprep.subr.mxu0 0.0
  %2256 = vmatpush1.msra.mxu0 0.0
  %2257 = vmatprep.mubr.f32.mxu0 0.0
  %2258 = vmatmul.mubr.f32.gmra.mrb[0].mxu0 %v2182
  %v2259 = vpop.f32.mrb[0].mxu0
  %v2260 = vadd.f32 0.0, %v2259
  %v2261 = vpop.f32.mrb[0].mxu0
  %v2262 = vadd.f32 0.0, %v2261
  %2263 = vmatprep.mubr.f32.mxu0 0.0
  %2264 = vmatmul.mubr.f32.gmra.mrb[0].mxu0 %v2185
  %v2265 = vpop.f32.mrb[0].mxu0
  %v2266 = vadd.f32 0.0, %v2265
  %v2267 = vpop.f32.mrb[0].mxu0
  %v2268 = vadd.f32 0.0, %v2267
  %2269 = vmatprep.mubr.f32.mxu0 0.0
  %2270 = vmatmul.mubr.f32.gmra.mrb[0].mxu0 %v2188
  %v2271 = vpop.f32.mrb[0].mxu0
  %v2272 = vadd.f32 0.0, %v2271
  %v2273 = vpop.f32.mrb[0].mxu0
  %v2274 = vadd.f32 0.0, %v2273
  %2275 = vmatprep.mubr.f32.mxu0 0.0
  %2276 = vmatmul.mubr.f32.gmra.mrb[0].mxu0 %v2191
  %v2277 = vpop.f32.mrb[0].mxu0
  %v2278 = vadd.f32 0.0, %v2277
  %v2279 = vpop.f32.mrb[0].mxu0
  %v2280 = vadd.f32 0.0, %v2279
  %2281 = vdwg.mxu0
  %v2282 = vmul.f32 %v2071, %v2260
  %v2283 = vmul.f32 %v2072, %v2262
  %v2284 = vmul.f32 %v2073, %v2266
  %v2285 = vmul.f32 %v2074, %v2268
  %v2286 = vmul.f32 %v2075, %v2272
  %v2287 = vmul.f32 %v2076, %v2274
  %v2288 = vmul.f32 %v2077, %v2278
  %v2289 = vmul.f32 %v2078, %v2280
  %2290 = vmatprep.subr.mxu0 0.0
  %2291 = vmatpush1.msra.mxu0 %v160
  %2292 = vmatprep.subr.mxu0 0.0
  %2293 = vmatpush1.msra.mxu0 %v161
  %2294 = vmatprep.subr.mxu0 0.0
  %2295 = vmatpush1.msra.mxu0 %v162
  %2296 = vmatprep.subr.mxu0 0.0
  %2297 = vmatpush1.msra.mxu0 %v163
  %2298 = vmatprep.subr.mxu0 0.0
  %2299 = vmatpush1.msra.mxu0 %v164
  %2300 = vmatprep.subr.mxu0 0.0
  %2301 = vmatpush1.msra.mxu0 %v165
  %2302 = vmatprep.subr.mxu0 0.0
  %2303 = vmatpush1.msra.mxu0 %v166
  %2304 = vmatprep.subr.mxu0 0.0
  %2305 = vmatpush1.msra.mxu0 %v167
  %2306 = vmatprep.subr.mxu0 0.0
  %2307 = vmatpush1.msra.mxu0 %v168
  %2308 = vmatprep.subr.mxu0 0.0
  %2309 = vmatpush1.msra.mxu0 %v169
  %2310 = vmatprep.subr.mxu0 0.0
  %2311 = vmatpush1.msra.mxu0 %v170
  %2312 = vmatprep.subr.mxu0 0.0
  %2313 = vmatpush1.msra.mxu0 %v171
  %2314 = vmatprep.subr.mxu0 0.0
  %2315 = vmatpush1.msra.mxu0 %v172
  %2316 = vmatprep.subr.mxu0 0.0
  %2317 = vmatpush1.msra.mxu0 %v173
  %2318 = vmatprep.subr.mxu0 0.0
  %2319 = vmatpush1.msra.mxu0 %v174
  %2320 = vmatprep.subr.mxu0 0.0
  %2321 = vmatpush1.msra.mxu0 %v175
  %2322 = vmatprep.subr.mxu0 0.0
  %2323 = vmatpush1.msra.mxu0 %v176
  %2324 = vmatprep.subr.mxu0 0.0
  %2325 = vmatpush1.msra.mxu0 %v177
  %2326 = vmatprep.subr.mxu0 0.0
  %2327 = vmatpush1.msra.mxu0 %v178
  %2328 = vmatprep.subr.mxu0 0.0
  %2329 = vmatpush1.msra.mxu0 %v179
  %2330 = vmatprep.subr.mxu0 0.0
  %2331 = vmatpush1.msra.mxu0 %v180
  %2332 = vmatprep.subr.mxu0 0.0
  %2333 = vmatpush1.msra.mxu0 %v181
  %2334 = vmatprep.subr.mxu0 0.0
  %2335 = vmatpush1.msra.mxu0 %v182
  %2336 = vmatprep.subr.mxu0 0.0
  %2337 = vmatpush1.msra.mxu0 %v183
  %2338 = vmatprep.subr.mxu0 0.0
  %2339 = vmatpush1.msra.mxu0 %v184
  %2340 = vmatprep.subr.mxu0 0.0
  %2341 = vmatpush1.msra.mxu0 %v185
  %2342 = vmatprep.subr.mxu0 0.0
  %2343 = vmatpush1.msra.mxu0 %v186
  %2344 = vmatprep.subr.mxu0 0.0
  %2345 = vmatpush1.msra.mxu0 %v187
  %2346 = vmatprep.subr.mxu0 0.0
  %2347 = vmatpush1.msra.mxu0 %v188
  %2348 = vmatprep.subr.mxu0 0.0
  %2349 = vmatpush1.msra.mxu0 %v189
  %2350 = vmatprep.subr.mxu0 0.0
  %2351 = vmatpush1.msra.mxu0 %v190
  %2352 = vmatprep.subr.mxu0 0.0
  %2353 = vmatpush1.msra.mxu0 %v191
  %2354 = vmatprep.mubr.f32.mxu0 %v2283
  %2355 = vmatmul.mubr.f32.gmra.mrb[0].mxu0 %v2282
  %v2356 = vpop.f32.mrb[0].mxu0
  %v2357 = vadd.f32 0.0, %v2356
  %v2358 = vpop.f32.mrb[0].mxu0
  %2359 = vmatprep.mubr.f32.mxu0 %v2285
  %2360 = vmatmul.mubr.f32.gmra.mrb[0].mxu0 %v2284
  %v2361 = vpop.f32.mrb[0].mxu0
  %v2362 = vadd.f32 0.0, %v2361
  %v2363 = vpop.f32.mrb[0].mxu0
  %2364 = vmatprep.mubr.f32.mxu0 %v2287
  %2365 = vmatmul.mubr.f32.gmra.mrb[0].mxu0 %v2286
  %v2366 = vpop.f32.mrb[0].mxu0
  %v2367 = vadd.f32 0.0, %v2366
  %v2368 = vpop.f32.mrb[0].mxu0
  %2369 = vmatprep.mubr.f32.mxu0 %v2289
  %2370 = vmatmul.mubr.f32.gmra.mrb[0].mxu0 %v2288
  %v2371 = vpop.f32.mrb[0].mxu0
  %v2372 = vadd.f32 0.0, %v2371
  %v2373 = vpop.f32.mrb[0].mxu0
  %2374 = vdwg.mxu0
  %s2375 = scalar_lea.vmem %s5, 192
  %v2376 = vld [vmem:[%s2375] sm:$0xff]
  %v2377 = vld [vmem:[%s2375 + $0x8] sm:$0xff]
  %v2378 = vld [vmem:[%s2375 + $0x10] sm:$0xff]
  %v2379 = vld [vmem:[%s2375 + $0x18] sm:$0xff]
  %s2380 = scalar_lea.vmem %s6, 192
  %v2381 = vld [vmem:[%s2380] sm:$0xff]
  %v2382 = vld [vmem:[%s2380 + $0x8] sm:$0xff]
  %v2383 = vld [vmem:[%s2380 + $0x10] sm:$0xff]
  %v2384 = vld [vmem:[%s2380 + $0x18] sm:$0xff]
  %2386 = vset.pattern.permute.xlu0 0
  %2387 = vperm.xlu0 %2386, %v2381
  %v2388 = vpop.permute.xlu0 %2387
  %2391 = vset.pattern.permute.xlu0 0
  %2392 = vperm.xlu0 %2391, %v2382
  %v2393 = vpop.permute.xlu0 %2392
  %2396 = vset.pattern.permute.xlu0 0
  %2397 = vperm.xlu0 %2396, %v2383
  %v2398 = vpop.permute.xlu0 %2397
  %2401 = vset.pattern.permute.xlu0 0
  %2402 = vperm.xlu0 %2401, %v2384
  %v2403 = vpop.permute.xlu0 %2402
  %v2406 = vsel %vm1017, %v2376, 0
  %v2409 = vsel %vm1017, %v2377, 0
  %v2412 = vsel %vm1017, %v2378, 0
  %v2415 = vsel %vm1017, %v2379, 0
  %2417 = vmatprep.subr.mxu0 0.0
  %2418 = vmatpush1.msra.mxu0 %v2357
  %2419 = vmatprep.subr.mxu0 0.0
  %2420 = vmatpush1.msra.mxu0 %v2362
  %2421 = vmatprep.subr.mxu0 0.0
  %2422 = vmatpush1.msra.mxu0 %v2367
  %2423 = vmatprep.subr.mxu0 0.0
  %2424 = vmatpush1.msra.mxu0 %v2372
  %2425 = vmatprep.subr.mxu0 0.0
  %2426 = vmatpush1.msra.mxu0 0.0
  %2427 = vmatprep.subr.mxu0 0.0
  %2428 = vmatpush1.msra.mxu0 0.0
  %2429 = vmatprep.subr.mxu0 0.0
  %2430 = vmatpush1.msra.mxu0 0.0
  %2431 = vmatprep.subr.mxu0 0.0
  %2432 = vmatpush1.msra.mxu0 0.0
  %2433 = vmatprep.subr.mxu0 0.0
  %2434 = vmatpush1.msra.mxu0 0.0
  %2435 = vmatprep.subr.mxu0 0.0
  %2436 = vmatpush1.msra.mxu0 0.0
  %2437 = vmatprep.subr.mxu0 0.0
  %2438 = vmatpush1.msra.mxu0 0.0
  %2439 = vmatprep.subr.mxu0 0.0
  %2440 = vmatpush1.msra.mxu0 0.0
  %2441 = vmatprep.subr.mxu0 0.0
  %2442 = vmatpush1.msra.mxu0 0.0
  %2443 = vmatprep.subr.mxu0 0.0
  %2444 = vmatpush1.msra.mxu0 0.0
  %2445 = vmatprep.subr.mxu0 0.0
  %2446 = vmatpush1.msra.mxu0 0.0
  %2447 = vmatprep.subr.mxu0 0.0
  %2448 = vmatpush1.msra.mxu0 0.0
  %2449 = vmatprep.subr.mxu0 0.0
  %2450 = vmatpush1.msra.mxu0 0.0
  %2451 = vmatprep.subr.mxu0 0.0
  %2452 = vmatpush1.msra.mxu0 0.0
  %2453 = vmatprep.subr.mxu0 0.0
  %2454 = vmatpush1.msra.mxu0 0.0
  %2455 = vmatprep.subr.mxu0 0.0
  %2456 = vmatpush1.msra.mxu0 0.0
  %2457 = vmatprep.subr.mxu0 0.0
  %2458 = vmatpush1.msra.mxu0 0.0
  %2459 = vmatprep.subr.mxu0 0.0
  %2460 = vmatpush1.msra.mxu0 0.0
  %2461 = vmatprep.subr.mxu0 0.0
  %2462 = vmatpush1.msra.mxu0 0.0
  %2463 = vmatprep.subr.mxu0 0.0
  %2464 = vmatpush1.msra.mxu0 0.0
  %2465 = vmatprep.subr.mxu0 0.0
  %2466 = vmatpush1.msra.mxu0 0.0
  %2467 = vmatprep.subr.mxu0 0.0
  %2468 = vmatpush1.msra.mxu0 0.0
  %2469 = vmatprep.subr.mxu0 0.0
  %2470 = vmatpush1.msra.mxu0 0.0
  %2471 = vmatprep.subr.mxu0 0.0
  %2472 = vmatpush1.msra.mxu0 0.0
  %2473 = vmatprep.subr.mxu0 0.0
  %2474 = vmatpush1.msra.mxu0 0.0
  %2475 = vmatprep.subr.mxu0 0.0
  %2476 = vmatpush1.msra.mxu0 0.0
  %2477 = vmatprep.subr.mxu0 0.0
  %2478 = vmatpush1.msra.mxu0 0.0
  %2479 = vmatprep.subr.mxu0 0.0
  %2480 = vmatpush1.msra.mxu0 0.0
  %2481 = vmatprep.mubr.f32.mxu0 0.0
  %2482 = vmatmul.mubr.f32.gmra.mrb[0].mxu0 %v2406
  %v2483 = vpop.f32.mrb[0].mxu0
  %v2484 = vadd.f32 %v2388, %v2483
  %v2485 = vpop.f32.mrb[0].mxu0
  %2486 = vmatprep.mubr.f32.mxu0 0.0
  %2487 = vmatmul.mubr.f32.gmra.mrb[0].mxu0 %v2409
  %v2488 = vpop.f32.mrb[0].mxu0
  %v2489 = vadd.f32 %v2393, %v2488
  %v2490 = vpop.f32.mrb[0].mxu0
  %2491 = vmatprep.mubr.f32.mxu0 0.0
  %2492 = vmatmul.mubr.f32.gmra.mrb[0].mxu0 %v2412
  %v2493 = vpop.f32.mrb[0].mxu0
  %v2494 = vadd.f32 %v2398, %v2493
  %v2495 = vpop.f32.mrb[0].mxu0
  %2496 = vmatprep.mubr.f32.mxu0 0.0
  %2497 = vmatmul.mubr.f32.gmra.mrb[0].mxu0 %v2415
  %v2498 = vpop.f32.mrb[0].mxu0
  %v2499 = vadd.f32 %v2403, %v2498
  %v2500 = vpop.f32.mrb[0].mxu0
  %2501 = vdwg.mxu0
  %v2502 = vmax.f32 %v2484, 0.0
  %v2503 = vmax.f32 %v2489, 0.0
  %v2504 = vmax.f32 %v2494, 0.0
  %v2505 = vmax.f32 %v2499, 0.0
  %v2506 = vand.u32 2147483647, %v2484
  %v2507 = vand.u32 2147483647, %v2489
  %v2508 = vand.u32 2147483647, %v2494
  %v2509 = vand.u32 2147483647, %v2499
  %v2510 = vsub.f32 0.0, %v2506
  %v2511 = vsub.f32 0.0, %v2507
  %v2512 = vsub.f32 0.0, %v2508
  %v2513 = vsub.f32 0.0, %v2509
  %v2514 = vmul.f32 %v2510, 1.442695
  %v2515 = vpow.pop %v2514
  %v2516 = vmul.f32 %v2511, 1.442695
  %v2517 = vpow.pop %v2516
  %v2518 = vmul.f32 %v2512, 1.442695
  %v2519 = vpow.pop %v2518
  %v2520 = vmul.f32 %v2513, 1.442695
  %v2521 = vpow.pop %v2520
  %v2522 = vadd.f32 %v2515, 1.0
  %v2523 = vadd.f32 %v2517, 1.0
  %v2524 = vadd.f32 %v2519, 1.0
  %v2525 = vadd.f32 %v2521, 1.0
  %v2526 = vlog2.pop %v2522
  %v2527 = vmul.f32 %v2526, 0.6931472
  %v2528 = vlog2.pop %v2523
  %v2529 = vmul.f32 %v2528, 0.6931472
  %v2530 = vlog2.pop %v2524
  %v2531 = vmul.f32 %v2530, 0.6931472
  %v2532 = vlog2.pop %v2525
  %v2533 = vmul.f32 %v2532, 0.6931472
  %v2534 = vadd.f32 %v2502, %v2527
  %v2535 = vadd.f32 %v2503, %v2529
  %v2536 = vadd.f32 %v2504, %v2531
  %v2537 = vadd.f32 %v2505, %v2533
  %v2538 = vsub.f32 %v2534, 0.6931472
  %v2539 = vsub.f32 %v2535, 0.6931472
  %v2540 = vsub.f32 %v2536, 0.6931472
  %v2541 = vsub.f32 %v2537, 0.6931472
  %s2542 = scalar_lea.vmem %s5, 224
  %v2543 = vld [vmem:[%s2542] sm:$0xff]
  %v2544 = vld [vmem:[%s2542 + $0x8] sm:$0xff]
  %v2545 = vld [vmem:[%s2542 + $0x10] sm:$0xff]
  %v2546 = vld [vmem:[%s2542 + $0x18] sm:$0xff]
  %s2547 = scalar_lea.vmem %s6, 224
  %v2548 = vld [vmem:[%s2547] sm:$0xff]
  %v2549 = vld [vmem:[%s2547 + $0x8] sm:$0xff]
  %v2550 = vld [vmem:[%s2547 + $0x10] sm:$0xff]
  %v2551 = vld [vmem:[%s2547 + $0x18] sm:$0xff]
  %2553 = vset.pattern.permute.xlu0 0
  %2554 = vperm.xlu0 %2553, %v2548
  %v2555 = vpop.permute.xlu0 %2554
  %2558 = vset.pattern.permute.xlu0 0
  %2559 = vperm.xlu0 %2558, %v2549
  %v2560 = vpop.permute.xlu0 %2559
  %2563 = vset.pattern.permute.xlu0 0
  %2564 = vperm.xlu0 %2563, %v2550
  %v2565 = vpop.permute.xlu0 %2564
  %2568 = vset.pattern.permute.xlu0 0
  %2569 = vperm.xlu0 %2568, %v2551
  %v2570 = vpop.permute.xlu0 %2569
  %v2573 = vsel %vm1017, %v2543, 0
  %v2576 = vsel %vm1017, %v2544, 0
  %v2579 = vsel %vm1017, %v2545, 0
  %v2582 = vsel %vm1017, %v2546, 0
  %2584 = vmatprep.subr.mxu0 0.0
  %2585 = vmatpush1.msra.mxu0 %v2538
  %2586 = vmatprep.subr.mxu0 0.0
  %2587 = vmatpush1.msra.mxu0 %v2539
  %2588 = vmatprep.subr.mxu0 0.0
  %2589 = vmatpush1.msra.mxu0 %v2540
  %2590 = vmatprep.subr.mxu0 0.0
  %2591 = vmatpush1.msra.mxu0 %v2541
  %2592 = vmatprep.subr.mxu0 0.0
  %2593 = vmatpush1.msra.mxu0 0.0
  %2594 = vmatprep.subr.mxu0 0.0
  %2595 = vmatpush1.msra.mxu0 0.0
  %2596 = vmatprep.subr.mxu0 0.0
  %2597 = vmatpush1.msra.mxu0 0.0
  %2598 = vmatprep.subr.mxu0 0.0
  %2599 = vmatpush1.msra.mxu0 0.0
  %2600 = vmatprep.subr.mxu0 0.0
  %2601 = vmatpush1.msra.mxu0 0.0
  %2602 = vmatprep.subr.mxu0 0.0
  %2603 = vmatpush1.msra.mxu0 0.0
  %2604 = vmatprep.subr.mxu0 0.0
  %2605 = vmatpush1.msra.mxu0 0.0
  %2606 = vmatprep.subr.mxu0 0.0
  %2607 = vmatpush1.msra.mxu0 0.0
  %2608 = vmatprep.subr.mxu0 0.0
  %2609 = vmatpush1.msra.mxu0 0.0
  %2610 = vmatprep.subr.mxu0 0.0
  %2611 = vmatpush1.msra.mxu0 0.0
  %2612 = vmatprep.subr.mxu0 0.0
  %2613 = vmatpush1.msra.mxu0 0.0
  %2614 = vmatprep.subr.mxu0 0.0
  %2615 = vmatpush1.msra.mxu0 0.0
  %2616 = vmatprep.subr.mxu0 0.0
  %2617 = vmatpush1.msra.mxu0 0.0
  %2618 = vmatprep.subr.mxu0 0.0
  %2619 = vmatpush1.msra.mxu0 0.0
  %2620 = vmatprep.subr.mxu0 0.0
  %2621 = vmatpush1.msra.mxu0 0.0
  %2622 = vmatprep.subr.mxu0 0.0
  %2623 = vmatpush1.msra.mxu0 0.0
  %2624 = vmatprep.subr.mxu0 0.0
  %2625 = vmatpush1.msra.mxu0 0.0
  %2626 = vmatprep.subr.mxu0 0.0
  %2627 = vmatpush1.msra.mxu0 0.0
  %2628 = vmatprep.subr.mxu0 0.0
  %2629 = vmatpush1.msra.mxu0 0.0
  %2630 = vmatprep.subr.mxu0 0.0
  %2631 = vmatpush1.msra.mxu0 0.0
  %2632 = vmatprep.subr.mxu0 0.0
  %2633 = vmatpush1.msra.mxu0 0.0
  %2634 = vmatprep.subr.mxu0 0.0
  %2635 = vmatpush1.msra.mxu0 0.0
  %2636 = vmatprep.subr.mxu0 0.0
  %2637 = vmatpush1.msra.mxu0 0.0
  %2638 = vmatprep.subr.mxu0 0.0
  %2639 = vmatpush1.msra.mxu0 0.0
  %2640 = vmatprep.subr.mxu0 0.0
  %2641 = vmatpush1.msra.mxu0 0.0
  %2642 = vmatprep.subr.mxu0 0.0
  %2643 = vmatpush1.msra.mxu0 0.0
  %2644 = vmatprep.subr.mxu0 0.0
  %2645 = vmatpush1.msra.mxu0 0.0
  %2646 = vmatprep.subr.mxu0 0.0
  %2647 = vmatpush1.msra.mxu0 0.0
  %2648 = vmatprep.mubr.f32.mxu0 0.0
  %2649 = vmatmul.mubr.f32.gmra.mrb[0].mxu0 %v2573
  %v2650 = vpop.f32.mrb[0].mxu0
  %v2651 = vadd.f32 %v2555, %v2650
  %v2652 = vpop.f32.mrb[0].mxu0
  %2653 = vmatprep.mubr.f32.mxu0 0.0
  %2654 = vmatmul.mubr.f32.gmra.mrb[0].mxu0 %v2576
  %v2655 = vpop.f32.mrb[0].mxu0
  %v2656 = vadd.f32 %v2560, %v2655
  %v2657 = vpop.f32.mrb[0].mxu0
  %2658 = vmatprep.mubr.f32.mxu0 0.0
  %2659 = vmatmul.mubr.f32.gmra.mrb[0].mxu0 %v2579
  %v2660 = vpop.f32.mrb[0].mxu0
  %v2661 = vadd.f32 %v2565, %v2660
  %v2662 = vpop.f32.mrb[0].mxu0
  %2663 = vmatprep.mubr.f32.mxu0 0.0
  %2664 = vmatmul.mubr.f32.gmra.mrb[0].mxu0 %v2582
  %v2665 = vpop.f32.mrb[0].mxu0
  %v2666 = vadd.f32 %v2570, %v2665
  %v2667 = vpop.f32.mrb[0].mxu0
  %2668 = vdwg.mxu0
  %v2669 = vadd.f32 %v1725, %v2651
  %v2670 = vadd.f32 %v1726, %v2656
  %v2671 = vadd.f32 %v1727, %v2661
  %v2672 = vadd.f32 %v1728, %v2666
  %s2673 = scalar_lea.vmem %s4, 64
  %v2674 = vld [vmem:[%s2673] sm:$0xff]
  %v2675 = vld [vmem:[%s2673 + $0x8] sm:$0xff]
  %v2676 = vld [vmem:[%s2673 + $0x10] sm:$0xff]
  %v2677 = vld [vmem:[%s2673 + $0x18] sm:$0xff]
  %s2678 = scalar_lea.vmem %s6, 256
  %v2679 = vld [vmem:[%s2678] sm:$0xff]
  %v2680 = vld [vmem:[%s2678 + $0x8] sm:$0xff]
  %v2681 = vld [vmem:[%s2678 + $0x10] sm:$0xff]
  %v2682 = vld [vmem:[%s2678 + $0x18] sm:$0xff]
  %2684 = vset.pattern.permute.xlu0 0
  %2685 = vperm.xlu0 %2684, %v2679
  %v2686 = vpop.permute.xlu0 %2685
  %2689 = vset.pattern.permute.xlu0 0
  %2690 = vperm.xlu0 %2689, %v2680
  %v2691 = vpop.permute.xlu0 %2690
  %2694 = vset.pattern.permute.xlu0 0
  %2695 = vperm.xlu0 %2694, %v2681
  %v2696 = vpop.permute.xlu0 %2695
  %2699 = vset.pattern.permute.xlu0 0
  %2700 = vperm.xlu0 %2699, %v2682
  %v2701 = vpop.permute.xlu0 %2700
  %v2704 = vsel %vm193, %v2674, 0
  %v2707 = vsel %vm193, %v2675, 0
  %v2710 = vsel %vm193, %v2676, 0
  %v2713 = vsel %vm193, %v2677, 0
  %2715 = vmatprep.subr.mxu0 %v556
  %2716 = vmatpush1.msra.mxu0 %v554
  %2717 = vmatprep.subr.mxu0 %v560
  %2718 = vmatpush1.msra.mxu0 %v558
  %2719 = vmatprep.subr.mxu0 0.0
  %2720 = vmatpush1.msra.mxu0 0.0
  %2721 = vmatprep.subr.mxu0 0.0
  %2722 = vmatpush1.msra.mxu0 0.0
  %2723 = vmatprep.subr.mxu0 0.0
  %2724 = vmatpush1.msra.mxu0 0.0
  %2725 = vmatprep.subr.mxu0 0.0
  %2726 = vmatpush1.msra.mxu0 0.0
  %2727 = vmatprep.subr.mxu0 0.0
  %2728 = vmatpush1.msra.mxu0 0.0
  %2729 = vmatprep.subr.mxu0 0.0
  %2730 = vmatpush1.msra.mxu0 0.0
  %2731 = vmatprep.subr.mxu0 0.0
  %2732 = vmatpush1.msra.mxu0 0.0
  %2733 = vmatprep.subr.mxu0 0.0
  %2734 = vmatpush1.msra.mxu0 0.0
  %2735 = vmatprep.subr.mxu0 0.0
  %2736 = vmatpush1.msra.mxu0 0.0
  %2737 = vmatprep.subr.mxu0 0.0
  %2738 = vmatpush1.msra.mxu0 0.0
  %2739 = vmatprep.subr.mxu0 0.0
  %2740 = vmatpush1.msra.mxu0 0.0
  %2741 = vmatprep.subr.mxu0 0.0
  %2742 = vmatpush1.msra.mxu0 0.0
  %2743 = vmatprep.subr.mxu0 0.0
  %2744 = vmatpush1.msra.mxu0 0.0
  %2745 = vmatprep.subr.mxu0 0.0
  %2746 = vmatpush1.msra.mxu0 0.0
  %2747 = vmatprep.subr.mxu0 0.0
  %2748 = vmatpush1.msra.mxu0 0.0
  %2749 = vmatprep.subr.mxu0 0.0
  %2750 = vmatpush1.msra.mxu0 0.0
  %2751 = vmatprep.subr.mxu0 0.0
  %2752 = vmatpush1.msra.mxu0 0.0
  %2753 = vmatprep.subr.mxu0 0.0
  %2754 = vmatpush1.msra.mxu0 0.0
  %2755 = vmatprep.subr.mxu0 0.0
  %2756 = vmatpush1.msra.mxu0 0.0
  %2757 = vmatprep.subr.mxu0 0.0
  %2758 = vmatpush1.msra.mxu0 0.0
  %2759 = vmatprep.subr.mxu0 0.0
  %2760 = vmatpush1.msra.mxu0 0.0
  %2761 = vmatprep.subr.mxu0 0.0
  %2762 = vmatpush1.msra.mxu0 0.0
  %2763 = vmatprep.subr.mxu0 0.0
  %2764 = vmatpush1.msra.mxu0 0.0
  %2765 = vmatprep.subr.mxu0 0.0
  %2766 = vmatpush1.msra.mxu0 0.0
  %2767 = vmatprep.subr.mxu0 0.0
  %2768 = vmatpush1.msra.mxu0 0.0
  %2769 = vmatprep.subr.mxu0 0.0
  %2770 = vmatpush1.msra.mxu0 0.0
  %2771 = vmatprep.subr.mxu0 0.0
  %2772 = vmatpush1.msra.mxu0 0.0
  %2773 = vmatprep.subr.mxu0 0.0
  %2774 = vmatpush1.msra.mxu0 0.0
  %2775 = vmatprep.subr.mxu0 0.0
  %2776 = vmatpush1.msra.mxu0 0.0
  %2777 = vmatprep.subr.mxu0 0.0
  %2778 = vmatpush1.msra.mxu0 0.0
  %2779 = vmatprep.mubr.f32.mxu0 0.0
  %2780 = vmatmul.mubr.f32.gmra.mrb[0].mxu0 %v2704
  %v2781 = vpop.f32.mrb[0].mxu0
  %v2782 = vadd.f32 %v2686, %v2781
  %v2783 = vpop.f32.mrb[0].mxu0
  %v2784 = vadd.f32 %v2686, %v2783
  %2785 = vmatprep.mubr.f32.mxu0 0.0
  %2786 = vmatmul.mubr.f32.gmra.mrb[0].mxu0 %v2707
  %v2787 = vpop.f32.mrb[0].mxu0
  %v2788 = vadd.f32 %v2691, %v2787
  %v2789 = vpop.f32.mrb[0].mxu0
  %v2790 = vadd.f32 %v2691, %v2789
  %2791 = vmatprep.mubr.f32.mxu0 0.0
  %2792 = vmatmul.mubr.f32.gmra.mrb[0].mxu0 %v2710
  %v2793 = vpop.f32.mrb[0].mxu0
  %v2794 = vadd.f32 %v2696, %v2793
  %v2795 = vpop.f32.mrb[0].mxu0
  %v2796 = vadd.f32 %v2696, %v2795
  %2797 = vmatprep.mubr.f32.mxu0 0.0
  %2798 = vmatmul.mubr.f32.gmra.mrb[0].mxu0 %v2713
  %v2799 = vpop.f32.mrb[0].mxu0
  %v2800 = vadd.f32 %v2701, %v2799
  %v2801 = vpop.f32.mrb[0].mxu0
  %v2802 = vadd.f32 %v2701, %v2801
  %2803 = vdwg.mxu0
  %v2804 = vmax.f32 %v2782, 0.0
  %v2805 = vmax.f32 %v2784, 0.0
  %v2806 = vmax.f32 %v2788, 0.0
  %v2807 = vmax.f32 %v2790, 0.0
  %v2808 = vmax.f32 %v2794, 0.0
  %v2809 = vmax.f32 %v2796, 0.0
  %v2810 = vmax.f32 %v2800, 0.0
  %v2811 = vmax.f32 %v2802, 0.0
  %v2812 = vand.u32 2147483647, %v2782
  %v2813 = vand.u32 2147483647, %v2784
  %v2814 = vand.u32 2147483647, %v2788
  %v2815 = vand.u32 2147483647, %v2790
  %v2816 = vand.u32 2147483647, %v2794
  %v2817 = vand.u32 2147483647, %v2796
  %v2818 = vand.u32 2147483647, %v2800
  %v2819 = vand.u32 2147483647, %v2802
  %v2820 = vsub.f32 0.0, %v2812
  %v2821 = vsub.f32 0.0, %v2813
  %v2822 = vsub.f32 0.0, %v2814
  %v2823 = vsub.f32 0.0, %v2815
  %v2824 = vsub.f32 0.0, %v2816
  %v2825 = vsub.f32 0.0, %v2817
  %v2826 = vsub.f32 0.0, %v2818
  %v2827 = vsub.f32 0.0, %v2819
  %v2828 = vmul.f32 %v2820, 1.442695
  %v2829 = vpow.pop %v2828
  %v2830 = vmul.f32 %v2821, 1.442695
  %v2831 = vpow.pop %v2830
  %v2832 = vmul.f32 %v2822, 1.442695
  %v2833 = vpow.pop %v2832
  %v2834 = vmul.f32 %v2823, 1.442695
  %v2835 = vpow.pop %v2834
  %v2836 = vmul.f32 %v2824, 1.442695
  %v2837 = vpow.pop %v2836
  %v2838 = vmul.f32 %v2825, 1.442695
  %v2839 = vpow.pop %v2838
  %v2840 = vmul.f32 %v2826, 1.442695
  %v2841 = vpow.pop %v2840
  %v2842 = vmul.f32 %v2827, 1.442695
  %v2843 = vpow.pop %v2842
  %v2844 = vadd.f32 %v2829, 1.0
  %v2845 = vadd.f32 %v2831, 1.0
  %v2846 = vadd.f32 %v2833, 1.0
  %v2847 = vadd.f32 %v2835, 1.0
  %v2848 = vadd.f32 %v2837, 1.0
  %v2849 = vadd.f32 %v2839, 1.0
  %v2850 = vadd.f32 %v2841, 1.0
  %v2851 = vadd.f32 %v2843, 1.0
  %v2852 = vlog2.pop %v2844
  %v2853 = vmul.f32 %v2852, 0.6931472
  %v2854 = vlog2.pop %v2845
  %v2855 = vmul.f32 %v2854, 0.6931472
  %v2856 = vlog2.pop %v2846
  %v2857 = vmul.f32 %v2856, 0.6931472
  %v2858 = vlog2.pop %v2847
  %v2859 = vmul.f32 %v2858, 0.6931472
  %v2860 = vlog2.pop %v2848
  %v2861 = vmul.f32 %v2860, 0.6931472
  %v2862 = vlog2.pop %v2849
  %v2863 = vmul.f32 %v2862, 0.6931472
  %v2864 = vlog2.pop %v2850
  %v2865 = vmul.f32 %v2864, 0.6931472
  %v2866 = vlog2.pop %v2851
  %v2867 = vmul.f32 %v2866, 0.6931472
  %v2868 = vadd.f32 %v2804, %v2853
  %v2869 = vadd.f32 %v2805, %v2855
  %v2870 = vadd.f32 %v2806, %v2857
  %v2871 = vadd.f32 %v2807, %v2859
  %v2872 = vadd.f32 %v2808, %v2861
  %v2873 = vadd.f32 %v2809, %v2863
  %v2874 = vadd.f32 %v2810, %v2865
  %v2875 = vadd.f32 %v2811, %v2867
  %v2876 = vsub.f32 %v2868, 0.6931472
  %v2877 = vsub.f32 %v2869, 0.6931472
  %v2878 = vsub.f32 %v2870, 0.6931472
  %v2879 = vsub.f32 %v2871, 0.6931472
  %v2880 = vsub.f32 %v2872, 0.6931472
  %v2881 = vsub.f32 %v2873, 0.6931472
  %v2882 = vsub.f32 %v2874, 0.6931472
  %v2883 = vsub.f32 %v2875, 0.6931472
  %s2884 = scalar_lea.vmem %s5, 256
  %v2885 = vld [vmem:[%s2884] sm:$0xff]
  %v2886 = vld [vmem:[%s2884 + $0x8] sm:$0xff]
  %v2887 = vld [vmem:[%s2884 + $0x10] sm:$0xff]
  %v2888 = vld [vmem:[%s2884 + $0x18] sm:$0xff]
  %s2889 = scalar_lea.vmem %s6, 288
  %v2890 = vld [vmem:[%s2889] sm:$0xff]
  %v2891 = vld [vmem:[%s2889 + $0x8] sm:$0xff]
  %v2892 = vld [vmem:[%s2889 + $0x10] sm:$0xff]
  %v2893 = vld [vmem:[%s2889 + $0x18] sm:$0xff]
  %2895 = vset.pattern.permute.xlu0 0
  %2896 = vperm.xlu0 %2895, %v2890
  %v2897 = vpop.permute.xlu0 %2896
  %2900 = vset.pattern.permute.xlu0 0
  %2901 = vperm.xlu0 %2900, %v2891
  %v2902 = vpop.permute.xlu0 %2901
  %2905 = vset.pattern.permute.xlu0 0
  %2906 = vperm.xlu0 %2905, %v2892
  %v2907 = vpop.permute.xlu0 %2906
  %2910 = vset.pattern.permute.xlu0 0
  %2911 = vperm.xlu0 %2910, %v2893
  %v2912 = vpop.permute.xlu0 %2911
  %v2915 = vsel %vm1017, %v2885, 0
  %v2918 = vsel %vm1017, %v2886, 0
  %v2921 = vsel %vm1017, %v2887, 0
  %v2924 = vsel %vm1017, %v2888, 0
  %2926 = vmatprep.subr.mxu0 %v2877
  %2927 = vmatpush1.msra.mxu0 %v2876
  %2928 = vmatprep.subr.mxu0 %v2879
  %2929 = vmatpush1.msra.mxu0 %v2878
  %2930 = vmatprep.subr.mxu0 %v2881
  %2931 = vmatpush1.msra.mxu0 %v2880
  %2932 = vmatprep.subr.mxu0 %v2883
  %2933 = vmatpush1.msra.mxu0 %v2882
  %2934 = vmatprep.subr.mxu0 0.0
  %2935 = vmatpush1.msra.mxu0 0.0
  %2936 = vmatprep.subr.mxu0 0.0
  %2937 = vmatpush1.msra.mxu0 0.0
  %2938 = vmatprep.subr.mxu0 0.0
  %2939 = vmatpush1.msra.mxu0 0.0
  %2940 = vmatprep.subr.mxu0 0.0
  %2941 = vmatpush1.msra.mxu0 0.0
  %2942 = vmatprep.subr.mxu0 0.0
  %2943 = vmatpush1.msra.mxu0 0.0
  %2944 = vmatprep.subr.mxu0 0.0
  %2945 = vmatpush1.msra.mxu0 0.0
  %2946 = vmatprep.subr.mxu0 0.0
  %2947 = vmatpush1.msra.mxu0 0.0
  %2948 = vmatprep.subr.mxu0 0.0
  %2949 = vmatpush1.msra.mxu0 0.0
  %2950 = vmatprep.subr.mxu0 0.0
  %2951 = vmatpush1.msra.mxu0 0.0
  %2952 = vmatprep.subr.mxu0 0.0
  %2953 = vmatpush1.msra.mxu0 0.0
  %2954 = vmatprep.subr.mxu0 0.0
  %2955 = vmatpush1.msra.mxu0 0.0
  %2956 = vmatprep.subr.mxu0 0.0
  %2957 = vmatpush1.msra.mxu0 0.0
  %2958 = vmatprep.subr.mxu0 0.0
  %2959 = vmatpush1.msra.mxu0 0.0
  %2960 = vmatprep.subr.mxu0 0.0
  %2961 = vmatpush1.msra.mxu0 0.0
  %2962 = vmatprep.subr.mxu0 0.0
  %2963 = vmatpush1.msra.mxu0 0.0
  %2964 = vmatprep.subr.mxu0 0.0
  %2965 = vmatpush1.msra.mxu0 0.0
  %2966 = vmatprep.subr.mxu0 0.0
  %2967 = vmatpush1.msra.mxu0 0.0
  %2968 = vmatprep.subr.mxu0 0.0
  %2969 = vmatpush1.msra.mxu0 0.0
  %2970 = vmatprep.subr.mxu0 0.0
  %2971 = vmatpush1.msra.mxu0 0.0
  %2972 = vmatprep.subr.mxu0 0.0
  %2973 = vmatpush1.msra.mxu0 0.0
  %2974 = vmatprep.subr.mxu0 0.0
  %2975 = vmatpush1.msra.mxu0 0.0
  %2976 = vmatprep.subr.mxu0 0.0
  %2977 = vmatpush1.msra.mxu0 0.0
  %2978 = vmatprep.subr.mxu0 0.0
  %2979 = vmatpush1.msra.mxu0 0.0
  %2980 = vmatprep.subr.mxu0 0.0
  %2981 = vmatpush1.msra.mxu0 0.0
  %2982 = vmatprep.subr.mxu0 0.0
  %2983 = vmatpush1.msra.mxu0 0.0
  %2984 = vmatprep.subr.mxu0 0.0
  %2985 = vmatpush1.msra.mxu0 0.0
  %2986 = vmatprep.subr.mxu0 0.0
  %2987 = vmatpush1.msra.mxu0 0.0
  %2988 = vmatprep.subr.mxu0 0.0
  %2989 = vmatpush1.msra.mxu0 0.0
  %2990 = vmatprep.mubr.f32.mxu0 0.0
  %2991 = vmatmul.mubr.f32.gmra.mrb[0].mxu0 %v2915
  %v2992 = vpop.f32.mrb[0].mxu0
  %v2993 = vadd.f32 %v2897, %v2992
  %v2994 = vpop.f32.mrb[0].mxu0
  %v2995 = vadd.f32 %v2897, %v2994
  %2996 = vmatprep.mubr.f32.mxu0 0.0
  %2997 = vmatmul.mubr.f32.gmra.mrb[0].mxu0 %v2918
  %v2998 = vpop.f32.mrb[0].mxu0
  %v2999 = vadd.f32 %v2902, %v2998
  %v3000 = vpop.f32.mrb[0].mxu0
  %v3001 = vadd.f32 %v2902, %v3000
  %3002 = vmatprep.mubr.f32.mxu0 0.0
  %3003 = vmatmul.mubr.f32.gmra.mrb[0].mxu0 %v2921
  %v3004 = vpop.f32.mrb[0].mxu0
  %v3005 = vadd.f32 %v2907, %v3004
  %v3006 = vpop.f32.mrb[0].mxu0
  %v3007 = vadd.f32 %v2907, %v3006
  %3008 = vmatprep.mubr.f32.mxu0 0.0
  %3009 = vmatmul.mubr.f32.gmra.mrb[0].mxu0 %v2924
  %v3010 = vpop.f32.mrb[0].mxu0
  %v3011 = vadd.f32 %v2912, %v3010
  %v3012 = vpop.f32.mrb[0].mxu0
  %v3013 = vadd.f32 %v2912, %v3012
  %3014 = vdwg.mxu0
  %v3015 = vmul.f32 %v2993, %v1122
  %v3016 = vmul.f32 %v2995, %v1126
  %v3017 = vmul.f32 %v2999, %v1122
  %v3018 = vmul.f32 %v3001, %v1126
  %v3019 = vmul.f32 %v3005, %v1122
  %v3020 = vmul.f32 %v3007, %v1126
  %v3021 = vmul.f32 %v3011, %v1122
  %v3022 = vmul.f32 %v3013, %v1126
  %s3023 = scalar_lea.vmem %s5, 288
  %v3024 = vld [vmem:[%s3023] sm:$0xff]
  %v3025 = vld [vmem:[%s3023 + $0x8] sm:$0xff]
  %v3026 = vld [vmem:[%s3023 + $0x10] sm:$0xff]
  %v3027 = vld [vmem:[%s3023 + $0x18] sm:$0xff]
  %v3029 = vsel %vm1017, %v3024, 0
  %v3032 = vsel %vm1017, %v3025, 0
  %v3035 = vsel %vm1017, %v3026, 0
  %v3038 = vsel %vm1017, %v3027, 0
  %3040 = vmatprep.subr.mxu0 0.0
  %3041 = vmatpush1.msra.mxu0 %v2669
  %3042 = vmatprep.subr.mxu0 0.0
  %3043 = vmatpush1.msra.mxu0 %v2670
  %3044 = vmatprep.subr.mxu0 0.0
  %3045 = vmatpush1.msra.mxu0 %v2671
  %3046 = vmatprep.subr.mxu0 0.0
  %3047 = vmatpush1.msra.mxu0 %v2672
  %3048 = vmatprep.subr.mxu0 0.0
  %3049 = vmatpush1.msra.mxu0 0.0
  %3050 = vmatprep.subr.mxu0 0.0
  %3051 = vmatpush1.msra.mxu0 0.0
  %3052 = vmatprep.subr.mxu0 0.0
  %3053 = vmatpush1.msra.mxu0 0.0
  %3054 = vmatprep.subr.mxu0 0.0
  %3055 = vmatpush1.msra.mxu0 0.0
  %3056 = vmatprep.subr.mxu0 0.0
  %3057 = vmatpush1.msra.mxu0 0.0
  %3058 = vmatprep.subr.mxu0 0.0
  %3059 = vmatpush1.msra.mxu0 0.0
  %3060 = vmatprep.subr.mxu0 0.0
  %3061 = vmatpush1.msra.mxu0 0.0
  %3062 = vmatprep.subr.mxu0 0.0
  %3063 = vmatpush1.msra.mxu0 0.0
  %3064 = vmatprep.subr.mxu0 0.0
  %3065 = vmatpush1.msra.mxu0 0.0
  %3066 = vmatprep.subr.mxu0 0.0
  %3067 = vmatpush1.msra.mxu0 0.0
  %3068 = vmatprep.subr.mxu0 0.0
  %3069 = vmatpush1.msra.mxu0 0.0
  %3070 = vmatprep.subr.mxu0 0.0
  %3071 = vmatpush1.msra.mxu0 0.0
  %3072 = vmatprep.subr.mxu0 0.0
  %3073 = vmatpush1.msra.mxu0 0.0
  %3074 = vmatprep.subr.mxu0 0.0
  %3075 = vmatpush1.msra.mxu0 0.0
  %3076 = vmatprep.subr.mxu0 0.0
  %3077 = vmatpush1.msra.mxu0 0.0
  %3078 = vmatprep.subr.mxu0 0.0
  %3079 = vmatpush1.msra.mxu0 0.0
  %3080 = vmatprep.subr.mxu0 0.0
  %3081 = vmatpush1.msra.mxu0 0.0
  %3082 = vmatprep.subr.mxu0 0.0
  %3083 = vmatpush1.msra.mxu0 0.0
  %3084 = vmatprep.subr.mxu0 0.0
  %3085 = vmatpush1.msra.mxu0 0.0
  %3086 = vmatprep.subr.mxu0 0.0
  %3087 = vmatpush1.msra.mxu0 0.0
  %3088 = vmatprep.subr.mxu0 0.0
  %3089 = vmatpush1.msra.mxu0 0.0
  %3090 = vmatprep.subr.mxu0 0.0
  %3091 = vmatpush1.msra.mxu0 0.0
  %3092 = vmatprep.subr.mxu0 0.0
  %3093 = vmatpush1.msra.mxu0 0.0
  %3094 = vmatprep.subr.mxu0 0.0
  %3095 = vmatpush1.msra.mxu0 0.0
  %3096 = vmatprep.subr.mxu0 0.0
  %3097 = vmatpush1.msra.mxu0 0.0
  %3098 = vmatprep.subr.mxu0 0.0
  %3099 = vmatpush1.msra.mxu0 0.0
  %3100 = vmatprep.subr.mxu0 0.0
  %3101 = vmatpush1.msra.mxu0 0.0
  %3102 = vmatprep.subr.mxu0 0.0
  %3103 = vmatpush1.msra.mxu0 0.0
  %3104 = vmatprep.mubr.f32.mxu0 0.0
  %3105 = vmatmul.mubr.f32.gmra.mrb[0].mxu0 %v3029
  %v3106 = vpop.f32.mrb[0].mxu0
  %v3107 = vadd.f32 0.0, %v3106
  %v3108 = vpop.f32.mrb[0].mxu0
  %3109 = vmatprep.mubr.f32.mxu0 0.0
  %3110 = vmatmul.mubr.f32.gmra.mrb[0].mxu0 %v3032
  %v3111 = vpop.f32.mrb[0].mxu0
  %v3112 = vadd.f32 0.0, %v3111
  %v3113 = vpop.f32.mrb[0].mxu0
  %3114 = vmatprep.mubr.f32.mxu0 0.0
  %3115 = vmatmul.mubr.f32.gmra.mrb[0].mxu0 %v3035
  %v3116 = vpop.f32.mrb[0].mxu0
  %v3117 = vadd.f32 0.0, %v3116
  %v3118 = vpop.f32.mrb[0].mxu0
  %3119 = vmatprep.mubr.f32.mxu0 0.0
  %3120 = vmatmul.mubr.f32.gmra.mrb[0].mxu0 %v3038
  %v3121 = vpop.f32.mrb[0].mxu0
  %v3122 = vadd.f32 0.0, %v3121
  %v3123 = vpop.f32.mrb[0].mxu0
  %3124 = vdwg.mxu0
  %v3126 = vsel %vm193, %v3107, 0
  %v3129 = vsel %vm193, %v3112, 0
  %v3132 = vsel %vm193, %v3117, 0
  %v3135 = vsel %vm193, %v3122, 0
  %3137 = vmatprep.subr.mxu0 %v53
  %3138 = vmatpush1.msra.mxu0 %v52
  %3139 = vmatprep.subr.mxu0 %v55
  %3140 = vmatpush1.msra.mxu0 %v54
  %3141 = vmatprep.subr.mxu0 0.0
  %3142 = vmatpush1.msra.mxu0 0.0
  %3143 = vmatprep.subr.mxu0 0.0
  %3144 = vmatpush1.msra.mxu0 0.0
  %3145 = vmatprep.subr.mxu0 0.0
  %3146 = vmatpush1.msra.mxu0 0.0
  %3147 = vmatprep.subr.mxu0 0.0
  %3148 = vmatpush1.msra.mxu0 0.0
  %3149 = vmatprep.subr.mxu0 0.0
  %3150 = vmatpush1.msra.mxu0 0.0
  %3151 = vmatprep.subr.mxu0 0.0
  %3152 = vmatpush1.msra.mxu0 0.0
  %3153 = vmatprep.subr.mxu0 0.0
  %3154 = vmatpush1.msra.mxu0 0.0
  %3155 = vmatprep.subr.mxu0 0.0
  %3156 = vmatpush1.msra.mxu0 0.0
  %3157 = vmatprep.subr.mxu0 0.0
  %3158 = vmatpush1.msra.mxu0 0.0
  %3159 = vmatprep.subr.mxu0 0.0
  %3160 = vmatpush1.msra.mxu0 0.0
  %3161 = vmatprep.subr.mxu0 0.0
  %3162 = vmatpush1.msra.mxu0 0.0
  %3163 = vmatprep.subr.mxu0 0.0
  %3164 = vmatpush1.msra.mxu0 0.0
  %3165 = vmatprep.subr.mxu0 0.0
  %3166 = vmatpush1.msra.mxu0 0.0
  %3167 = vmatprep.subr.mxu0 0.0
  %3168 = vmatpush1.msra.mxu0 0.0
  %3169 = vmatprep.subr.mxu0 0.0
  %3170 = vmatpush1.msra.mxu0 0.0
  %3171 = vmatprep.subr.mxu0 0.0
  %3172 = vmatpush1.msra.mxu0 0.0
  %3173 = vmatprep.subr.mxu0 0.0
  %3174 = vmatpush1.msra.mxu0 0.0
  %3175 = vmatprep.subr.mxu0 0.0
  %3176 = vmatpush1.msra.mxu0 0.0
  %3177 = vmatprep.subr.mxu0 0.0
  %3178 = vmatpush1.msra.mxu0 0.0
  %3179 = vmatprep.subr.mxu0 0.0
  %3180 = vmatpush1.msra.mxu0 0.0
  %3181 = vmatprep.subr.mxu0 0.0
  %3182 = vmatpush1.msra.mxu0 0.0
  %3183 = vmatprep.subr.mxu0 0.0
  %3184 = vmatpush1.msra.mxu0 0.0
  %3185 = vmatprep.subr.mxu0 0.0
  %3186 = vmatpush1.msra.mxu0 0.0
  %3187 = vmatprep.subr.mxu0 0.0
  %3188 = vmatpush1.msra.mxu0 0.0
  %3189 = vmatprep.subr.mxu0 0.0
  %3190 = vmatpush1.msra.mxu0 0.0
  %3191 = vmatprep.subr.mxu0 0.0
  %3192 = vmatpush1.msra.mxu0 0.0
  %3193 = vmatprep.subr.mxu0 0.0
  %3194 = vmatpush1.msra.mxu0 0.0
  %3195 = vmatprep.subr.mxu0 0.0
  %3196 = vmatpush1.msra.mxu0 0.0
  %3197 = vmatprep.subr.mxu0 0.0
  %3198 = vmatpush1.msra.mxu0 0.0
  %3199 = vmatprep.subr.mxu0 0.0
  %3200 = vmatpush1.msra.mxu0 0.0
  %3201 = vmatprep.mubr.f32.mxu0 0.0
  %3202 = vmatmul.mubr.f32.gmra.mrb[0].mxu0 %v3126
  %v3203 = vpop.f32.mrb[0].mxu0
  %v3204 = vadd.f32 0.0, %v3203
  %v3205 = vpop.f32.mrb[0].mxu0
  %v3206 = vadd.f32 0.0, %v3205
  %3207 = vmatprep.mubr.f32.mxu0 0.0
  %3208 = vmatmul.mubr.f32.gmra.mrb[0].mxu0 %v3129
  %v3209 = vpop.f32.mrb[0].mxu0
  %v3210 = vadd.f32 0.0, %v3209
  %v3211 = vpop.f32.mrb[0].mxu0
  %v3212 = vadd.f32 0.0, %v3211
  %3213 = vmatprep.mubr.f32.mxu0 0.0
  %3214 = vmatmul.mubr.f32.gmra.mrb[0].mxu0 %v3132
  %v3215 = vpop.f32.mrb[0].mxu0
  %v3216 = vadd.f32 0.0, %v3215
  %v3217 = vpop.f32.mrb[0].mxu0
  %v3218 = vadd.f32 0.0, %v3217
  %3219 = vmatprep.mubr.f32.mxu0 0.0
  %3220 = vmatmul.mubr.f32.gmra.mrb[0].mxu0 %v3135
  %v3221 = vpop.f32.mrb[0].mxu0
  %v3222 = vadd.f32 0.0, %v3221
  %v3223 = vpop.f32.mrb[0].mxu0
  %v3224 = vadd.f32 0.0, %v3223
  %3225 = vdwg.mxu0
  %v3226 = vmul.f32 %v3015, %v3204
  %v3227 = vmul.f32 %v3016, %v3206
  %v3228 = vmul.f32 %v3017, %v3210
  %v3229 = vmul.f32 %v3018, %v3212
  %v3230 = vmul.f32 %v3019, %v3216
  %v3231 = vmul.f32 %v3020, %v3218
  %v3232 = vmul.f32 %v3021, %v3222
  %v3233 = vmul.f32 %v3022, %v3224
  %3234 = vmatprep.subr.mxu0 0.0
  %3235 = vmatpush1.msra.mxu0 %v160
  %3236 = vmatprep.subr.mxu0 0.0
  %3237 = vmatpush1.msra.mxu0 %v161
  %3238 = vmatprep.subr.mxu0 0.0
  %3239 = vmatpush1.msra.mxu0 %v162
  %3240 = vmatprep.subr.mxu0 0.0
  %3241 = vmatpush1.msra.mxu0 %v163
  %3242 = vmatprep.subr.mxu0 0.0
  %3243 = vmatpush1.msra.mxu0 %v164
  %3244 = vmatprep.subr.mxu0 0.0
  %3245 = vmatpush1.msra.mxu0 %v165
  %3246 = vmatprep.subr.mxu0 0.0
  %3247 = vmatpush1.msra.mxu0 %v166
  %3248 = vmatprep.subr.mxu0 0.0
  %3249 = vmatpush1.msra.mxu0 %v167
  %3250 = vmatprep.subr.mxu0 0.0
  %3251 = vmatpush1.msra.mxu0 %v168
  %3252 = vmatprep.subr.mxu0 0.0
  %3253 = vmatpush1.msra.mxu0 %v169
  %3254 = vmatprep.subr.mxu0 0.0
  %3255 = vmatpush1.msra.mxu0 %v170
  %3256 = vmatprep.subr.mxu0 0.0
  %3257 = vmatpush1.msra.mxu0 %v171
  %3258 = vmatprep.subr.mxu0 0.0
  %3259 = vmatpush1.msra.mxu0 %v172
  %3260 = vmatprep.subr.mxu0 0.0
  %3261 = vmatpush1.msra.mxu0 %v173
  %3262 = vmatprep.subr.mxu0 0.0
  %3263 = vmatpush1.msra.mxu0 %v174
  %3264 = vmatprep.subr.mxu0 0.0
  %3265 = vmatpush1.msra.mxu0 %v175
  %3266 = vmatprep.subr.mxu0 0.0
  %3267 = vmatpush1.msra.mxu0 %v176
  %3268 = vmatprep.subr.mxu0 0.0
  %3269 = vmatpush1.msra.mxu0 %v177
  %3270 = vmatprep.subr.mxu0 0.0
  %3271 = vmatpush1.msra.mxu0 %v178
  %3272 = vmatprep.subr.mxu0 0.0
  %3273 = vmatpush1.msra.mxu0 %v179
  %3274 = vmatprep.subr.mxu0 0.0
  %3275 = vmatpush1.msra.mxu0 %v180
  %3276 = vmatprep.subr.mxu0 0.0
  %3277 = vmatpush1.msra.mxu0 %v181
  %3278 = vmatprep.subr.mxu0 0.0
  %3279 = vmatpush1.msra.mxu0 %v182
  %3280 = vmatprep.subr.mxu0 0.0
  %3281 = vmatpush1.msra.mxu0 %v183
  %3282 = vmatprep.subr.mxu0 0.0
  %3283 = vmatpush1.msra.mxu0 %v184
  %3284 = vmatprep.subr.mxu0 0.0
  %3285 = vmatpush1.msra.mxu0 %v185
  %3286 = vmatprep.subr.mxu0 0.0
  %3287 = vmatpush1.msra.mxu0 %v186
  %3288 = vmatprep.subr.mxu0 0.0
  %3289 = vmatpush1.msra.mxu0 %v187
  %3290 = vmatprep.subr.mxu0 0.0
  %3291 = vmatpush1.msra.mxu0 %v188
  %3292 = vmatprep.subr.mxu0 0.0
  %3293 = vmatpush1.msra.mxu0 %v189
  %3294 = vmatprep.subr.mxu0 0.0
  %3295 = vmatpush1.msra.mxu0 %v190
  %3296 = vmatprep.subr.mxu0 0.0
  %3297 = vmatpush1.msra.mxu0 %v191
  %3298 = vmatprep.mubr.f32.mxu0 %v3227
  %3299 = vmatmul.mubr.f32.gmra.mrb[0].mxu0 %v3226
  %v3300 = vpop.f32.mrb[0].mxu0
  %v3301 = vadd.f32 0.0, %v3300
  %v3302 = vpop.f32.mrb[0].mxu0
  %3303 = vmatprep.mubr.f32.mxu0 %v3229
  %3304 = vmatmul.mubr.f32.gmra.mrb[0].mxu0 %v3228
  %v3305 = vpop.f32.mrb[0].mxu0
  %v3306 = vadd.f32 0.0, %v3305
  %v3307 = vpop.f32.mrb[0].mxu0
  %3308 = vmatprep.mubr.f32.mxu0 %v3231
  %3309 = vmatmul.mubr.f32.gmra.mrb[0].mxu0 %v3230
  %v3310 = vpop.f32.mrb[0].mxu0
  %v3311 = vadd.f32 0.0, %v3310
  %v3312 = vpop.f32.mrb[0].mxu0
  %3313 = vmatprep.mubr.f32.mxu0 %v3233
  %3314 = vmatmul.mubr.f32.gmra.mrb[0].mxu0 %v3232
  %v3315 = vpop.f32.mrb[0].mxu0
  %v3316 = vadd.f32 0.0, %v3315
  %v3317 = vpop.f32.mrb[0].mxu0
  %3318 = vdwg.mxu0
  %s3319 = scalar_lea.vmem %s5, 320
  %v3320 = vld [vmem:[%s3319] sm:$0xff]
  %v3321 = vld [vmem:[%s3319 + $0x8] sm:$0xff]
  %v3322 = vld [vmem:[%s3319 + $0x10] sm:$0xff]
  %v3323 = vld [vmem:[%s3319 + $0x18] sm:$0xff]
  %s3324 = scalar_lea.vmem %s6, 320
  %v3325 = vld [vmem:[%s3324] sm:$0xff]
  %v3326 = vld [vmem:[%s3324 + $0x8] sm:$0xff]
  %v3327 = vld [vmem:[%s3324 + $0x10] sm:$0xff]
  %v3328 = vld [vmem:[%s3324 + $0x18] sm:$0xff]
  %3330 = vset.pattern.permute.xlu0 0
  %3331 = vperm.xlu0 %3330, %v3325
  %v3332 = vpop.permute.xlu0 %3331
  %3335 = vset.pattern.permute.xlu0 0
  %3336 = vperm.xlu0 %3335, %v3326
  %v3337 = vpop.permute.xlu0 %3336
  %3340 = vset.pattern.permute.xlu0 0
  %3341 = vperm.xlu0 %3340, %v3327
  %v3342 = vpop.permute.xlu0 %3341
  %3345 = vset.pattern.permute.xlu0 0
  %3346 = vperm.xlu0 %3345, %v3328
  %v3347 = vpop.permute.xlu0 %3346
  %v3350 = vsel %vm1017, %v3320, 0
  %v3353 = vsel %vm1017, %v3321, 0
  %v3356 = vsel %vm1017, %v3322, 0
  %v3359 = vsel %vm1017, %v3323, 0
  %3361 = vmatprep.subr.mxu0 0.0
  %3362 = vmatpush1.msra.mxu0 %v3301
  %3363 = vmatprep.subr.mxu0 0.0
  %3364 = vmatpush1.msra.mxu0 %v3306
  %3365 = vmatprep.subr.mxu0 0.0
  %3366 = vmatpush1.msra.mxu0 %v3311
  %3367 = vmatprep.subr.mxu0 0.0
  %3368 = vmatpush1.msra.mxu0 %v3316
  %3369 = vmatprep.subr.mxu0 0.0
  %3370 = vmatpush1.msra.mxu0 0.0
  %3371 = vmatprep.subr.mxu0 0.0
  %3372 = vmatpush1.msra.mxu0 0.0
  %3373 = vmatprep.subr.mxu0 0.0
  %3374 = vmatpush1.msra.mxu0 0.0
  %3375 = vmatprep.subr.mxu0 0.0
  %3376 = vmatpush1.msra.mxu0 0.0
  %3377 = vmatprep.subr.mxu0 0.0
  %3378 = vmatpush1.msra.mxu0 0.0
  %3379 = vmatprep.subr.mxu0 0.0
  %3380 = vmatpush1.msra.mxu0 0.0
  %3381 = vmatprep.subr.mxu0 0.0
  %3382 = vmatpush1.msra.mxu0 0.0
  %3383 = vmatprep.subr.mxu0 0.0
  %3384 = vmatpush1.msra.mxu0 0.0
  %3385 = vmatprep.subr.mxu0 0.0
  %3386 = vmatpush1.msra.mxu0 0.0
  %3387 = vmatprep.subr.mxu0 0.0
  %3388 = vmatpush1.msra.mxu0 0.0
  %3389 = vmatprep.subr.mxu0 0.0
  %3390 = vmatpush1.msra.mxu0 0.0
  %3391 = vmatprep.subr.mxu0 0.0
  %3392 = vmatpush1.msra.mxu0 0.0
  %3393 = vmatprep.subr.mxu0 0.0
  %3394 = vmatpush1.msra.mxu0 0.0
  %3395 = vmatprep.subr.mxu0 0.0
  %3396 = vmatpush1.msra.mxu0 0.0
  %3397 = vmatprep.subr.mxu0 0.0
  %3398 = vmatpush1.msra.mxu0 0.0
  %3399 = vmatprep.subr.mxu0 0.0
  %3400 = vmatpush1.msra.mxu0 0.0
  %3401 = vmatprep.subr.mxu0 0.0
  %3402 = vmatpush1.msra.mxu0 0.0
  %3403 = vmatprep.subr.mxu0 0.0
  %3404 = vmatpush1.msra.mxu0 0.0
  %3405 = vmatprep.subr.mxu0 0.0
  %3406 = vmatpush1.msra.mxu0 0.0
  %3407 = vmatprep.subr.mxu0 0.0
  %3408 = vmatpush1.msra.mxu0 0.0
  %3409 = vmatprep.subr.mxu0 0.0
  %3410 = vmatpush1.msra.mxu0 0.0
  %3411 = vmatprep.subr.mxu0 0.0
  %3412 = vmatpush1.msra.mxu0 0.0
  %3413 = vmatprep.subr.mxu0 0.0
  %3414 = vmatpush1.msra.mxu0 0.0
  %3415 = vmatprep.subr.mxu0 0.0
  %3416 = vmatpush1.msra.mxu0 0.0
  %3417 = vmatprep.subr.mxu0 0.0
  %3418 = vmatpush1.msra.mxu0 0.0
  %3419 = vmatprep.subr.mxu0 0.0
  %3420 = vmatpush1.msra.mxu0 0.0
  %3421 = vmatprep.subr.mxu0 0.0
  %3422 = vmatpush1.msra.mxu0 0.0
  %3423 = vmatprep.subr.mxu0 0.0
  %3424 = vmatpush1.msra.mxu0 0.0
  %3425 = vmatprep.mubr.f32.mxu0 0.0
  %3426 = vmatmul.mubr.f32.gmra.mrb[0].mxu0 %v3350
  %v3427 = vpop.f32.mrb[0].mxu0
  %v3428 = vadd.f32 %v3332, %v3427
  %v3429 = vpop.f32.mrb[0].mxu0
  %3430 = vmatprep.mubr.f32.mxu0 0.0
  %3431 = vmatmul.mubr.f32.gmra.mrb[0].mxu0 %v3353
  %v3432 = vpop.f32.mrb[0].mxu0
  %v3433 = vadd.f32 %v3337, %v3432
  %v3434 = vpop.f32.mrb[0].mxu0
  %3435 = vmatprep.mubr.f32.mxu0 0.0
  %3436 = vmatmul.mubr.f32.gmra.mrb[0].mxu0 %v3356
  %v3437 = vpop.f32.mrb[0].mxu0
  %v3438 = vadd.f32 %v3342, %v3437
  %v3439 = vpop.f32.mrb[0].mxu0
  %3440 = vmatprep.mubr.f32.mxu0 0.0
  %3441 = vmatmul.mubr.f32.gmra.mrb[0].mxu0 %v3359
  %v3442 = vpop.f32.mrb[0].mxu0
  %v3443 = vadd.f32 %v3347, %v3442
  %v3444 = vpop.f32.mrb[0].mxu0
  %3445 = vdwg.mxu0
  %v3446 = vmax.f32 %v3428, 0.0
  %v3447 = vmax.f32 %v3433, 0.0
  %v3448 = vmax.f32 %v3438, 0.0
  %v3449 = vmax.f32 %v3443, 0.0
  %v3450 = vand.u32 2147483647, %v3428
  %v3451 = vand.u32 2147483647, %v3433
  %v3452 = vand.u32 2147483647, %v3438
  %v3453 = vand.u32 2147483647, %v3443
  %v3454 = vsub.f32 0.0, %v3450
  %v3455 = vsub.f32 0.0, %v3451
  %v3456 = vsub.f32 0.0, %v3452
  %v3457 = vsub.f32 0.0, %v3453
  %v3458 = vmul.f32 %v3454, 1.442695
  %v3459 = vpow.pop %v3458
  %v3460 = vmul.f32 %v3455, 1.442695
  %v3461 = vpow.pop %v3460
  %v3462 = vmul.f32 %v3456, 1.442695
  %v3463 = vpow.pop %v3462
  %v3464 = vmul.f32 %v3457, 1.442695
  %v3465 = vpow.pop %v3464
  %v3466 = vadd.f32 %v3459, 1.0
  %v3467 = vadd.f32 %v3461, 1.0
  %v3468 = vadd.f32 %v3463, 1.0
  %v3469 = vadd.f32 %v3465, 1.0
  %v3470 = vlog2.pop %v3466
  %v3471 = vmul.f32 %v3470, 0.6931472
  %v3472 = vlog2.pop %v3467
  %v3473 = vmul.f32 %v3472, 0.6931472
  %v3474 = vlog2.pop %v3468
  %v3475 = vmul.f32 %v3474, 0.6931472
  %v3476 = vlog2.pop %v3469
  %v3477 = vmul.f32 %v3476, 0.6931472
  %v3478 = vadd.f32 %v3446, %v3471
  %v3479 = vadd.f32 %v3447, %v3473
  %v3480 = vadd.f32 %v3448, %v3475
  %v3481 = vadd.f32 %v3449, %v3477
  %v3482 = vsub.f32 %v3478, 0.6931472
  %v3483 = vsub.f32 %v3479, 0.6931472
  %v3484 = vsub.f32 %v3480, 0.6931472
  %v3485 = vsub.f32 %v3481, 0.6931472
  %s3486 = scalar_lea.vmem %s5, 352
  %v3487 = vld [vmem:[%s3486] sm:$0xff]
  %v3488 = vld [vmem:[%s3486 + $0x8] sm:$0xff]
  %v3489 = vld [vmem:[%s3486 + $0x10] sm:$0xff]
  %v3490 = vld [vmem:[%s3486 + $0x18] sm:$0xff]
  %s3491 = scalar_lea.vmem %s6, 352
  %v3492 = vld [vmem:[%s3491] sm:$0xff]
  %v3493 = vld [vmem:[%s3491 + $0x8] sm:$0xff]
  %v3494 = vld [vmem:[%s3491 + $0x10] sm:$0xff]
  %v3495 = vld [vmem:[%s3491 + $0x18] sm:$0xff]
  %3497 = vset.pattern.permute.xlu0 0
  %3498 = vperm.xlu0 %3497, %v3492
  %v3499 = vpop.permute.xlu0 %3498
  %3502 = vset.pattern.permute.xlu0 0
  %3503 = vperm.xlu0 %3502, %v3493
  %v3504 = vpop.permute.xlu0 %3503
  %3507 = vset.pattern.permute.xlu0 0
  %3508 = vperm.xlu0 %3507, %v3494
  %v3509 = vpop.permute.xlu0 %3508
  %3512 = vset.pattern.permute.xlu0 0
  %3513 = vperm.xlu0 %3512, %v3495
  %v3514 = vpop.permute.xlu0 %3513
  %v3517 = vsel %vm1017, %v3487, 0
  %v3520 = vsel %vm1017, %v3488, 0
  %v3523 = vsel %vm1017, %v3489, 0
  %v3526 = vsel %vm1017, %v3490, 0
  %3528 = vmatprep.subr.mxu0 0.0
  %3529 = vmatpush1.msra.mxu0 %v3482
  %3530 = vmatprep.subr.mxu0 0.0
  %3531 = vmatpush1.msra.mxu0 %v3483
  %3532 = vmatprep.subr.mxu0 0.0
  %3533 = vmatpush1.msra.mxu0 %v3484
  %3534 = vmatprep.subr.mxu0 0.0
  %3535 = vmatpush1.msra.mxu0 %v3485
  %3536 = vmatprep.subr.mxu0 0.0
  %3537 = vmatpush1.msra.mxu0 0.0
  %3538 = vmatprep.subr.mxu0 0.0
  %3539 = vmatpush1.msra.mxu0 0.0
  %3540 = vmatprep.subr.mxu0 0.0
  %3541 = vmatpush1.msra.mxu0 0.0
  %3542 = vmatprep.subr.mxu0 0.0
  %3543 = vmatpush1.msra.mxu0 0.0
  %3544 = vmatprep.subr.mxu0 0.0
  %3545 = vmatpush1.msra.mxu0 0.0
  %3546 = vmatprep.subr.mxu0 0.0
  %3547 = vmatpush1.msra.mxu0 0.0
  %3548 = vmatprep.subr.mxu0 0.0
  %3549 = vmatpush1.msra.mxu0 0.0
  %3550 = vmatprep.subr.mxu0 0.0
  %3551 = vmatpush1.msra.mxu0 0.0
  %3552 = vmatprep.subr.mxu0 0.0
  %3553 = vmatpush1.msra.mxu0 0.0
  %3554 = vmatprep.subr.mxu0 0.0
  %3555 = vmatpush1.msra.mxu0 0.0
  %3556 = vmatprep.subr.mxu0 0.0
  %3557 = vmatpush1.msra.mxu0 0.0
  %3558 = vmatprep.subr.mxu0 0.0
  %3559 = vmatpush1.msra.mxu0 0.0
  %3560 = vmatprep.subr.mxu0 0.0
  %3561 = vmatpush1.msra.mxu0 0.0
  %3562 = vmatprep.subr.mxu0 0.0
  %3563 = vmatpush1.msra.mxu0 0.0
  %3564 = vmatprep.subr.mxu0 0.0
  %3565 = vmatpush1.msra.mxu0 0.0
  %3566 = vmatprep.subr.mxu0 0.0
  %3567 = vmatpush1.msra.mxu0 0.0
  %3568 = vmatprep.subr.mxu0 0.0
  %3569 = vmatpush1.msra.mxu0 0.0
  %3570 = vmatprep.subr.mxu0 0.0
  %3571 = vmatpush1.msra.mxu0 0.0
  %3572 = vmatprep.subr.mxu0 0.0
  %3573 = vmatpush1.msra.mxu0 0.0
  %3574 = vmatprep.subr.mxu0 0.0
  %3575 = vmatpush1.msra.mxu0 0.0
  %3576 = vmatprep.subr.mxu0 0.0
  %3577 = vmatpush1.msra.mxu0 0.0
  %3578 = vmatprep.subr.mxu0 0.0
  %3579 = vmatpush1.msra.mxu0 0.0
  %3580 = vmatprep.subr.mxu0 0.0
  %3581 = vmatpush1.msra.mxu0 0.0
  %3582 = vmatprep.subr.mxu0 0.0
  %3583 = vmatpush1.msra.mxu0 0.0
  %3584 = vmatprep.subr.mxu0 0.0
  %3585 = vmatpush1.msra.mxu0 0.0
  %3586 = vmatprep.subr.mxu0 0.0
  %3587 = vmatpush1.msra.mxu0 0.0
  %3588 = vmatprep.subr.mxu0 0.0
  %3589 = vmatpush1.msra.mxu0 0.0
  %3590 = vmatprep.subr.mxu0 0.0
  %3591 = vmatpush1.msra.mxu0 0.0
  %3592 = vmatprep.mubr.f32.mxu0 0.0
  %3593 = vmatmul.mubr.f32.gmra.mrb[0].mxu0 %v3517
  %v3594 = vpop.f32.mrb[0].mxu0
  %v3595 = vadd.f32 %v3499, %v3594
  %v3596 = vpop.f32.mrb[0].mxu0
  %3597 = vmatprep.mubr.f32.mxu0 0.0
  %3598 = vmatmul.mubr.f32.gmra.mrb[0].mxu0 %v3520
  %v3599 = vpop.f32.mrb[0].mxu0
  %v3600 = vadd.f32 %v3504, %v3599
  %v3601 = vpop.f32.mrb[0].mxu0
  %3602 = vmatprep.mubr.f32.mxu0 0.0
  %3603 = vmatmul.mubr.f32.gmra.mrb[0].mxu0 %v3523
  %v3604 = vpop.f32.mrb[0].mxu0
  %v3605 = vadd.f32 %v3509, %v3604
  %v3606 = vpop.f32.mrb[0].mxu0
  %3607 = vmatprep.mubr.f32.mxu0 0.0
  %3608 = vmatmul.mubr.f32.gmra.mrb[0].mxu0 %v3526
  %v3609 = vpop.f32.mrb[0].mxu0
  %v3610 = vadd.f32 %v3514, %v3609
  %v3611 = vpop.f32.mrb[0].mxu0
  %3612 = vdwg.mxu0
  %v3613 = vadd.f32 %v2669, %v3595
  %v3614 = vadd.f32 %v2670, %v3600
  %v3615 = vadd.f32 %v2671, %v3605
  %v3616 = vadd.f32 %v2672, %v3610
  %v3617 = vld [vmem:[%s7] sm:$0xff]
  %v3618 = vld [vmem:[%s7 + $0x8] sm:$0xff]
  %v3619 = vld [vmem:[%s8] sm:$0xff]
  %v3620 = vld [vmem:[%s8 + $0x8] sm:$0xff]
  %3622 = vset.pattern.permute.xlu0 0
  %3623 = vperm.xlu0 %3622, %v3619
  %v3624 = vpop.permute.xlu0 %3623
  %3627 = vset.pattern.permute.xlu0 0
  %3628 = vperm.xlu0 %3627, %v3620
  %v3629 = vpop.permute.xlu0 %3628
  %v3632 = vsel %vm1017, %v3617, 0
  %v3635 = vsel %vm1017, %v3618, 0
  %3637 = vmatprep.subr.mxu0 0.0
  %3638 = vmatpush1.msra.mxu0 %v3613
  %3639 = vmatprep.subr.mxu0 0.0
  %3640 = vmatpush1.msra.mxu0 %v3614
  %3641 = vmatprep.subr.mxu0 0.0
  %3642 = vmatpush1.msra.mxu0 %v3615
  %3643 = vmatprep.subr.mxu0 0.0
  %3644 = vmatpush1.msra.mxu0 %v3616
  %3645 = vmatprep.subr.mxu0 0.0
  %3646 = vmatpush1.msra.mxu0 0.0
  %3647 = vmatprep.subr.mxu0 0.0
  %3648 = vmatpush1.msra.mxu0 0.0
  %3649 = vmatprep.subr.mxu0 0.0
  %3650 = vmatpush1.msra.mxu0 0.0
  %3651 = vmatprep.subr.mxu0 0.0
  %3652 = vmatpush1.msra.mxu0 0.0
  %3653 = vmatprep.subr.mxu0 0.0
  %3654 = vmatpush1.msra.mxu0 0.0
  %3655 = vmatprep.subr.mxu0 0.0
  %3656 = vmatpush1.msra.mxu0 0.0
  %3657 = vmatprep.subr.mxu0 0.0
  %3658 = vmatpush1.msra.mxu0 0.0
  %3659 = vmatprep.subr.mxu0 0.0
  %3660 = vmatpush1.msra.mxu0 0.0
  %3661 = vmatprep.subr.mxu0 0.0
  %3662 = vmatpush1.msra.mxu0 0.0
  %3663 = vmatprep.subr.mxu0 0.0
  %3664 = vmatpush1.msra.mxu0 0.0
  %3665 = vmatprep.subr.mxu0 0.0
  %3666 = vmatpush1.msra.mxu0 0.0
  %3667 = vmatprep.subr.mxu0 0.0
  %3668 = vmatpush1.msra.mxu0 0.0
  %3669 = vmatprep.subr.mxu0 0.0
  %3670 = vmatpush1.msra.mxu0 0.0
  %3671 = vmatprep.subr.mxu0 0.0
  %3672 = vmatpush1.msra.mxu0 0.0
  %3673 = vmatprep.subr.mxu0 0.0
  %3674 = vmatpush1.msra.mxu0 0.0
  %3675 = vmatprep.subr.mxu0 0.0
  %3676 = vmatpush1.msra.mxu0 0.0
  %3677 = vmatprep.subr.mxu0 0.0
  %3678 = vmatpush1.msra.mxu0 0.0
  %3679 = vmatprep.subr.mxu0 0.0
  %3680 = vmatpush1.msra.mxu0 0.0
  %3681 = vmatprep.subr.mxu0 0.0
  %3682 = vmatpush1.msra.mxu0 0.0
  %3683 = vmatprep.subr.mxu0 0.0
  %3684 = vmatpush1.msra.mxu0 0.0
  %3685 = vmatprep.subr.mxu0 0.0
  %3686 = vmatpush1.msra.mxu0 0.0
  %3687 = vmatprep.subr.mxu0 0.0
  %3688 = vmatpush1.msra.mxu0 0.0
  %3689 = vmatprep.subr.mxu0 0.0
  %3690 = vmatpush1.msra.mxu0 0.0
  %3691 = vmatprep.subr.mxu0 0.0
  %3692 = vmatpush1.msra.mxu0 0.0
  %3693 = vmatprep.subr.mxu0 0.0
  %3694 = vmatpush1.msra.mxu0 0.0
  %3695 = vmatprep.subr.mxu0 0.0
  %3696 = vmatpush1.msra.mxu0 0.0
  %3697 = vmatprep.subr.mxu0 0.0
  %3698 = vmatpush1.msra.mxu0 0.0
  %3699 = vmatprep.subr.mxu0 0.0
  %3700 = vmatpush1.msra.mxu0 0.0
  %3701 = vmatprep.mubr.f32.mxu0 0.0
  %3702 = vmatmul.mubr.f32.gmra.mrb[0].mxu0 %v3632
  %v3703 = vpop.f32.mrb[0].mxu0
  %v3704 = vadd.f32 %v3624, %v3703
  %v3705 = vpop.f32.mrb[0].mxu0
  %3706 = vmatprep.mubr.f32.mxu0 0.0
  %3707 = vmatmul.mubr.f32.gmra.mrb[0].mxu0 %v3635
  %v3708 = vpop.f32.mrb[0].mxu0
  %v3709 = vadd.f32 %v3629, %v3708
  %v3710 = vpop.f32.mrb[0].mxu0
  %3711 = vdwg.mxu0
  %v3712 = vmax.f32 %v3704, 0.0
  %v3713 = vmax.f32 %v3709, 0.0
  %v3714 = vand.u32 2147483647, %v3704
  %v3715 = vand.u32 2147483647, %v3709
  %v3716 = vsub.f32 0.0, %v3714
  %v3717 = vsub.f32 0.0, %v3715
  %v3718 = vmul.f32 %v3716, 1.442695
  %v3719 = vpow.pop %v3718
  %v3720 = vmul.f32 %v3717, 1.442695
  %v3721 = vpow.pop %v3720
  %v3722 = vadd.f32 %v3719, 1.0
  %v3723 = vadd.f32 %v3721, 1.0
  %v3724 = vlog2.pop %v3722
  %v3725 = vmul.f32 %v3724, 0.6931472
  %v3726 = vlog2.pop %v3723
  %v3727 = vmul.f32 %v3726, 0.6931472
  %v3728 = vadd.f32 %v3712, %v3725
  %v3729 = vadd.f32 %v3713, %v3727
  %v3730 = vsub.f32 %v3728, 0.6931472
  %v3731 = vsub.f32 %v3729, 0.6931472
  %v3732 = vld [vmem:[%s9] sm:$0x1]
  %v3733 = vld [vmem:[#allocation2] sm:$0x1]
  %3735 = vset.pattern.permute.xlu0 0
  %3736 = vperm.xlu0 %3735, %v3733
  %v3737 = vpop.permute.xlu0 %3736
  %v3739 = vlaneseq
  %v3740 = vshrl.u32 %v3739, 7
  %v3741 = vsub.s32 0, %v3740
  %v3742 = vrot.slane %v3737, %v3741
  %v3744 = vsel %vm193, %v3732, 0
  %3746 = vmatprep.subr.mxu0 0.0
  %3747 = vmatpush1.msra.mxu0 %v3730
  %3748 = vmatprep.subr.mxu0 0.0
  %3749 = vmatpush1.msra.mxu0 %v3731
  %3750 = vmatprep.subr.mxu0 0.0
  %3751 = vmatpush1.msra.mxu0 0.0
  %3752 = vmatprep.subr.mxu0 0.0
  %3753 = vmatpush1.msra.mxu0 0.0
  %3754 = vmatprep.subr.mxu0 0.0
  %3755 = vmatpush1.msra.mxu0 0.0
  %3756 = vmatprep.subr.mxu0 0.0
  %3757 = vmatpush1.msra.mxu0 0.0
  %3758 = vmatprep.subr.mxu0 0.0
  %3759 = vmatpush1.msra.mxu0 0.0
  %3760 = vmatprep.subr.mxu0 0.0
  %3761 = vmatpush1.msra.mxu0 0.0
  %3762 = vmatprep.subr.mxu0 0.0
  %3763 = vmatpush1.msra.mxu0 0.0
  %3764 = vmatprep.subr.mxu0 0.0
  %3765 = vmatpush1.msra.mxu0 0.0
  %3766 = vmatprep.subr.mxu0 0.0
  %3767 = vmatpush1.msra.mxu0 0.0
  %3768 = vmatprep.subr.mxu0 0.0
  %3769 = vmatpush1.msra.mxu0 0.0
  %3770 = vmatprep.subr.mxu0 0.0
  %3771 = vmatpush1.msra.mxu0 0.0
  %3772 = vmatprep.subr.mxu0 0.0
  %3773 = vmatpush1.msra.mxu0 0.0
  %3774 = vmatprep.subr.mxu0 0.0
  %3775 = vmatpush1.msra.mxu0 0.0
  %3776 = vmatprep.subr.mxu0 0.0
  %3777 = vmatpush1.msra.mxu0 0.0
  %3778 = vmatprep.subr.mxu0 0.0
  %3779 = vmatpush1.msra.mxu0 0.0
  %3780 = vmatprep.subr.mxu0 0.0
  %3781 = vmatpush1.msra.mxu0 0.0
  %3782 = vmatprep.subr.mxu0 0.0
  %3783 = vmatpush1.msra.mxu0 0.0
  %3784 = vmatprep.subr.mxu0 0.0
  %3785 = vmatpush1.msra.mxu0 0.0
  %3786 = vmatprep.subr.mxu0 0.0
  %3787 = vmatpush1.msra.mxu0 0.0
  %3788 = vmatprep.subr.mxu0 0.0
  %3789 = vmatpush1.msra.mxu0 0.0
  %3790 = vmatprep.subr.mxu0 0.0
  %3791 = vmatpush1.msra.mxu0 0.0
  %3792 = vmatprep.subr.mxu0 0.0
  %3793 = vmatpush1.msra.mxu0 0.0
  %3794 = vmatprep.subr.mxu0 0.0
  %3795 = vmatpush1.msra.mxu0 0.0
  %3796 = vmatprep.subr.mxu0 0.0
  %3797 = vmatpush1.msra.mxu0 0.0
  %3798 = vmatprep.subr.mxu0 0.0
  %3799 = vmatpush1.msra.mxu0 0.0
  %3800 = vmatprep.subr.mxu0 0.0
  %3801 = vmatpush1.msra.mxu0 0.0
  %3802 = vmatprep.subr.mxu0 0.0
  %3803 = vmatpush1.msra.mxu0 0.0
  %3804 = vmatprep.subr.mxu0 0.0
  %3805 = vmatpush1.msra.mxu0 0.0
  %3806 = vmatprep.subr.mxu0 0.0
  %3807 = vmatpush1.msra.mxu0 0.0
  %3808 = vmatprep.subr.mxu0 0.0
  %3809 = vmatpush1.msra.mxu0 0.0
  %3810 = vmatprep.mubr.f32.mxu0 0.0
  %3811 = vmatmul.mubr.f32.gmra.mrb[0].mxu0 %v3744
  %v3812 = vpop.f32.mrb[0].mxu0
  %v3813 = vadd.f32 %v3742, %v3812
  %v3814 = vpop.f32.mrb[0].mxu0
  %3815 = vdwg.mxu0
  %v3816 = vld [vmem:[%s2] sm:$0xff]
  %v3817 = vld [vmem:[%s2 + $0x8] sm:$0xff]
  %v3819 = vsel %vm193, %v3813, 0
  %3821 = vmatprep.subr.mxu0 0.0
  %3822 = vmatpush1.msra.mxu0 %v3816
  %3823 = vmatprep.subr.mxu0 0.0
  %3824 = vmatpush1.msra.mxu0 %v3817
  %3825 = vmatprep.subr.mxu0 0.0
  %3826 = vmatpush1.msra.mxu0 0.0
  %3827 = vmatprep.subr.mxu0 0.0
  %3828 = vmatpush1.msra.mxu0 0.0
  %3829 = vmatprep.subr.mxu0 0.0
  %3830 = vmatpush1.msra.mxu0 0.0
  %3831 = vmatprep.subr.mxu0 0.0
  %3832 = vmatpush1.msra.mxu0 0.0
  %3833 = vmatprep.subr.mxu0 0.0
  %3834 = vmatpush1.msra.mxu0 0.0
  %3835 = vmatprep.subr.mxu0 0.0
  %3836 = vmatpush1.msra.mxu0 0.0
  %3837 = vmatprep.subr.mxu0 0.0
  %3838 = vmatpush1.msra.mxu0 0.0
  %3839 = vmatprep.subr.mxu0 0.0
  %3840 = vmatpush1.msra.mxu0 0.0
  %3841 = vmatprep.subr.mxu0 0.0
  %3842 = vmatpush1.msra.mxu0 0.0
  %3843 = vmatprep.subr.mxu0 0.0
  %3844 = vmatpush1.msra.mxu0 0.0
  %3845 = vmatprep.subr.mxu0 0.0
  %3846 = vmatpush1.msra.mxu0 0.0
  %3847 = vmatprep.subr.mxu0 0.0
  %3848 = vmatpush1.msra.mxu0 0.0
  %3849 = vmatprep.subr.mxu0 0.0
  %3850 = vmatpush1.msra.mxu0 0.0
  %3851 = vmatprep.subr.mxu0 0.0
  %3852 = vmatpush1.msra.mxu0 0.0
  %3853 = vmatprep.subr.mxu0 0.0
  %3854 = vmatpush1.msra.mxu0 0.0
  %3855 = vmatprep.subr.mxu0 0.0
  %3856 = vmatpush1.msra.mxu0 0.0
  %3857 = vmatprep.subr.mxu0 0.0
  %3858 = vmatpush1.msra.mxu0 0.0
  %3859 = vmatprep.subr.mxu0 0.0
  %3860 = vmatpush1.msra.mxu0 0.0
  %3861 = vmatprep.subr.mxu0 0.0
  %3862 = vmatpush1.msra.mxu0 0.0
  %3863 = vmatprep.subr.mxu0 0.0
  %3864 = vmatpush1.msra.mxu0 0.0
  %3865 = vmatprep.subr.mxu0 0.0
  %3866 = vmatpush1.msra.mxu0 0.0
  %3867 = vmatprep.subr.mxu0 0.0
  %3868 = vmatpush1.msra.mxu0 0.0
  %3869 = vmatprep.subr.mxu0 0.0
  %3870 = vmatpush1.msra.mxu0 0.0
  %3871 = vmatprep.subr.mxu0 0.0
  %3872 = vmatpush1.msra.mxu0 0.0
  %3873 = vmatprep.subr.mxu0 0.0
  %3874 = vmatpush1.msra.mxu0 0.0
  %3875 = vmatprep.subr.mxu0 0.0
  %3876 = vmatpush1.msra.mxu0 0.0
  %3877 = vmatprep.subr.mxu0 0.0
  %3878 = vmatpush1.msra.mxu0 0.0
  %3879 = vmatprep.subr.mxu0 0.0
  %3880 = vmatpush1.msra.mxu0 0.0
  %3881 = vmatprep.subr.mxu0 0.0
  %3882 = vmatpush1.msra.mxu0 0.0
  %3883 = vmatprep.subr.mxu0 0.0
  %3884 = vmatpush1.msra.mxu0 0.0
  %3885 = vmatprep.mubr.f32.mxu0 0.0
  %3886 = vmatmul.mubr.f32.gmra.mrb[0].mxu0 %v3819
  %v3887 = vpop.f32.mrb[0].mxu0
  %v3888 = vadd.f32 0.0, %v3887
  %v3889 = vpop.f32.mrb[0].mxu0
  %3890 = vdwg.mxu0
  %3891 = vst [vmem:[%s11] sm:$0x1] %v3888
  // Predicated region
  $region46: #{_schnet_forward.1} parent=0 // pred_check
    _
  $region47: #{_schnet_forward.1} parent=0 // pred_check_branch
    %3893 = sbr.rel (0) target = $region49
  $region48: #{_schnet_forward.1} parent=0 // pred_region
    _
  $region49: #{_schnet_forward.1} parent=0 // pred_fallthru
    _
  // Predicated region
  $region50: #{_schnet_forward.1} parent=0 // pred_check
    _
  $region51: #{_schnet_forward.1} parent=0 // pred_check_branch
    %3895 = sbr.rel (0) target = $region53
  $region52: #{_schnet_forward.1} parent=0 // pred_region
    _
  $region53: #{_schnet_forward.1} parent=0 // pred_fallthru
    _

</llo_original>
